<compile_context>
chip_gen: v5e
topology: v5e:2x2
jax: 0.10.0
libtpu: 0.0.40
codegen_flags: <defaults>
</compile_context>

<pallas_src>
import jax
import jax.numpy as jnp
from jax.experimental import pallas as pl
from jax.experimental.pallas import tpu as pltpu

# ----------------------------- config --------------------------------------
POS_ENC_LEVELS = 2
DIR_ENC_LEVELS = 2
POS_IN = POS_ENC_LEVELS * 2 * 3          # 12  (includeOrigPos=False)
DIR_IN = DIR_ENC_LEVELS * 2 * 3          # 12  (includeOrigDir=False)
HP = 32                                   # hidden_units_pos
HD = 32                                   # hidden_units_dir
LAYERS_DIR = 2                            # extra hidden dir layers
D = 8                                     # final dot-product dimension
TM = 512                                  # samples per grid step (lane axis)
N_SQ = 3 + 3 + LAYERS_DIR                 # stacked (32,32) hidden linears


# ----------------------------- kernel ---------------------------------------
def fastnerf_kernel(pos_ref, dir_ref,
                    wsq_ref, bsq_ref,          # (N_SQ, HP, HP) bf16 / (N_SQ, HP, 1) f32
                    w_p0_ref, b_p0_ref,        # (HP, POS_IN) / (HP, 1)
                    w_p1a_ref, b_p1a_ref,      # (HP, HP+POS_IN) merged / (HP, 1)
                    w_p1f_ref, b_p1f_ref,      # (3D+1, HP) / (3D+1, 1)
                    w_d0_ref, b_d0_ref,        # (HD, DIR_IN) / (HD, 1)
                    w_df_ref, b_df_ref,        # (D, HD) / (D, 1)
                    out_ref,                   # (4, TM)
                    cat_ref):                  # VMEM scratch (HP+POS_IN, TM) f32
    bf16 = jnp.bfloat16
    f32 = jnp.float32

    def lin(w, x_b, b):
        # (out, in) bf16 @ (in, TM) bf16 -> f32 accumulation on the MXU
        return jnp.dot(w, x_b, preferred_element_type=f32) + b

    x_pos = pos_ref[...]                         # (POS_IN, TM) f32
    x_pos_b = x_pos.astype(bf16)

    # ---- layers_pos0: 4 x (Linear + ReLU) ----
    h = jax.nn.relu(lin(w_p0_ref[...], x_pos_b, b_p0_ref[...]))
    for i in range(3):
        h = jax.nn.relu(lin(wsq_ref[i], h.astype(bf16), bsq_ref[i]))

    # ---- layers_pos1 first linear on concat([h, pos_enc]) as ONE merged dot ----
    # (merged weight columns are ordered [hidden(HP) | pos(POS_IN)])
    cat_ref[0:HP, :] = h
    cat_ref[HP:HP + POS_IN, :] = x_pos
    h = jax.nn.relu(lin(w_p1a_ref[...], cat_ref[...].astype(bf16), b_p1a_ref[...]))

    # ---- layers_pos1 hidden: 3 x (Linear + ReLU) ----
    for i in range(3, 6):
        h = jax.nn.relu(lin(wsq_ref[i], h.astype(bf16), bsq_ref[i]))

    # ---- layers_pos1 final Linear (no ReLU) -> (3*D + 1, TM) ----
    x = lin(w_p1f_ref[...], h.astype(bf16), b_p1f_ref[...])
    uvw = x[0:3 * D, :]                          # (3*D, TM)
    density = x[3 * D:3 * D + 1, :]              # (1, TM)

    # ---- layers_dir: (1 + LAYERS_DIR + 1) x (Linear + ReLU) ----
    hd = jax.nn.relu(lin(w_d0_ref[...], dir_ref[...].astype(bf16), b_d0_ref[...]))
    for i in range(6, 6 + LAYERS_DIR):
        hd = jax.nn.relu(lin(wsq_ref[i], hd.astype(bf16), bsq_ref[i]))
    betas = jax.nn.relu(lin(w_df_ref[...], hd.astype(bf16), b_df_ref[...]))   # (D, TM)

    # rgb_c = sigmoid( sum_D uvw[c*D:(c+1)*D] * betas ) ; lane-dense row stores.
    for c in range(3):
        rc = jnp.sum(uvw[c * D:(c + 1) * D, :] * betas, axis=0, keepdims=True)
        out_ref[c:c + 1, :] = jax.nn.sigmoid(rc)
    out_ref[3:4, :] = jax.nn.relu(density)


# ----------------------------- wrapper ---------------------------------------
def _resident_spec(arr):
    zeros = (0,) * arr.ndim
    return pl.BlockSpec(arr.shape, lambda i: zeros)


def pack_params(p):
    """Flatten the structured f32 params into the kernel argument tuple."""
    bf16 = jnp.bfloat16
    sq = p["pos0"][1:] + p["pos1_hidden"] + p["dir_hidden"]
    wsq = jnp.stack([w for w, _ in sq]).astype(bf16)                     # (N_SQ, HP, HP)
    bsq = jnp.stack([b for _, b in sq])[:, :, None].astype(jnp.float32)  # (N_SQ, HP, 1)

    def Wk(t):
        return t[0].astype(bf16)

    def Bk(t):
        return t[1][:, None].astype(jnp.float32)

    return (wsq, bsq,
            Wk(p["pos0"][0]), Bk(p["pos0"][0]),
            Wk(p["pos1_first"]), Bk(p["pos1_first"]),
            Wk(p["pos1_final"]), Bk(p["pos1_final"]),
            Wk(p["dir_first"]), Bk(p["dir_first"]),
            Wk(p["dir_final"]), Bk(p["dir_final"]))


def fastnerf_forward(pos_enc, dir_enc, params):
    H, W, N, _ = pos_enc.shape
    M = H * W * N
    assert M % TM == 0, "flattened sample count must be a multiple of TM"

    # channel-major: features on sublanes, samples on the lane axis
    pos_t = pos_enc.reshape(M, POS_IN).T          # (POS_IN, M)
    dir_t = dir_enc.reshape(M, DIR_IN).T          # (DIR_IN, M)
    flat_params = pack_params(params)

    in_specs = [
        pl.BlockSpec((POS_IN, TM), lambda i: (0, i)),
        pl.BlockSpec((DIR_IN, TM), lambda i: (0, i)),
    ] + [_resident_spec(arr) for arr in flat_params]

    out_t = pl.pallas_call(
        fastnerf_kernel,
        out_shape=jax.ShapeDtypeStruct((4, M), jnp.float32),
        grid=(M // TM,),
        in_specs=in_specs,
        out_specs=pl.BlockSpec((4, TM), lambda i: (0, i)),
        scratch_shapes=[pltpu.VMEM((HP + POS_IN, TM), jnp.float32)],
        compiler_params=pltpu.CompilerParams(
            dimension_semantics=("parallel",)),
    )(pos_t, dir_t, *flat_params)

    return out_t.T.reshape(H, W, N, 4)


# ----------------------------- params ----------------------------------------
def init_params(key):
    """Deterministic parameter init mirroring the module's layer shapes.
    Weights are stored (out_features, in_features) (PyTorch Linear convention);
    the layers_pos1 first layer is stored merged with columns [hidden | pos]."""
    keys = list(jax.random.split(key, 40))
    kidx = [0]

    def nk():
        k = keys[kidx[0]]
        kidx[0] += 1
        return k

    def linear(fan_out, fan_in, bias_const=None):
        scale = (2.0 / fan_in) ** 0.5
        w = jax.random.normal(nk(), (fan_out, fan_in), jnp.float32) * scale
        if bias_const is None:
            b = jax.random.normal(nk(), (fan_out,), jnp.float32) * 0.01
        else:
            b = jnp.full((fan_out,), bias_const, jnp.float32)
        return w, b

    params = {}
    params["pos0"] = [linear(HP, POS_IN)] + [linear(HP, HP) for _ in range(3)]
    params["pos1_first"] = linear(HP, HP + POS_IN)      # columns: [hidden | pos]
    params["pos1_hidden"] = [linear(HP, HP) for _ in range(3)]
    params["pos1_final"] = linear(3 * D + 1, HP)
    params["dir_first"] = linear(HD, DIR_IN)
    params["dir_hidden"] = [linear(HD, HD) for _ in range(LAYERS_DIR)]
    params["dir_final"] = linear(D, HD, bias_const=0.1)  # bias init 0.1 (as in module)
    return params


# --------------------------- pure-JAX reference ------------------------------
def fastnerf_reference(pos_enc, dir_enc, p):
    """Channel-last reference that mirrors the kernel's bf16-operand numerics."""
    bf16 = jnp.bfloat16

    def lin(x, wb):
        w, b = wb
        return jnp.dot(x.astype(bf16), w.astype(bf16).T,
                       preferred_element_type=jnp.float32) + b

    h = pos_enc
    for wb in p["pos0"]:
        h = jax.nn.relu(lin(h, wb))
    # merged first layers_pos1 linear: concat order [hidden, pos]
    h = jax.nn.relu(lin(jnp.concatenate([h, pos_enc], axis=-1), p["pos1_first"]))
    for wb in p["pos1_hidden"]:
        h = jax.nn.relu(lin(h, wb))
    x = lin(h, p["pos1_final"])
    uvw, density = x[..., :3 * D], x[..., 3 * D:]

    hd = dir_enc
    for wb in [p["dir_first"]] + p["dir_hidden"] + [p["dir_final"]]:
        hd = jax.nn.relu(lin(hd, wb))
    betas = hd

    sh = uvw.shape[:-1]
    rgb = jax.nn.sigmoid(
        jnp.sum(uvw.reshape(*sh, 3, D) * betas.reshape(*sh, 1, D), axis=-1))
    return jnp.concatenate([rgb, jax.nn.relu(density)], axis=-1)


# ----------------------------- main ------------------------------------------
if __name__ == "__main__":
    key = jax.random.PRNGKey(0)
    kp, k1, k2 = jax.random.split(key, 3)

    # M = 8*8*32 = 2048 flattened samples -> 4 grid steps of TM=512 (multi-tile path)
    H, W, N = 8, 8, 32
    pos_enc = jax.random.normal(k1, (H, W, N, POS_IN), jnp.float32)
    dir_enc = jax.random.normal(k2, (H, W, N, DIR_IN), jnp.float32)

    params = init_params(kp)

    out = fastnerf_forward(pos_enc, dir_enc, params)
    out = jax.block_until_ready(out)

    ref = fastnerf_reference(pos_enc, dir_enc, params)
    assert out.shape == (H, W, N, 4)
    max_err = float(jnp.max(jnp.abs(out - ref)))
    assert jnp.allclose(out, ref, atol=1e-2, rtol=1e-2), (
        f"mismatch vs reference: max abs err {max_err}")

    print("KERNEL_OK")
</pallas_src>

<mosaic_0001>
module attributes {stable_mosaic.version = 11 : i64} {
  func.func @fastnerf_kernel(%arg0: i32, %arg1: memref<12x512xf32, #tpu.memory_space<vmem>>, %arg2: memref<12x512xf32, #tpu.memory_space<vmem>>, %arg3: memref<8x32x32xbf16, #tpu.memory_space<vmem>>, %arg4: memref<8x32x1xf32, #tpu.memory_space<vmem>>, %arg5: memref<32x12xbf16, #tpu.memory_space<vmem>>, %arg6: memref<32x1xf32, #tpu.memory_space<vmem>>, %arg7: memref<32x44xbf16, #tpu.memory_space<vmem>>, %arg8: memref<32x1xf32, #tpu.memory_space<vmem>>, %arg9: memref<25x32xbf16, #tpu.memory_space<vmem>>, %arg10: memref<25x1xf32, #tpu.memory_space<vmem>>, %arg11: memref<32x12xbf16, #tpu.memory_space<vmem>>, %arg12: memref<32x1xf32, #tpu.memory_space<vmem>>, %arg13: memref<8x32xbf16, #tpu.memory_space<vmem>>, %arg14: memref<8x1xf32, #tpu.memory_space<vmem>>, %arg15: memref<4x512xf32, #tpu.memory_space<vmem>>, %arg16: memref<44x512xf32, #tpu.memory_space<vmem>>) attributes {dimension_semantics = [#tpu.dimension_semantics<parallel>], iteration_bounds = array<i64: 4>, scalar_prefetch = 0 : i64, scratch_operands = 1 : i64, tpu.core_type = #tpu.core_type<tc>, window_params = [{transform_indices = @transform_0, window_bounds = array<i64: 12, 512>}, {transform_indices = @transform_1, window_bounds = array<i64: 12, 512>}, {pipeline_mode = #tpu.pipeline_mode<synchronous>, transform_indices = @transform_2, window_bounds = array<i64: 8, 32, 32>}, {pipeline_mode = #tpu.pipeline_mode<synchronous>, transform_indices = @transform_3, window_bounds = array<i64: 8, 32, 1>}, {pipeline_mode = #tpu.pipeline_mode<synchronous>, transform_indices = @transform_4, window_bounds = array<i64: 32, 12>}, {pipeline_mode = #tpu.pipeline_mode<synchronous>, transform_indices = @transform_5, window_bounds = array<i64: 32, 1>}, {pipeline_mode = #tpu.pipeline_mode<synchronous>, transform_indices = @transform_6, window_bounds = array<i64: 32, 44>}, {pipeline_mode = #tpu.pipeline_mode<synchronous>, transform_indices = @transform_7, window_bounds = array<i64: 32, 1>}, {pipeline_mode = #tpu.pipeline_mode<synchronous>, transform_indices = @transform_8, window_bounds = array<i64: 25, 32>}, {pipeline_mode = #tpu.pipeline_mode<synchronous>, transform_indices = @transform_9, window_bounds = array<i64: 25, 1>}, {pipeline_mode = #tpu.pipeline_mode<synchronous>, transform_indices = @transform_10, window_bounds = array<i64: 32, 12>}, {pipeline_mode = #tpu.pipeline_mode<synchronous>, transform_indices = @transform_11, window_bounds = array<i64: 32, 1>}, {pipeline_mode = #tpu.pipeline_mode<synchronous>, transform_indices = @transform_12, window_bounds = array<i64: 8, 32>}, {pipeline_mode = #tpu.pipeline_mode<synchronous>, transform_indices = @transform_13, window_bounds = array<i64: 8, 1>}, {transform_indices = @transform_14, window_bounds = array<i64: 4, 512>}]} {
    %c0 = arith.constant 0 : index
    %c0_0 = arith.constant 0 : index
    %0 = vector.load %arg1[%c0, %c0_0] : memref<12x512xf32, #tpu.memory_space<vmem>>, vector<12x512xf32>
    %1 = arith.truncf %0 : vector<12x512xf32> to vector<12x512xbf16>
    %c0_1 = arith.constant 0 : index
    %c0_2 = arith.constant 0 : index
    %2 = vector.load %arg5[%c0_1, %c0_2] : memref<32x12xbf16, #tpu.memory_space<vmem>>, vector<32x12xbf16>
    %c0_3 = arith.constant 0 : index
    %c0_4 = arith.constant 0 : index
    %3 = vector.load %arg6[%c0_3, %c0_4] : memref<32x1xf32, #tpu.memory_space<vmem>>, vector<32x1xf32>
    %cst = arith.constant dense<0.000000e+00> : vector<32x512xf32>
    %4 = tpu.matmul %2, %1, %cst {dimension_numbers = #tpu.dot_dimension_numbers<[1], [0], [0], [1], [0, 0, 1, 1], [], []>} : vector<32x12xbf16>, vector<12x512xbf16>, vector<32x512xf32> -> vector<32x512xf32>
    %5 = vector.broadcast %3 : vector<32x1xf32> to vector<32x512xf32>
    %6 = arith.addf %4, %5 : vector<32x512xf32>
    %cst_5 = arith.constant 0.000000e+00 : f32
    %7 = vector.broadcast %cst_5 : f32 to vector<32x512xf32>
    %8 = arith.maximumf %6, %7 : vector<32x512xf32>
    %c0_6 = arith.constant 0 : index
    %c0_7 = arith.constant 0 : index
    %c0_8 = arith.constant 0 : index
    %9 = vector.load %arg3[%c0_6, %c0_7, %c0_8] : memref<8x32x32xbf16, #tpu.memory_space<vmem>>, vector<1x32x32xbf16>
    %10 = vector.shape_cast %9 : vector<1x32x32xbf16> to vector<32x32xbf16>
    %11 = arith.truncf %8 : vector<32x512xf32> to vector<32x512xbf16>
    %c0_9 = arith.constant 0 : index
    %c0_10 = arith.constant 0 : index
    %c0_11 = arith.constant 0 : index
    %12 = vector.load %arg4[%c0_9, %c0_10, %c0_11] : memref<8x32x1xf32, #tpu.memory_space<vmem>>, vector<1x32x1xf32>
    %13 = vector.shape_cast %12 : vector<1x32x1xf32> to vector<32x1xf32>
    %cst_12 = arith.constant dense<0.000000e+00> : vector<32x512xf32>
    %14 = tpu.matmul %10, %11, %cst_12 {dimension_numbers = #tpu.dot_dimension_numbers<[1], [0], [0], [1], [0, 0, 1, 1], [], []>} : vector<32x32xbf16>, vector<32x512xbf16>, vector<32x512xf32> -> vector<32x512xf32>
    %15 = vector.broadcast %13 : vector<32x1xf32> to vector<32x512xf32>
    %16 = arith.addf %14, %15 : vector<32x512xf32>
    %cst_13 = arith.constant 0.000000e+00 : f32
    %17 = vector.broadcast %cst_13 : f32 to vector<32x512xf32>
    %18 = arith.maximumf %16, %17 : vector<32x512xf32>
    %c1 = arith.constant 1 : index
    %c0_14 = arith.constant 0 : index
    %c0_15 = arith.constant 0 : index
    %19 = vector.load %arg3[%c1, %c0_14, %c0_15] : memref<8x32x32xbf16, #tpu.memory_space<vmem>>, vector<1x32x32xbf16>
    %20 = vector.shape_cast %19 : vector<1x32x32xbf16> to vector<32x32xbf16>
    %21 = arith.truncf %18 : vector<32x512xf32> to vector<32x512xbf16>
    %c1_16 = arith.constant 1 : index
    %c0_17 = arith.constant 0 : index
    %c0_18 = arith.constant 0 : index
    %22 = vector.load %arg4[%c1_16, %c0_17, %c0_18] : memref<8x32x1xf32, #tpu.memory_space<vmem>>, vector<1x32x1xf32>
    %23 = vector.shape_cast %22 : vector<1x32x1xf32> to vector<32x1xf32>
    %cst_19 = arith.constant dense<0.000000e+00> : vector<32x512xf32>
    %24 = tpu.matmul %20, %21, %cst_19 {dimension_numbers = #tpu.dot_dimension_numbers<[1], [0], [0], [1], [0, 0, 1, 1], [], []>} : vector<32x32xbf16>, vector<32x512xbf16>, vector<32x512xf32> -> vector<32x512xf32>
    %25 = vector.broadcast %23 : vector<32x1xf32> to vector<32x512xf32>
    %26 = arith.addf %24, %25 : vector<32x512xf32>
    %cst_20 = arith.constant 0.000000e+00 : f32
    %27 = vector.broadcast %cst_20 : f32 to vector<32x512xf32>
    %28 = arith.maximumf %26, %27 : vector<32x512xf32>
    %c2 = arith.constant 2 : index
    %c0_21 = arith.constant 0 : index
    %c0_22 = arith.constant 0 : index
    %29 = vector.load %arg3[%c2, %c0_21, %c0_22] : memref<8x32x32xbf16, #tpu.memory_space<vmem>>, vector<1x32x32xbf16>
    %30 = vector.shape_cast %29 : vector<1x32x32xbf16> to vector<32x32xbf16>
    %31 = arith.truncf %28 : vector<32x512xf32> to vector<32x512xbf16>
    %c2_23 = arith.constant 2 : index
    %c0_24 = arith.constant 0 : index
    %c0_25 = arith.constant 0 : index
    %32 = vector.load %arg4[%c2_23, %c0_24, %c0_25] : memref<8x32x1xf32, #tpu.memory_space<vmem>>, vector<1x32x1xf32>
    %33 = vector.shape_cast %32 : vector<1x32x1xf32> to vector<32x1xf32>
    %cst_26 = arith.constant dense<0.000000e+00> : vector<32x512xf32>
    %34 = tpu.matmul %30, %31, %cst_26 {dimension_numbers = #tpu.dot_dimension_numbers<[1], [0], [0], [1], [0, 0, 1, 1], [], []>} : vector<32x32xbf16>, vector<32x512xbf16>, vector<32x512xf32> -> vector<32x512xf32>
    %35 = vector.broadcast %33 : vector<32x1xf32> to vector<32x512xf32>
    %36 = arith.addf %34, %35 : vector<32x512xf32>
    %cst_27 = arith.constant 0.000000e+00 : f32
    %37 = vector.broadcast %cst_27 : f32 to vector<32x512xf32>
    %38 = arith.maximumf %36, %37 : vector<32x512xf32>
    %c0_28 = arith.constant 0 : index
    %c0_29 = arith.constant 0 : index
    %39 = vector.load %arg16[%c0_28, %c0_29] : memref<44x512xf32, #tpu.memory_space<vmem>>, vector<32x512xf32>
    tpu.vector_store %arg16[%c0_28, %c0_29], %38 {strides = array<i32>} : memref<44x512xf32, #tpu.memory_space<vmem>>, vector<32x512xf32>,
    %c32 = arith.constant 32 : index
    %c0_30 = arith.constant 0 : index
    %40 = vector.load %arg16[%c32, %c0_30] : memref<44x512xf32, #tpu.memory_space<vmem>>, vector<12x512xf32>
    tpu.vector_store %arg16[%c32, %c0_30], %0 {strides = array<i32>} : memref<44x512xf32, #tpu.memory_space<vmem>>, vector<12x512xf32>,
    %c0_31 = arith.constant 0 : index
    %c0_32 = arith.constant 0 : index
    %41 = vector.load %arg7[%c0_31, %c0_32] : memref<32x44xbf16, #tpu.memory_space<vmem>>, vector<32x44xbf16>
    %c0_33 = arith.constant 0 : index
    %c0_34 = arith.constant 0 : index
    %42 = vector.load %arg16[%c0_33, %c0_34] : memref<44x512xf32, #tpu.memory_space<vmem>>, vector<44x512xf32>
    %43 = arith.truncf %42 : vector<44x512xf32> to vector<44x512xbf16>
    %c0_35 = arith.constant 0 : index
    %c0_36 = arith.constant 0 : index
    %44 = vector.load %arg8[%c0_35, %c0_36] : memref<32x1xf32, #tpu.memory_space<vmem>>, vector<32x1xf32>
    %cst_37 = arith.constant dense<0.000000e+00> : vector<32x512xf32>
    %45 = tpu.matmul %41, %43, %cst_37 {dimension_numbers = #tpu.dot_dimension_numbers<[1], [0], [0], [1], [0, 0, 1, 1], [], []>} : vector<32x44xbf16>, vector<44x512xbf16>, vector<32x512xf32> -> vector<32x512xf32>
    %46 = vector.broadcast %44 : vector<32x1xf32> to vector<32x512xf32>
    %47 = arith.addf %45, %46 : vector<32x512xf32>
    %cst_38 = arith.constant 0.000000e+00 : f32
    %48 = vector.broadcast %cst_38 : f32 to vector<32x512xf32>
    %49 = arith.maximumf %47, %48 : vector<32x512xf32>
    %c3 = arith.constant 3 : index
    %c0_39 = arith.constant 0 : index
    %c0_40 = arith.constant 0 : index
    %50 = vector.load %arg3[%c3, %c0_39, %c0_40] : memref<8x32x32xbf16, #tpu.memory_space<vmem>>, vector<1x32x32xbf16>
    %51 = vector.shape_cast %50 : vector<1x32x32xbf16> to vector<32x32xbf16>
    %52 = arith.truncf %49 : vector<32x512xf32> to vector<32x512xbf16>
    %c3_41 = arith.constant 3 : index
    %c0_42 = arith.constant 0 : index
    %c0_43 = arith.constant 0 : index
    %53 = vector.load %arg4[%c3_41, %c0_42, %c0_43] : memref<8x32x1xf32, #tpu.memory_space<vmem>>, vector<1x32x1xf32>
    %54 = vector.shape_cast %53 : vector<1x32x1xf32> to vector<32x1xf32>
    %cst_44 = arith.constant dense<0.000000e+00> : vector<32x512xf32>
    %55 = tpu.matmul %51, %52, %cst_44 {dimension_numbers = #tpu.dot_dimension_numbers<[1], [0], [0], [1], [0, 0, 1, 1], [], []>} : vector<32x32xbf16>, vector<32x512xbf16>, vector<32x512xf32> -> vector<32x512xf32>
    %56 = vector.broadcast %54 : vector<32x1xf32> to vector<32x512xf32>
    %57 = arith.addf %55, %56 : vector<32x512xf32>
    %cst_45 = arith.constant 0.000000e+00 : f32
    %58 = vector.broadcast %cst_45 : f32 to vector<32x512xf32>
    %59 = arith.maximumf %57, %58 : vector<32x512xf32>
    %c4 = arith.constant 4 : index
    %c0_46 = arith.constant 0 : index
    %c0_47 = arith.constant 0 : index
    %60 = vector.load %arg3[%c4, %c0_46, %c0_47] : memref<8x32x32xbf16, #tpu.memory_space<vmem>>, vector<1x32x32xbf16>
    %61 = vector.shape_cast %60 : vector<1x32x32xbf16> to vector<32x32xbf16>
    %62 = arith.truncf %59 : vector<32x512xf32> to vector<32x512xbf16>
    %c4_48 = arith.constant 4 : index
    %c0_49 = arith.constant 0 : index
    %c0_50 = arith.constant 0 : index
    %63 = vector.load %arg4[%c4_48, %c0_49, %c0_50] : memref<8x32x1xf32, #tpu.memory_space<vmem>>, vector<1x32x1xf32>
    %64 = vector.shape_cast %63 : vector<1x32x1xf32> to vector<32x1xf32>
    %cst_51 = arith.constant dense<0.000000e+00> : vector<32x512xf32>
    %65 = tpu.matmul %61, %62, %cst_51 {dimension_numbers = #tpu.dot_dimension_numbers<[1], [0], [0], [1], [0, 0, 1, 1], [], []>} : vector<32x32xbf16>, vector<32x512xbf16>, vector<32x512xf32> -> vector<32x512xf32>
    %66 = vector.broadcast %64 : vector<32x1xf32> to vector<32x512xf32>
    %67 = arith.addf %65, %66 : vector<32x512xf32>
    %cst_52 = arith.constant 0.000000e+00 : f32
    %68 = vector.broadcast %cst_52 : f32 to vector<32x512xf32>
    %69 = arith.maximumf %67, %68 : vector<32x512xf32>
    %c5 = arith.constant 5 : index
    %c0_53 = arith.constant 0 : index
    %c0_54 = arith.constant 0 : index
    %70 = vector.load %arg3[%c5, %c0_53, %c0_54] : memref<8x32x32xbf16, #tpu.memory_space<vmem>>, vector<1x32x32xbf16>
    %71 = vector.shape_cast %70 : vector<1x32x32xbf16> to vector<32x32xbf16>
    %72 = arith.truncf %69 : vector<32x512xf32> to vector<32x512xbf16>
    %c5_55 = arith.constant 5 : index
    %c0_56 = arith.constant 0 : index
    %c0_57 = arith.constant 0 : index
    %73 = vector.load %arg4[%c5_55, %c0_56, %c0_57] : memref<8x32x1xf32, #tpu.memory_space<vmem>>, vector<1x32x1xf32>
    %74 = vector.shape_cast %73 : vector<1x32x1xf32> to vector<32x1xf32>
    %cst_58 = arith.constant dense<0.000000e+00> : vector<32x512xf32>
    %75 = tpu.matmul %71, %72, %cst_58 {dimension_numbers = #tpu.dot_dimension_numbers<[1], [0], [0], [1], [0, 0, 1, 1], [], []>} : vector<32x32xbf16>, vector<32x512xbf16>, vector<32x512xf32> -> vector<32x512xf32>
    %76 = vector.broadcast %74 : vector<32x1xf32> to vector<32x512xf32>
    %77 = arith.addf %75, %76 : vector<32x512xf32>
    %cst_59 = arith.constant 0.000000e+00 : f32
    %78 = vector.broadcast %cst_59 : f32 to vector<32x512xf32>
    %79 = arith.maximumf %77, %78 : vector<32x512xf32>
    %c0_60 = arith.constant 0 : index
    %c0_61 = arith.constant 0 : index
    %80 = vector.load %arg9[%c0_60, %c0_61] : memref<25x32xbf16, #tpu.memory_space<vmem>>, vector<25x32xbf16>
    %81 = arith.truncf %79 : vector<32x512xf32> to vector<32x512xbf16>
    %c0_62 = arith.constant 0 : index
    %c0_63 = arith.constant 0 : index
    %82 = vector.load %arg10[%c0_62, %c0_63] : memref<25x1xf32, #tpu.memory_space<vmem>>, vector<25x1xf32>
    %cst_64 = arith.constant dense<0.000000e+00> : vector<25x512xf32>
    %83 = tpu.matmul %80, %81, %cst_64 {dimension_numbers = #tpu.dot_dimension_numbers<[1], [0], [0], [1], [0, 0, 1, 1], [], []>} : vector<25x32xbf16>, vector<32x512xbf16>, vector<25x512xf32> -> vector<25x512xf32>
    %84 = vector.broadcast %82 : vector<25x1xf32> to vector<25x512xf32>
    %85 = arith.addf %83, %84 : vector<25x512xf32>
    %86 = vector.extract_strided_slice %85 {offsets = [0, 0], sizes = [24, 512], strides = [1, 1]} : vector<25x512xf32> to vector<24x512xf32>
    %87 = vector.extract_strided_slice %85 {offsets = [24, 0], sizes = [1, 512], strides = [1, 1]} : vector<25x512xf32> to vector<1x512xf32>
    %c0_65 = arith.constant 0 : index
    %c0_66 = arith.constant 0 : index
    %88 = vector.load %arg11[%c0_65, %c0_66] : memref<32x12xbf16, #tpu.memory_space<vmem>>, vector<32x12xbf16>
    %c0_67 = arith.constant 0 : index
    %c0_68 = arith.constant 0 : index
    %89 = vector.load %arg2[%c0_67, %c0_68] : memref<12x512xf32, #tpu.memory_space<vmem>>, vector<12x512xf32>
    %90 = arith.truncf %89 : vector<12x512xf32> to vector<12x512xbf16>
    %c0_69 = arith.constant 0 : index
    %c0_70 = arith.constant 0 : index
    %91 = vector.load %arg12[%c0_69, %c0_70] : memref<32x1xf32, #tpu.memory_space<vmem>>, vector<32x1xf32>
    %cst_71 = arith.constant dense<0.000000e+00> : vector<32x512xf32>
    %92 = tpu.matmul %88, %90, %cst_71 {dimension_numbers = #tpu.dot_dimension_numbers<[1], [0], [0], [1], [0, 0, 1, 1], [], []>} : vector<32x12xbf16>, vector<12x512xbf16>, vector<32x512xf32> -> vector<32x512xf32>
    %93 = vector.broadcast %91 : vector<32x1xf32> to vector<32x512xf32>
    %94 = arith.addf %92, %93 : vector<32x512xf32>
    %cst_72 = arith.constant 0.000000e+00 : f32
    %95 = vector.broadcast %cst_72 : f32 to vector<32x512xf32>
    %96 = arith.maximumf %94, %95 : vector<32x512xf32>
    %c6 = arith.constant 6 : index
    %c0_73 = arith.constant 0 : index
    %c0_74 = arith.constant 0 : index
    %97 = vector.load %arg3[%c6, %c0_73, %c0_74] : memref<8x32x32xbf16, #tpu.memory_space<vmem>>, vector<1x32x32xbf16>
    %98 = vector.shape_cast %97 : vector<1x32x32xbf16> to vector<32x32xbf16>
    %99 = arith.truncf %96 : vector<32x512xf32> to vector<32x512xbf16>
    %c6_75 = arith.constant 6 : index
    %c0_76 = arith.constant 0 : index
    %c0_77 = arith.constant 0 : index
    %100 = vector.load %arg4[%c6_75, %c0_76, %c0_77] : memref<8x32x1xf32, #tpu.memory_space<vmem>>, vector<1x32x1xf32>
    %101 = vector.shape_cast %100 : vector<1x32x1xf32> to vector<32x1xf32>
    %cst_78 = arith.constant dense<0.000000e+00> : vector<32x512xf32>
    %102 = tpu.matmul %98, %99, %cst_78 {dimension_numbers = #tpu.dot_dimension_numbers<[1], [0], [0], [1], [0, 0, 1, 1], [], []>} : vector<32x32xbf16>, vector<32x512xbf16>, vector<32x512xf32> -> vector<32x512xf32>
    %103 = vector.broadcast %101 : vector<32x1xf32> to vector<32x512xf32>
    %104 = arith.addf %102, %103 : vector<32x512xf32>
    %cst_79 = arith.constant 0.000000e+00 : f32
    %105 = vector.broadcast %cst_79 : f32 to vector<32x512xf32>
    %106 = arith.maximumf %104, %105 : vector<32x512xf32>
    %c7 = arith.constant 7 : index
    %c0_80 = arith.constant 0 : index
    %c0_81 = arith.constant 0 : index
    %107 = vector.load %arg3[%c7, %c0_80, %c0_81] : memref<8x32x32xbf16, #tpu.memory_space<vmem>>, vector<1x32x32xbf16>
    %108 = vector.shape_cast %107 : vector<1x32x32xbf16> to vector<32x32xbf16>
    %109 = arith.truncf %106 : vector<32x512xf32> to vector<32x512xbf16>
    %c7_82 = arith.constant 7 : index
    %c0_83 = arith.constant 0 : index
    %c0_84 = arith.constant 0 : index
    %110 = vector.load %arg4[%c7_82, %c0_83, %c0_84] : memref<8x32x1xf32, #tpu.memory_space<vmem>>, vector<1x32x1xf32>
    %111 = vector.shape_cast %110 : vector<1x32x1xf32> to vector<32x1xf32>
    %cst_85 = arith.constant dense<0.000000e+00> : vector<32x512xf32>
    %112 = tpu.matmul %108, %109, %cst_85 {dimension_numbers = #tpu.dot_dimension_numbers<[1], [0], [0], [1], [0, 0, 1, 1], [], []>} : vector<32x32xbf16>, vector<32x512xbf16>, vector<32x512xf32> -> vector<32x512xf32>
    %113 = vector.broadcast %111 : vector<32x1xf32> to vector<32x512xf32>
    %114 = arith.addf %112, %113 : vector<32x512xf32>
    %cst_86 = arith.constant 0.000000e+00 : f32
    %115 = vector.broadcast %cst_86 : f32 to vector<32x512xf32>
    %116 = arith.maximumf %114, %115 : vector<32x512xf32>
    %c0_87 = arith.constant 0 : index
    %c0_88 = arith.constant 0 : index
    %117 = vector.load %arg13[%c0_87, %c0_88] : memref<8x32xbf16, #tpu.memory_space<vmem>>, vector<8x32xbf16>
    %118 = arith.truncf %116 : vector<32x512xf32> to vector<32x512xbf16>
    %c0_89 = arith.constant 0 : index
    %c0_90 = arith.constant 0 : index
    %119 = vector.load %arg14[%c0_89, %c0_90] : memref<8x1xf32, #tpu.memory_space<vmem>>, vector<8x1xf32>
    %cst_91 = arith.constant dense<0.000000e+00> : vector<8x512xf32>
    %120 = tpu.matmul %117, %118, %cst_91 {dimension_numbers = #tpu.dot_dimension_numbers<[1], [0], [0], [1], [0, 0, 1, 1], [], []>} : vector<8x32xbf16>, vector<32x512xbf16>, vector<8x512xf32> -> vector<8x512xf32>
    %121 = vector.broadcast %119 : vector<8x1xf32> to vector<8x512xf32>
    %122 = arith.addf %120, %121 : vector<8x512xf32>
    %cst_92 = arith.constant 0.000000e+00 : f32
    %123 = vector.broadcast %cst_92 : f32 to vector<8x512xf32>
    %124 = arith.maximumf %122, %123 : vector<8x512xf32>
    %125 = vector.extract_strided_slice %86 {offsets = [0, 0], sizes = [8, 512], strides = [1, 1]} : vector<24x512xf32> to vector<8x512xf32>
    %126 = arith.mulf %125, %124 : vector<8x512xf32>
    %cst_93 = arith.constant dense<0.000000e+00> : vector<512xf32>
    %127 = vector.multi_reduction <add>, %126, %cst_93 [0] : vector<8x512xf32> to vector<512xf32>
    %128 = vector.shape_cast %127 : vector<512xf32> to vector<1x512xf32>
    %129 = arith.negf %128 : vector<1x512xf32>
    %130 = math.exp %129 : vector<1x512xf32>
    %cst_94 = arith.constant 1.000000e+00 : f32
    %131 = vector.broadcast %cst_94 : f32 to vector<1x512xf32>
    %132 = arith.addf %131, %130 : vector<1x512xf32>
    %133 = arith.divf %131, %132 : vector<1x512xf32>
    %c0_95 = arith.constant 0 : index
    %c0_96 = arith.constant 0 : index
    %134 = vector.load %arg15[%c0_95, %c0_96] : memref<4x512xf32, #tpu.memory_space<vmem>>, vector<1x512xf32>
    tpu.vector_store %arg15[%c0_95, %c0_96], %133 {strides = array<i32>} : memref<4x512xf32, #tpu.memory_space<vmem>>, vector<1x512xf32>,
    %135 = vector.extract_strided_slice %86 {offsets = [8, 0], sizes = [8, 512], strides = [1, 1]} : vector<24x512xf32> to vector<8x512xf32>
    %136 = arith.mulf %135, %124 : vector<8x512xf32>
    %cst_97 = arith.constant dense<0.000000e+00> : vector<512xf32>
    %137 = vector.multi_reduction <add>, %136, %cst_97 [0] : vector<8x512xf32> to vector<512xf32>
    %138 = vector.shape_cast %137 : vector<512xf32> to vector<1x512xf32>
    %139 = arith.negf %138 : vector<1x512xf32>
    %140 = math.exp %139 : vector<1x512xf32>
    %cst_98 = arith.constant 1.000000e+00 : f32
    %141 = vector.broadcast %cst_98 : f32 to vector<1x512xf32>
    %142 = arith.addf %141, %140 : vector<1x512xf32>
    %143 = arith.divf %141, %142 : vector<1x512xf32>
    %c1_99 = arith.constant 1 : index
    %c0_100 = arith.constant 0 : index
    %144 = vector.load %arg15[%c1_99, %c0_100] : memref<4x512xf32, #tpu.memory_space<vmem>>, vector<1x512xf32>
    tpu.vector_store %arg15[%c1_99, %c0_100], %143 {strides = array<i32>} : memref<4x512xf32, #tpu.memory_space<vmem>>, vector<1x512xf32>,
    %145 = vector.extract_strided_slice %86 {offsets = [16, 0], sizes = [8, 512], strides = [1, 1]} : vector<24x512xf32> to vector<8x512xf32>
    %146 = arith.mulf %145, %124 : vector<8x512xf32>
    %cst_101 = arith.constant dense<0.000000e+00> : vector<512xf32>
    %147 = vector.multi_reduction <add>, %146, %cst_101 [0] : vector<8x512xf32> to vector<512xf32>
    %148 = vector.shape_cast %147 : vector<512xf32> to vector<1x512xf32>
    %149 = arith.negf %148 : vector<1x512xf32>
    %150 = math.exp %149 : vector<1x512xf32>
    %cst_102 = arith.constant 1.000000e+00 : f32
    %151 = vector.broadcast %cst_102 : f32 to vector<1x512xf32>
    %152 = arith.addf %151, %150 : vector<1x512xf32>
    %153 = arith.divf %151, %152 : vector<1x512xf32>
    %c2_103 = arith.constant 2 : index
    %c0_104 = arith.constant 0 : index
    %154 = vector.load %arg15[%c2_103, %c0_104] : memref<4x512xf32, #tpu.memory_space<vmem>>, vector<1x512xf32>
    tpu.vector_store %arg15[%c2_103, %c0_104], %153 {strides = array<i32>} : memref<4x512xf32, #tpu.memory_space<vmem>>, vector<1x512xf32>,
    %cst_105 = arith.constant 0.000000e+00 : f32
    %155 = vector.broadcast %cst_105 : f32 to vector<1x512xf32>
    %156 = arith.maximumf %87, %155 : vector<1x512xf32>
    %c3_106 = arith.constant 3 : index
    %c0_107 = arith.constant 0 : index
    %157 = vector.load %arg15[%c3_106, %c0_107] : memref<4x512xf32, #tpu.memory_space<vmem>>, vector<1x512xf32>
    tpu.vector_store %arg15[%c3_106, %c0_107], %156 {strides = array<i32>} : memref<4x512xf32, #tpu.memory_space<vmem>>, vector<1x512xf32>,
    return
  }
  func.func @transform_0(%arg0: i32) -> (i32, i32) {
    %c0_i32 = arith.constant 0 : i32
    %c0_i32_0 = arith.constant 0 : i32
    return %c0_i32, %arg0 : i32, i32
  }
  func.func @transform_1(%arg0: i32) -> (i32, i32) {
    %c0_i32 = arith.constant 0 : i32
    %c0_i32_0 = arith.constant 0 : i32
    return %c0_i32, %arg0 : i32, i32
  }
  func.func @transform_2(%arg0: i32) -> (i32, i32, i32) {
    %c0_i32 = arith.constant 0 : i32
    %c0_i32_0 = arith.constant 0 : i32
    %c0_i32_1 = arith.constant 0 : i32
    %c0_i32_2 = arith.constant 0 : i32
    return %c0_i32, %c0_i32_0, %c0_i32_1 : i32, i32, i32
  }
  func.func @transform_3(%arg0: i32) -> (i32, i32, i32) {
    %c0_i32 = arith.constant 0 : i32
    %c0_i32_0 = arith.constant 0 : i32
    %c0_i32_1 = arith.constant 0 : i32
    %c0_i32_2 = arith.constant 0 : i32
    return %c0_i32, %c0_i32_0, %c0_i32_1 : i32, i32, i32
  }
  func.func @transform_4(%arg0: i32) -> (i32, i32) {
    %c0_i32 = arith.constant 0 : i32
    %c0_i32_0 = arith.constant 0 : i32
    %c0_i32_1 = arith.constant 0 : i32
    return %c0_i32, %c0_i32_0 : i32, i32
  }
  func.func @transform_5(%arg0: i32) -> (i32, i32) {
    %c0_i32 = arith.constant 0 : i32
    %c0_i32_0 = arith.constant 0 : i32
    %c0_i32_1 = arith.constant 0 : i32
    return %c0_i32, %c0_i32_0 : i32, i32
  }
  func.func @transform_6(%arg0: i32) -> (i32, i32) {
    %c0_i32 = arith.constant 0 : i32
    %c0_i32_0 = arith.constant 0 : i32
    %c0_i32_1 = arith.constant 0 : i32
    return %c0_i32, %c0_i32_0 : i32, i32
  }
  func.func @transform_7(%arg0: i32) -> (i32, i32) {
    %c0_i32 = arith.constant 0 : i32
    %c0_i32_0 = arith.constant 0 : i32
    %c0_i32_1 = arith.constant 0 : i32
    return %c0_i32, %c0_i32_0 : i32, i32
  }
  func.func @transform_8(%arg0: i32) -> (i32, i32) {
    %c0_i32 = arith.constant 0 : i32
    %c0_i32_0 = arith.constant 0 : i32
    %c0_i32_1 = arith.constant 0 : i32
    return %c0_i32, %c0_i32_0 : i32, i32
  }
  func.func @transform_9(%arg0: i32) -> (i32, i32) {
    %c0_i32 = arith.constant 0 : i32
    %c0_i32_0 = arith.constant 0 : i32
    %c0_i32_1 = arith.constant 0 : i32
    return %c0_i32, %c0_i32_0 : i32, i32
  }
  func.func @transform_10(%arg0: i32) -> (i32, i32) {
    %c0_i32 = arith.constant 0 : i32
    %c0_i32_0 = arith.constant 0 : i32
    %c0_i32_1 = arith.constant 0 : i32
    return %c0_i32, %c0_i32_0 : i32, i32
  }
  func.func @transform_11(%arg0: i32) -> (i32, i32) {
    %c0_i32 = arith.constant 0 : i32
    %c0_i32_0 = arith.constant 0 : i32
    %c0_i32_1 = arith.constant 0 : i32
    return %c0_i32, %c0_i32_0 : i32, i32
  }
  func.func @transform_12(%arg0: i32) -> (i32, i32) {
    %c0_i32 = arith.constant 0 : i32
    %c0_i32_0 = arith.constant 0 : i32
    %c0_i32_1 = arith.constant 0 : i32
    return %c0_i32, %c0_i32_0 : i32, i32
  }
  func.func @transform_13(%arg0: i32) -> (i32, i32) {
    %c0_i32 = arith.constant 0 : i32
    %c0_i32_0 = arith.constant 0 : i32
    %c0_i32_1 = arith.constant 0 : i32
    return %c0_i32, %c0_i32_0 : i32, i32
  }
  func.func @transform_14(%arg0: i32) -> (i32, i32) {
    %c0_i32 = arith.constant 0 : i32
    %c0_i32_0 = arith.constant 0 : i32
    return %c0_i32, %arg0 : i32, i32
  }
}

</mosaic_0001>

<llo_original>
// kernel: tpu_custom_call.1
$region0: #{tpu_custom_call.1}
  #allocation0 [shape = 'u32[]', space=smem, size = 0x4, offset = 0x4, fixed_abs, tag = 'smem constant byte address 0x4 - core index']
  #allocation1 [shape = 'u32[72,128]{1,0:T(1,128)}', space=vmem, size = 0x9000, scoped, tag = 'internal scratch']
  #allocation2 [shape = 'f32[44,512]{1,0:T(8,128)}', space=vmem, size = 0x18000, scoped, tag = 'scratch operand']
  %s0 = inlined_call_operand.vmem [shape: f32[12,2048], index: 0, kind: input, shape index: {}]
  %s1 = inlined_call_operand.hbm [shape: f32[12,2048], index: 1, kind: input, shape index: {}]
  %s2 = inlined_call_operand.hbm [shape: bf16[8,32,32], index: 2, kind: input, shape index: {}]
  %s3 = inlined_call_operand.vmem [shape: f32[8,32,1], index: 3, kind: input, shape index: {}]
  %s4 = inlined_call_operand.vmem [shape: bf16[32,12], index: 4, kind: input, shape index: {}]
  %s5 = inlined_call_operand.vmem [shape: f32[32,1], index: 5, kind: input, shape index: {}]
  %s6 = inlined_call_operand.vmem [shape: bf16[32,44], index: 6, kind: input, shape index: {}]
  %s7 = inlined_call_operand.vmem [shape: f32[32,1], index: 7, kind: input, shape index: {}]
  %s8 = inlined_call_operand.vmem [shape: bf16[25,32], index: 8, kind: input, shape index: {}]
  %s9 = inlined_call_operand.vmem [shape: f32[25,1], index: 9, kind: input, shape index: {}]
  %s10 = inlined_call_operand.vmem [shape: bf16[32,12], index: 10, kind: input, shape index: {}]
  %s11 = inlined_call_operand.vmem [shape: f32[32,1], index: 11, kind: input, shape index: {}]
  %s12 = inlined_call_operand.vmem [shape: bf16[8,32], index: 12, kind: input, shape index: {}]
  %s13 = inlined_call_operand.vmem [shape: f32[8,1], index: 13, kind: input, shape index: {}]
  %s14 = inlined_call_operand.hbm [shape: f32[4,2048], index: 14, kind: output, shape index: {}]
  %s15 = sld [smem:[#allocation0]]
  $region120: #{tpu_custom_call.1} parent=0
    _
  %s17 = ssub.s32 1, %s15
  %s18 = scalar_select 0, %s17, %s15
  $region1: #{tpu_custom_call.1} parent=0
    #allocation3 [shape = 'u8[65536]{0}', space=vmem, size = 0x10000, scoped, tag = 'input window, operand 0']
    #allocation4 [shape = 'u8[65536]{0}', space=vmem, size = 0x10000, scoped, tag = 'input window, operand 1']
    #allocation5 [shape = 's32[2]{0}', space=sflag, size = 0x8, scoped, tag = 'scoped memory for tpu_custom_call.1']
    #allocation6 [shape = 's32[2]{0}', space=sflag, size = 0x8, scoped, tag = 'scoped memory for tpu_custom_call.1']
    #allocation7 [shape = 'u8[65536]{0}', space=vmem, size = 0x10000, scoped, tag = 'input window, operand 2, single buffered']
    #allocation8 [shape = 's32[1]{0}', space=sflag, size = 0x4, scoped, tag = 'scoped memory for tpu_custom_call.1']
    #allocation9 [shape = 'u8[16384]{0}', space=vmem, size = 0x4000, scoped, tag = 'output window, operand 0']
    %19 = vsyncpa [#allocation5], 0
    %s20 = scalar_lea.sflag [#allocation5], 1
    %21 = vsyncpa %s20, 0
    %22 = vsyncpa [#allocation8], 0
    %23 = vsyncpa [#allocation6], 0
    %s24 = scalar_lea.sflag [#allocation6], 1
    %25 = vsyncpa %s24, 0
    loop: start=0, step=1, limit=6
    $region2: #{tpu_custom_call.1} parent=1 // loop_pre_header
      _
    $region3: #{tpu_custom_call.1} parent=1 // loop_header
      %s27 = sphi 0, %s31
      %p28 = scmp.ge.s32.totalorder %s27, 6
      %s37 = sphi 0, %s39
      %s40 = sphi 0, %s37
      %s41 = sphi 0, %s40
      %s57 = sphi 0, %s41
      %s63 = sphi 0, %s65
      %s66 = sphi 0, %s63
      %s67 = sphi 0, %s66
      %s83 = sphi 0, %s67
      %s87 = sphi 0, %s87
      %s89 = sphi 0, %s87
      %s90 = sphi 0, %s89
      %s104 = sphi 0, %s90
      %s108 = sphi 0, %s108
      %s110 = sphi 0, %s108
      %s111 = sphi 0, %s110
      %s125 = sphi 0, %s111
      %s129 = sphi 0, %s129
      %s131 = sphi 0, %s129
      %s132 = sphi 0, %s131
      %s146 = sphi 0, %s132
      %s150 = sphi 0, %s150
      %s152 = sphi 0, %s150
      %s153 = sphi 0, %s152
      %s167 = sphi 0, %s153
      %s171 = sphi 0, %s171
      %s173 = sphi 0, %s171
      %s174 = sphi 0, %s173
      %s188 = sphi 0, %s174
      %s192 = sphi 0, %s192
      %s194 = sphi 0, %s192
      %s195 = sphi 0, %s194
      %s209 = sphi 0, %s195
      %s213 = sphi 0, %s213
      %s215 = sphi 0, %s213
      %s216 = sphi 0, %s215
      %s230 = sphi 0, %s216
      %s234 = sphi 0, %s234
      %s236 = sphi 0, %s234
      %s237 = sphi 0, %s236
      %s251 = sphi 0, %s237
      %s255 = sphi 0, %s255
      %s257 = sphi 0, %s255
      %s258 = sphi 0, %s257
      %s272 = sphi 0, %s258
      %s276 = sphi 0, %s276
      %s278 = sphi 0, %s276
      %s279 = sphi 0, %s278
      %s293 = sphi 0, %s279
      %s297 = sphi 0, %s297
      %s299 = sphi 0, %s297
      %s300 = sphi 0, %s299
      %s314 = sphi 0, %s300
      %s318 = sphi 0, %s318
      %s320 = sphi 0, %s318
      %s321 = sphi 0, %s320
      %s335 = sphi 0, %s321
      %s341 = sphi 0, %s343
      %s344 = sphi 0, %s341
      %s345 = sphi 0, %s344
      %s361 = sphi 0, %s345
    $region4: #{tpu_custom_call.1} parent=1 // loop_header_branch
      %30 = sbr.rel (%p28) target = $region8
    $region5: #{tpu_custom_call.1} parent=1 // loop_body
      %s32 = ssub.s32 %s27, 1
      %s33 = ssub.s32 %s27, 2
      %s34 = sadd.s32 %s27, 1
      %s35 = ssub.s32 %s27, %s34
      %p36 = scmp.eq.s32.totalorder %s35, 0
      %s38 = sadd.s32 %s37, 1
      %s39 = scalar_select %p36, %s37, %s38
      %p42 = pneg %p36
      %p43 = scmp.eq.s32.totalorder %s27, 3
      %p44 = por %p42, %p43
      %p45 = scmp.ne.s32.totalorder %s37, %s40
      %p46 = scmp.eq.s32.totalorder %s27, 0
      %p47 = por %p45, %p46
      %p48 = scmp.ne.s32.totalorder %s37, %s40
      %p49 = scmp.eq.s32.totalorder %s32, 3
      %p50 = por %p48, %p49
      %p51 = scmp.ne.s32.totalorder %s40, %s41
      %p52 = scmp.eq.s32.totalorder %s32, 0
      %p53 = por %p51, %p52
      %p54 = scmp.ne.s32.totalorder %s40, %s41
      %p55 = scmp.eq.s32.totalorder %s33, 3
      %p56 = por %p54, %p55
      %p58 = scmp.ne.s32.totalorder %s41, %s57
      %p59 = scmp.eq.s32.totalorder %s33, 0
      %p60 = por %p58, %p59
      %s61 = ssub.s32 %s27, %s34
      %p62 = scmp.eq.s32.totalorder %s61, 0
      %s64 = sadd.s32 %s63, 1
      %s65 = scalar_select %p62, %s63, %s64
      %p68 = pneg %p62
      %p69 = scmp.eq.s32.totalorder %s27, 3
      %p70 = por %p68, %p69
      %p71 = scmp.ne.s32.totalorder %s63, %s66
      %p72 = scmp.eq.s32.totalorder %s27, 0
      %p73 = por %p71, %p72
      %p74 = scmp.ne.s32.totalorder %s63, %s66
      %p75 = scmp.eq.s32.totalorder %s32, 3
      %p76 = por %p74, %p75
      %p77 = scmp.ne.s32.totalorder %s66, %s67
      %p78 = scmp.eq.s32.totalorder %s32, 0
      %p79 = por %p77, %p78
      %p80 = scmp.ne.s32.totalorder %s66, %s67
      %p81 = scmp.eq.s32.totalorder %s33, 3
      %p82 = por %p80, %p81
      %p84 = scmp.ne.s32.totalorder %s67, %s83
      %p85 = scmp.eq.s32.totalorder %s33, 0
      %p86 = por %p84, %p85
      %s88 = sadd.s32 %s87, 1
      %p91 = scmp.eq.s32.totalorder %s27, 3
      %p92 = scmp.ne.s32.totalorder %s87, %s89
      %p93 = scmp.eq.s32.totalorder %s27, 0
      %p94 = por %p92, %p93
      %p95 = scmp.ne.s32.totalorder %s87, %s89
      %p96 = scmp.eq.s32.totalorder %s32, 3
      %p97 = por %p95, %p96
      %p98 = scmp.ne.s32.totalorder %s89, %s90
      %p99 = scmp.eq.s32.totalorder %s32, 0
      %p100 = por %p98, %p99
      %p101 = scmp.ne.s32.totalorder %s89, %s90
      %p102 = scmp.eq.s32.totalorder %s33, 3
      %p103 = por %p101, %p102
      %p105 = scmp.ne.s32.totalorder %s90, %s104
      %p106 = scmp.eq.s32.totalorder %s33, 0
      %p107 = por %p105, %p106
      %s109 = sadd.s32 %s108, 1
      %p112 = scmp.eq.s32.totalorder %s27, 3
      %p113 = scmp.ne.s32.totalorder %s108, %s110
      %p114 = scmp.eq.s32.totalorder %s27, 0
      %p115 = por %p113, %p114
      %p116 = scmp.ne.s32.totalorder %s108, %s110
      %p117 = scmp.eq.s32.totalorder %s32, 3
      %p118 = por %p116, %p117
      %p119 = scmp.ne.s32.totalorder %s110, %s111
      %p120 = scmp.eq.s32.totalorder %s32, 0
      %p121 = por %p119, %p120
      %p122 = scmp.ne.s32.totalorder %s110, %s111
      %p123 = scmp.eq.s32.totalorder %s33, 3
      %p124 = por %p122, %p123
      %p126 = scmp.ne.s32.totalorder %s111, %s125
      %p127 = scmp.eq.s32.totalorder %s33, 0
      %p128 = por %p126, %p127
      %s130 = sadd.s32 %s129, 1
      %p133 = scmp.eq.s32.totalorder %s27, 3
      %p134 = scmp.ne.s32.totalorder %s129, %s131
      %p135 = scmp.eq.s32.totalorder %s27, 0
      %p136 = por %p134, %p135
      %p137 = scmp.ne.s32.totalorder %s129, %s131
      %p138 = scmp.eq.s32.totalorder %s32, 3
      %p139 = por %p137, %p138
      %p140 = scmp.ne.s32.totalorder %s131, %s132
      %p141 = scmp.eq.s32.totalorder %s32, 0
      %p142 = por %p140, %p141
      %p143 = scmp.ne.s32.totalorder %s131, %s132
      %p144 = scmp.eq.s32.totalorder %s33, 3
      %p145 = por %p143, %p144
      %p147 = scmp.ne.s32.totalorder %s132, %s146
      %p148 = scmp.eq.s32.totalorder %s33, 0
      %p149 = por %p147, %p148
      %s151 = sadd.s32 %s150, 1
      %p154 = scmp.eq.s32.totalorder %s27, 3
      %p155 = scmp.ne.s32.totalorder %s150, %s152
      %p156 = scmp.eq.s32.totalorder %s27, 0
      %p157 = por %p155, %p156
      %p158 = scmp.ne.s32.totalorder %s150, %s152
      %p159 = scmp.eq.s32.totalorder %s32, 3
      %p160 = por %p158, %p159
      %p161 = scmp.ne.s32.totalorder %s152, %s153
      %p162 = scmp.eq.s32.totalorder %s32, 0
      %p163 = por %p161, %p162
      %p164 = scmp.ne.s32.totalorder %s152, %s153
      %p165 = scmp.eq.s32.totalorder %s33, 3
      %p166 = por %p164, %p165
      %p168 = scmp.ne.s32.totalorder %s153, %s167
      %p169 = scmp.eq.s32.totalorder %s33, 0
      %p170 = por %p168, %p169
      %s172 = sadd.s32 %s171, 1
      %p175 = scmp.eq.s32.totalorder %s27, 3
      %p176 = scmp.ne.s32.totalorder %s171, %s173
      %p177 = scmp.eq.s32.totalorder %s27, 0
      %p178 = por %p176, %p177
      %p179 = scmp.ne.s32.totalorder %s171, %s173
      %p180 = scmp.eq.s32.totalorder %s32, 3
      %p181 = por %p179, %p180
      %p182 = scmp.ne.s32.totalorder %s173, %s174
      %p183 = scmp.eq.s32.totalorder %s32, 0
      %p184 = por %p182, %p183
      %p185 = scmp.ne.s32.totalorder %s173, %s174
      %p186 = scmp.eq.s32.totalorder %s33, 3
      %p187 = por %p185, %p186
      %p189 = scmp.ne.s32.totalorder %s174, %s188
      %p190 = scmp.eq.s32.totalorder %s33, 0
      %p191 = por %p189, %p190
      %s193 = sadd.s32 %s192, 1
      %p196 = scmp.eq.s32.totalorder %s27, 3
      %p197 = scmp.ne.s32.totalorder %s192, %s194
      %p198 = scmp.eq.s32.totalorder %s27, 0
      %p199 = por %p197, %p198
      %p200 = scmp.ne.s32.totalorder %s192, %s194
      %p201 = scmp.eq.s32.totalorder %s32, 3
      %p202 = por %p200, %p201
      %p203 = scmp.ne.s32.totalorder %s194, %s195
      %p204 = scmp.eq.s32.totalorder %s32, 0
      %p205 = por %p203, %p204
      %p206 = scmp.ne.s32.totalorder %s194, %s195
      %p207 = scmp.eq.s32.totalorder %s33, 3
      %p208 = por %p206, %p207
      %p210 = scmp.ne.s32.totalorder %s195, %s209
      %p211 = scmp.eq.s32.totalorder %s33, 0
      %p212 = por %p210, %p211
      %s214 = sadd.s32 %s213, 1
      %p217 = scmp.eq.s32.totalorder %s27, 3
      %p218 = scmp.ne.s32.totalorder %s213, %s215
      %p219 = scmp.eq.s32.totalorder %s27, 0
      %p220 = por %p218, %p219
      %p221 = scmp.ne.s32.totalorder %s213, %s215
      %p222 = scmp.eq.s32.totalorder %s32, 3
      %p223 = por %p221, %p222
      %p224 = scmp.ne.s32.totalorder %s215, %s216
      %p225 = scmp.eq.s32.totalorder %s32, 0
      %p226 = por %p224, %p225
      %p227 = scmp.ne.s32.totalorder %s215, %s216
      %p228 = scmp.eq.s32.totalorder %s33, 3
      %p229 = por %p227, %p228
      %p231 = scmp.ne.s32.totalorder %s216, %s230
      %p232 = scmp.eq.s32.totalorder %s33, 0
      %p233 = por %p231, %p232
      %s235 = sadd.s32 %s234, 1
      %p238 = scmp.eq.s32.totalorder %s27, 3
      %p239 = scmp.ne.s32.totalorder %s234, %s236
      %p240 = scmp.eq.s32.totalorder %s27, 0
      %p241 = por %p239, %p240
      %p242 = scmp.ne.s32.totalorder %s234, %s236
      %p243 = scmp.eq.s32.totalorder %s32, 3
      %p244 = por %p242, %p243
      %p245 = scmp.ne.s32.totalorder %s236, %s237
      %p246 = scmp.eq.s32.totalorder %s32, 0
      %p247 = por %p245, %p246
      %p248 = scmp.ne.s32.totalorder %s236, %s237
      %p249 = scmp.eq.s32.totalorder %s33, 3
      %p250 = por %p248, %p249
      %p252 = scmp.ne.s32.totalorder %s237, %s251
      %p253 = scmp.eq.s32.totalorder %s33, 0
      %p254 = por %p252, %p253
      %s256 = sadd.s32 %s255, 1
      %p259 = scmp.eq.s32.totalorder %s27, 3
      %p260 = scmp.ne.s32.totalorder %s255, %s257
      %p261 = scmp.eq.s32.totalorder %s27, 0
      %p262 = por %p260, %p261
      %p263 = scmp.ne.s32.totalorder %s255, %s257
      %p264 = scmp.eq.s32.totalorder %s32, 3
      %p265 = por %p263, %p264
      %p266 = scmp.ne.s32.totalorder %s257, %s258
      %p267 = scmp.eq.s32.totalorder %s32, 0
      %p268 = por %p266, %p267
      %p269 = scmp.ne.s32.totalorder %s257, %s258
      %p270 = scmp.eq.s32.totalorder %s33, 3
      %p271 = por %p269, %p270
      %p273 = scmp.ne.s32.totalorder %s258, %s272
      %p274 = scmp.eq.s32.totalorder %s33, 0
      %p275 = por %p273, %p274
      %s277 = sadd.s32 %s276, 1
      %p280 = scmp.eq.s32.totalorder %s27, 3
      %p281 = scmp.ne.s32.totalorder %s276, %s278
      %p282 = scmp.eq.s32.totalorder %s27, 0
      %p283 = por %p281, %p282
      %p284 = scmp.ne.s32.totalorder %s276, %s278
      %p285 = scmp.eq.s32.totalorder %s32, 3
      %p286 = por %p284, %p285
      %p287 = scmp.ne.s32.totalorder %s278, %s279
      %p288 = scmp.eq.s32.totalorder %s32, 0
      %p289 = por %p287, %p288
      %p290 = scmp.ne.s32.totalorder %s278, %s279
      %p291 = scmp.eq.s32.totalorder %s33, 3
      %p292 = por %p290, %p291
      %p294 = scmp.ne.s32.totalorder %s279, %s293
      %p295 = scmp.eq.s32.totalorder %s33, 0
      %p296 = por %p294, %p295
      %s298 = sadd.s32 %s297, 1
      %p301 = scmp.eq.s32.totalorder %s27, 3
      %p302 = scmp.ne.s32.totalorder %s297, %s299
      %p303 = scmp.eq.s32.totalorder %s27, 0
      %p304 = por %p302, %p303
      %p305 = scmp.ne.s32.totalorder %s297, %s299
      %p306 = scmp.eq.s32.totalorder %s32, 3
      %p307 = por %p305, %p306
      %p308 = scmp.ne.s32.totalorder %s299, %s300
      %p309 = scmp.eq.s32.totalorder %s32, 0
      %p310 = por %p308, %p309
      %p311 = scmp.ne.s32.totalorder %s299, %s300
      %p312 = scmp.eq.s32.totalorder %s33, 3
      %p313 = por %p311, %p312
      %p315 = scmp.ne.s32.totalorder %s300, %s314
      %p316 = scmp.eq.s32.totalorder %s33, 0
      %p317 = por %p315, %p316
      %s319 = sadd.s32 %s318, 1
      %p322 = scmp.eq.s32.totalorder %s27, 3
      %p323 = scmp.ne.s32.totalorder %s318, %s320
      %p324 = scmp.eq.s32.totalorder %s27, 0
      %p325 = por %p323, %p324
      %p326 = scmp.ne.s32.totalorder %s318, %s320
      %p327 = scmp.eq.s32.totalorder %s32, 3
      %p328 = por %p326, %p327
      %p329 = scmp.ne.s32.totalorder %s320, %s321
      %p330 = scmp.eq.s32.totalorder %s32, 0
      %p331 = por %p329, %p330
      %p332 = scmp.ne.s32.totalorder %s320, %s321
      %p333 = scmp.eq.s32.totalorder %s33, 3
      %p334 = por %p332, %p333
      %p336 = scmp.ne.s32.totalorder %s321, %s335
      %p337 = scmp.eq.s32.totalorder %s33, 0
      %p338 = por %p336, %p337
      %s339 = ssub.s32 %s27, %s34
      %p340 = scmp.eq.s32.totalorder %s339, 0
      %s342 = sadd.s32 %s341, 1
      %s343 = scalar_select %p340, %s341, %s342
      %p346 = pneg %p340
      %p347 = scmp.eq.s32.totalorder %s27, 3
      %p348 = por %p346, %p347
      %p349 = scmp.ne.s32.totalorder %s341, %s344
      %p350 = scmp.eq.s32.totalorder %s27, 0
      %p351 = por %p349, %p350
      %p352 = scmp.ne.s32.totalorder %s341, %s344
      %p353 = scmp.eq.s32.totalorder %s32, 3
      %p354 = por %p352, %p353
      %p355 = scmp.ne.s32.totalorder %s344, %s345
      %p356 = scmp.eq.s32.totalorder %s32, 0
      %p357 = por %p355, %p356
      %p358 = scmp.ne.s32.totalorder %s344, %s345
      %p359 = scmp.eq.s32.totalorder %s33, 3
      %p360 = por %p358, %p359
      %p362 = scmp.ne.s32.totalorder %s345, %s361
      %p363 = scmp.eq.s32.totalorder %s33, 0
      %p364 = por %p362, %p363
      %p365 = scmp.le.s32.totalorder 1, %s27
      %p366 = scmp.lt.s32.totalorder %s27, 5
      %p367 = pnand %p365, %p366
      %p368 = pneg %p367
      // Predicated region
      $region9: #{tpu_custom_call.1} parent=5 // pred_check
        _
      $region10: #{tpu_custom_call.1} parent=5 // pred_check_branch
        %370 = sbr.rel (%p367) target = $region12
      $region11: #{tpu_custom_call.1} parent=5 // pred_region
        %s371 = ssub.s32 %s27, 1
        // Predicated region
        $region13: #{tpu_custom_call.1} parent=11 // pred_check
          %p372 = pneg %p100
        $region14: #{tpu_custom_call.1} parent=11 // pred_check_branch
          %374 = sbr.rel (%p372) target = $region16
        $region15: #{tpu_custom_call.1} parent=11 // pred_region
          %376 = vsyncadd [#allocation8], 0
          %s377 = sshll.u32 %s2, 4
          %s378 = int_to_ptr.hbm [resolvable:$true] %s377
          %s379 = sshll.u32 [#allocation7], 4
          %s380 = int_to_ptr.vmem [resolvable:$true] %s379
          %385 = dma.hbm_to_vmem [thread:$0]  %s378, 2048, %s380, [#allocation8], 64, 64, 4
        $region16: #{tpu_custom_call.1} parent=11 // pred_fallthru
          _
        // Predicated region
        $region17: #{tpu_custom_call.1} parent=11 // pred_check
          %p386 = pneg %p121
        $region18: #{tpu_custom_call.1} parent=11 // pred_check_branch
          %388 = sbr.rel (%p386) target = $region20
        $region19: #{tpu_custom_call.1} parent=11 // pred_region
          _
        $region20: #{tpu_custom_call.1} parent=11 // pred_fallthru
          _
        // Predicated region
        $region21: #{tpu_custom_call.1} parent=11 // pred_check
          %p389 = pneg %p142
        $region22: #{tpu_custom_call.1} parent=11 // pred_check_branch
          %391 = sbr.rel (%p389) target = $region24
        $region23: #{tpu_custom_call.1} parent=11 // pred_region
          _
        $region24: #{tpu_custom_call.1} parent=11 // pred_fallthru
          _
        // Predicated region
        $region25: #{tpu_custom_call.1} parent=11 // pred_check
          %p392 = pneg %p163
        $region26: #{tpu_custom_call.1} parent=11 // pred_check_branch
          %394 = sbr.rel (%p392) target = $region28
        $region27: #{tpu_custom_call.1} parent=11 // pred_region
          _
        $region28: #{tpu_custom_call.1} parent=11 // pred_fallthru
          _
        // Predicated region
        $region29: #{tpu_custom_call.1} parent=11 // pred_check
          %p395 = pneg %p184
        $region30: #{tpu_custom_call.1} parent=11 // pred_check_branch
          %397 = sbr.rel (%p395) target = $region32
        $region31: #{tpu_custom_call.1} parent=11 // pred_region
          _
        $region32: #{tpu_custom_call.1} parent=11 // pred_fallthru
          _
        // Predicated region
        $region33: #{tpu_custom_call.1} parent=11 // pred_check
          %p398 = pneg %p205
        $region34: #{tpu_custom_call.1} parent=11 // pred_check_branch
          %400 = sbr.rel (%p398) target = $region36
        $region35: #{tpu_custom_call.1} parent=11 // pred_region
          _
        $region36: #{tpu_custom_call.1} parent=11 // pred_fallthru
          _
        // Predicated region
        $region37: #{tpu_custom_call.1} parent=11 // pred_check
          %p401 = pneg %p226
        $region38: #{tpu_custom_call.1} parent=11 // pred_check_branch
          %403 = sbr.rel (%p401) target = $region40
        $region39: #{tpu_custom_call.1} parent=11 // pred_region
          _
        $region40: #{tpu_custom_call.1} parent=11 // pred_fallthru
          _
        // Predicated region
        $region41: #{tpu_custom_call.1} parent=11 // pred_check
          %p404 = pneg %p247
        $region42: #{tpu_custom_call.1} parent=11 // pred_check_branch
          %406 = sbr.rel (%p404) target = $region44
        $region43: #{tpu_custom_call.1} parent=11 // pred_region
          _
        $region44: #{tpu_custom_call.1} parent=11 // pred_fallthru
          _
        // Predicated region
        $region45: #{tpu_custom_call.1} parent=11 // pred_check
          %p407 = pneg %p268
        $region46: #{tpu_custom_call.1} parent=11 // pred_check_branch
          %409 = sbr.rel (%p407) target = $region48
        $region47: #{tpu_custom_call.1} parent=11 // pred_region
          _
        $region48: #{tpu_custom_call.1} parent=11 // pred_fallthru
          _
        // Predicated region
        $region49: #{tpu_custom_call.1} parent=11 // pred_check
          %p410 = pneg %p289
        $region50: #{tpu_custom_call.1} parent=11 // pred_check_branch
          %412 = sbr.rel (%p410) target = $region52
        $region51: #{tpu_custom_call.1} parent=11 // pred_region
          _
        $region52: #{tpu_custom_call.1} parent=11 // pred_fallthru
          _
        // Predicated region
        $region53: #{tpu_custom_call.1} parent=11 // pred_check
          %p413 = pneg %p310
        $region54: #{tpu_custom_call.1} parent=11 // pred_check_branch
          %415 = sbr.rel (%p413) target = $region56
        $region55: #{tpu_custom_call.1} parent=11 // pred_region
          _
        $region56: #{tpu_custom_call.1} parent=11 // pred_fallthru
          _
        // Predicated region
        $region57: #{tpu_custom_call.1} parent=11 // pred_check
          %p416 = pneg %p331
        $region58: #{tpu_custom_call.1} parent=11 // pred_check_branch
          %418 = sbr.rel (%p416) target = $region60
        $region59: #{tpu_custom_call.1} parent=11 // pred_region
          _
        $region60: #{tpu_custom_call.1} parent=11 // pred_fallthru
          _
      $region12: #{tpu_custom_call.1} parent=5 // pred_fallthru
        _
      %p419 = scmp.lt.s32.totalorder %s27, 4
      // Predicated region
      $region61: #{tpu_custom_call.1} parent=5 // pred_check
        %p420 = pneg %p419
      $region62: #{tpu_custom_call.1} parent=5 // pred_check_branch
        %422 = sbr.rel (%p420) target = $region64
      $region63: #{tpu_custom_call.1} parent=5 // pred_region
        // Predicated region
        $region65: #{tpu_custom_call.1} parent=63 // pred_check
          %p423 = pneg %p47
        $region66: #{tpu_custom_call.1} parent=63 // pred_check_branch
          %425 = sbr.rel (%p423) target = $region68
        $region67: #{tpu_custom_call.1} parent=63 // pred_region
          %s426 = sand.u32 %s37, 1
          %s427 = sand.u32 %s37, 1
          %s428 = smul.addr %s427, 64
          %s429 = scalar_lea.vmem [#allocation3], %s428
          %s430 = smul.u32 4, %s27
          %s431 = smul.addr %s430, 8
          %s432 = scalar_lea.vmem %s0, %s431
          // Predicated region
          $region69: #{tpu_custom_call.1} parent=67 // pred_check
            _
          $region70: #{tpu_custom_call.1} parent=67 // pred_check_branch
            %434 = sbr.rel (0) target = $region72
          $region71: #{tpu_custom_call.1} parent=67 // pred_region
            // Predicated region
            $region73: #{tpu_custom_call.1} parent=71 // pred_check
              _
            $region74: #{tpu_custom_call.1} parent=71 // pred_check_branch
              %436 = sbr.rel (0) target = $region76
            $region75: #{tpu_custom_call.1} parent=71 // pred_region
              loop: start=0, step=1, limit=1
              $region77: #{tpu_custom_call.1} parent=75 // loop_pre_header
                _
              $region78: #{tpu_custom_call.1} parent=75 // loop_header
                %s438 = sphi 0, %s442
                %p439 = scmp.ge.s32.totalorder %s438, 1
                %s443 = sphi %s432, %s432
                %s444 = sphi %s429, %s429
              $region79: #{tpu_custom_call.1} parent=75 // loop_header_branch
                %441 = sbr.rel (%p439) target = $region83
              $region80: #{tpu_custom_call.1} parent=75 // loop_body
                %v445 = vld [vmem:[%s443] sm:$0xff]
                %446 = vst [vmem:[%s444] sm:$0xff] %v445
                %v447 = vld [vmem:[%s443 + $0x8] sm:$0xff]
                %448 = vst [vmem:[%s444 + $0x8] sm:$0xff] %v447
                %v449 = vld [vmem:[%s443 + $0x10] sm:$0xff]
                %450 = vst [vmem:[%s444 + $0x10] sm:$0xff] %v449
                %v451 = vld [vmem:[%s443 + $0x18] sm:$0xff]
                %452 = vst [vmem:[%s444 + $0x18] sm:$0xff] %v451
                %v453 = vld [vmem:[%s443 + $0x80] sm:$0xff]
                %454 = vst [vmem:[%s444 + $0x20] sm:$0xff] %v453
                %v455 = vld [vmem:[%s443 + $0x88] sm:$0xff]
                %456 = vst [vmem:[%s444 + $0x28] sm:$0xff] %v455
                %v457 = vld [vmem:[%s443 + $0x90] sm:$0xff]
                %458 = vst [vmem:[%s444 + $0x30] sm:$0xff] %v457
                %v459 = vld [vmem:[%s443 + $0x98] sm:$0xff]
                %460 = vst [vmem:[%s444 + $0x38] sm:$0xff] %v459
              $region81: #{tpu_custom_call.1} parent=75 // loop_footer
                %s442 = sadd.s32 1, %s438
              $region82: #{tpu_custom_call.1} parent=75 // loop_footer_branch
                %437 = sbr.rel target = $region78
              $region83: #{tpu_custom_call.1} parent=75 // loop_exit
                _
            $region76: #{tpu_custom_call.1} parent=71 // pred_fallthru
              _
            // Predicated region
            $region84: #{tpu_custom_call.1} parent=71 // pred_check
              _
            $region85: #{tpu_custom_call.1} parent=71 // pred_check_branch
              %462 = sbr.rel target = $region87
            $region86: #{tpu_custom_call.1} parent=71 // pred_region
              _
            $region87: #{tpu_custom_call.1} parent=71 // pred_fallthru
              _
          $region72: #{tpu_custom_call.1} parent=67 // pred_fallthru
            _
          %463 = vnop
        $region68: #{tpu_custom_call.1} parent=63 // pred_fallthru
          _
        // Predicated region
        $region88: #{tpu_custom_call.1} parent=63 // pred_check
          %p464 = pneg %p73
        $region89: #{tpu_custom_call.1} parent=63 // pred_check_branch
          %466 = sbr.rel (%p464) target = $region91
        $region90: #{tpu_custom_call.1} parent=63 // pred_region
          %s467 = sand.u32 %s63, 1
          %s468 = scalar_lea.sflag [#allocation5], %s467
          %s469 = sand.u32 %s63, 1
          %s470 = smul.addr %s469, 64
          %s471 = scalar_lea.vmem [#allocation4], %s470
          %s472 = smul.u32 4, %s27
          %474 = vsyncadd %s468, 0
          %s475 = smul.addr %s472, 8
          %s476 = scalar_lea.hbm %s1, %s475
          %s477 = sshll.u32 %s476, 4
          %s478 = int_to_ptr.hbm [resolvable:$true] %s477
          %s479 = sshll.u32 %s471, 4
          %s480 = int_to_ptr.vmem [resolvable:$true] %s479
          %485 = dma.hbm_to_vmem [thread:$0]  %s478, 1024, %s480, %s468, 2048, 512, 32
        $region91: #{tpu_custom_call.1} parent=63 // pred_fallthru
          _
      $region64: #{tpu_custom_call.1} parent=5 // pred_fallthru
        _
      %p486 = scmp.le.s32.totalorder 1, %s27
      %p487 = scmp.lt.s32.totalorder %s27, 5
      %p488 = pnand %p486, %p487
      %p489 = pneg %p488
      // Predicated region
      $region92: #{tpu_custom_call.1} parent=5 // pred_check
        _
      $region93: #{tpu_custom_call.1} parent=5 // pred_check_branch
        %491 = sbr.rel (%p488) target = $region95
      $region94: #{tpu_custom_call.1} parent=5 // pred_region
        %s492 = ssub.s32 %s27, 1
        %s493 = sand.u32 %s40, 1
        %s494 = sand.u32 %s40, 1
        %s495 = smul.addr %s494, 64
        %s496 = scalar_lea.vmem [#allocation3], %s495
        // Predicated region
        $region96: #{tpu_custom_call.1} parent=94 // pred_check
          %p497 = pneg %p53
        $region97: #{tpu_custom_call.1} parent=94 // pred_check_branch
          %499 = sbr.rel (%p497) target = $region99
        $region98: #{tpu_custom_call.1} parent=94 // pred_region
          _
        $region99: #{tpu_custom_call.1} parent=94 // pred_fallthru
          _
        %s500 = sand.u32 %s66, 1
        %s501 = scalar_lea.sflag [#allocation5], %s500
        %s502 = sand.u32 %s66, 1
        %s503 = smul.addr %s502, 64
        %s504 = scalar_lea.vmem [#allocation4], %s503
        // Predicated region
        $region100: #{tpu_custom_call.1} parent=94 // pred_check
          %p505 = pneg %p79
        $region101: #{tpu_custom_call.1} parent=94 // pred_check_branch
          %507 = sbr.rel (%p505) target = $region103
        $region102: #{tpu_custom_call.1} parent=94 // pred_region
          %509 = dma.done %s501, 1024
        $region103: #{tpu_custom_call.1} parent=94 // pred_fallthru
          _
        // Predicated region
        $region104: #{tpu_custom_call.1} parent=94 // pred_check
          %p510 = pneg %p100
        $region105: #{tpu_custom_call.1} parent=94 // pred_check_branch
          %512 = sbr.rel (%p510) target = $region107
        $region106: #{tpu_custom_call.1} parent=94 // pred_region
          %514 = dma.done [#allocation8], 2048
        $region107: #{tpu_custom_call.1} parent=94 // pred_fallthru
          _
        %s515 = sand.u32 %s40, 1
        %s516 = sand.u32 %s40, 1
        %s517 = smul.addr %s516, 64
        %s518 = scalar_lea.vmem [#allocation3], %s517
        %p519 = pneg %p53
        %p520 = pneg %p50
        %s521 = sand.u32 %s66, 1
        %s522 = scalar_lea.sflag [#allocation5], %s521
        %s523 = sand.u32 %s66, 1
        %s524 = smul.addr %s523, 64
        %s525 = scalar_lea.vmem [#allocation4], %s524
        %p526 = pneg %p79
        %p527 = pneg %p76
        %p528 = pneg %p100
        %p529 = pneg %p97
        %p530 = pneg %p121
        %p531 = pneg %p118
        %p532 = pneg %p142
        %p533 = pneg %p139
        %p534 = pneg %p163
        %p535 = pneg %p160
        %p536 = pneg %p184
        %p537 = pneg %p181
        %p538 = pneg %p205
        %p539 = pneg %p202
        %p540 = pneg %p226
        %p541 = pneg %p223
        %p542 = pneg %p247
        %p543 = pneg %p244
        %p544 = pneg %p268
        %p545 = pneg %p265
        %p546 = pneg %p289
        %p547 = pneg %p286
        %p548 = pneg %p310
        %p549 = pneg %p307
        %p550 = pneg %p331
        %p551 = pneg %p328
        %p552 = pneg %p357
        %p553 = pneg %p354
        %s554 = sand.u32 %s344, 1
        %s555 = scalar_lea.sflag [#allocation6], %s554
        %s556 = sand.u32 %s344, 1
        %s557 = smul.addr %s556, 16
        %s558 = scalar_lea.vmem [#allocation9], %s557
        %s559 = smul.u32 4, %s32
        %s560 = smul.u32 4, %s32
        %s561 = smul.u32 4, %s32
        %v563 = vld [vmem:[%s496] sm:$0xff]
        %v564 = vld [vmem:[%s496 + $0x8] sm:$0xff]
        %v565 = vld [vmem:[%s496 + $0x10] sm:$0xff]
        %v566 = vld [vmem:[%s496 + $0x18] sm:$0xff]
        %v567 = vld [vmem:[%s496 + $0x20] sm:$0xf]
        %v568 = vld [vmem:[%s496 + $0x28] sm:$0xf]
        %v569 = vld [vmem:[%s496 + $0x30] sm:$0xf]
        %v570 = vld [vmem:[%s496 + $0x38] sm:$0xf]
        %v571 = vpack.c.bf16 %v567, %v563
        %v572 = vpack.c.bf16 %v568, %v564
        %v573 = vpack.c.bf16 %v569, %v565
        %v574 = vpack.c.bf16 %v570, %v566
        %v575 = vld [vmem:[%s4] sm:$0xf]
        %v576 = vld [vmem:[%s4 + $0x4] sm:$0xf]
        %v577 = vld [vmem:[%s4 + $0x8] sm:$0xf]
        %v578 = vld [vmem:[%s4 + $0xc] sm:$0xf]
        %v579 = vld [vmem:[%s5] sm:$0xff]
        %v580 = vld [vmem:[%s5 + $0x8] sm:$0xff]
        %v581 = vld [vmem:[%s5 + $0x10] sm:$0xff]
        %v582 = vld [vmem:[%s5 + $0x18] sm:$0xff]
        %584 = vset.pattern.permute.xlu0 0
        %585 = vperm.xlu0 %584, %v579
        %v586 = vpop.permute.xlu0 %585
        %589 = vset.pattern.permute.xlu0 0
        %590 = vperm.xlu0 %589, %v580
        %v591 = vpop.permute.xlu0 %590
        %594 = vset.pattern.permute.xlu0 0
        %595 = vperm.xlu0 %594, %v581
        %v596 = vpop.permute.xlu0 %595
        %599 = vset.pattern.permute.xlu0 0
        %600 = vperm.xlu0 %599, %v582
        %v601 = vpop.permute.xlu0 %600
        %v607 = vunpack.c.l.b16 %v575
        %v608 = vunpack.c.l.b16 %v576
        %v609 = vunpack.c.l.b16 %v577
        %v610 = vunpack.c.l.b16 %v578
        %v611 = vpack.c.b16 %v608, %v607
        %v612 = vpack.c.b16 %v610, %v609
        %vm613 = vcmask 97280
        %v615 = vsel %vm613, %v611, 0
        %v618 = vsel %vm613, %v612, 0
        %vm620 = vcmask 1045504
        %v622 = vsel %vm620, %v571, 0
        %v625 = vsel %vm620, %v572, 0
        %v628 = vsel %vm620, %v573, 0
        %v631 = vsel %vm620, %v574, 0
        %633 = vmatpush.bf16.msra.mxu0 0
        %634 = vmatpush.bf16.msra.mxu0 0
        %635 = vmatpush.bf16.msra.mxu0 0
        %636 = vmatpush.bf16.msra.mxu0 0
        %637 = vmatpush.bf16.msra.mxu0 0
        %638 = vmatpush.bf16.msra.mxu0 0
        %639 = vmatpush.bf16.msra.mxu0 0
        %640 = vmatpush.bf16.msra.mxu0 %v622
        %641 = vmatmul.bf16.gmra.mxu0 %v615
        %v642 = vpop.f32.mrf.mxu0
        %v643 = vadd.f32 %v586, %v642
        %v644 = vpop.f32.mrf.mxu0
        %v645 = vadd.f32 %v591, %v644
        %646 = vmatmul.bf16.gmra.mxu0 %v618
        %v647 = vpop.f32.mrf.mxu0
        %v648 = vadd.f32 %v596, %v647
        %v649 = vpop.f32.mrf.mxu0
        %v650 = vadd.f32 %v601, %v649
        %651 = vdwg.mxu0
        %652 = vmatpush.bf16.msra.mxu0 0
        %653 = vmatpush.bf16.msra.mxu0 0
        %654 = vmatpush.bf16.msra.mxu0 0
        %655 = vmatpush.bf16.msra.mxu0 0
        %656 = vmatpush.bf16.msra.mxu0 0
        %657 = vmatpush.bf16.msra.mxu0 0
        %658 = vmatpush.bf16.msra.mxu0 0
        %659 = vmatpush.bf16.msra.mxu0 %v625
        %660 = vmatmul.bf16.gmra.mxu0 %v615
        %v661 = vpop.f32.mrf.mxu0
        %v662 = vadd.f32 %v586, %v661
        %v663 = vpop.f32.mrf.mxu0
        %v664 = vadd.f32 %v591, %v663
        %665 = vmatmul.bf16.gmra.mxu0 %v618
        %v666 = vpop.f32.mrf.mxu0
        %v667 = vadd.f32 %v596, %v666
        %v668 = vpop.f32.mrf.mxu0
        %v669 = vadd.f32 %v601, %v668
        %670 = vdwg.mxu0
        %671 = vmatpush.bf16.msra.mxu0 0
        %672 = vmatpush.bf16.msra.mxu0 0
        %673 = vmatpush.bf16.msra.mxu0 0
        %674 = vmatpush.bf16.msra.mxu0 0
        %675 = vmatpush.bf16.msra.mxu0 0
        %676 = vmatpush.bf16.msra.mxu0 0
        %677 = vmatpush.bf16.msra.mxu0 0
        %678 = vmatpush.bf16.msra.mxu0 %v628
        %679 = vmatmul.bf16.gmra.mxu0 %v615
        %v680 = vpop.f32.mrf.mxu0
        %v681 = vadd.f32 %v586, %v680
        %v682 = vpop.f32.mrf.mxu0
        %v683 = vadd.f32 %v591, %v682
        %684 = vmatmul.bf16.gmra.mxu0 %v618
        %v685 = vpop.f32.mrf.mxu0
        %v686 = vadd.f32 %v596, %v685
        %v687 = vpop.f32.mrf.mxu0
        %v688 = vadd.f32 %v601, %v687
        %689 = vdwg.mxu0
        %690 = vmatpush.bf16.msra.mxu0 0
        %691 = vmatpush.bf16.msra.mxu0 0
        %692 = vmatpush.bf16.msra.mxu0 0
        %693 = vmatpush.bf16.msra.mxu0 0
        %694 = vmatpush.bf16.msra.mxu0 0
        %695 = vmatpush.bf16.msra.mxu0 0
        %696 = vmatpush.bf16.msra.mxu0 0
        %697 = vmatpush.bf16.msra.mxu0 %v631
        %698 = vmatmul.bf16.gmra.mxu0 %v615
        %v699 = vpop.f32.mrf.mxu0
        %v700 = vadd.f32 %v586, %v699
        %v701 = vpop.f32.mrf.mxu0
        %v702 = vadd.f32 %v591, %v701
        %703 = vmatmul.bf16.gmra.mxu0 %v618
        %v704 = vpop.f32.mrf.mxu0
        %v705 = vadd.f32 %v596, %v704
        %v706 = vpop.f32.mrf.mxu0
        %v707 = vadd.f32 %v601, %v706
        %708 = vdwg.mxu0
        %v709 = vmax.f32 %v643, 0.0
        %v710 = vmax.f32 %v662, 0.0
        %v711 = vmax.f32 %v681, 0.0
        %v712 = vmax.f32 %v700, 0.0
        %v713 = vmax.f32 %v645, 0.0
        %v714 = vmax.f32 %v664, 0.0
        %v715 = vmax.f32 %v683, 0.0
        %v716 = vmax.f32 %v702, 0.0
        %v717 = vmax.f32 %v648, 0.0
        %v718 = vmax.f32 %v667, 0.0
        %v719 = vmax.f32 %v686, 0.0
        %v720 = vmax.f32 %v705, 0.0
        %v721 = vmax.f32 %v650, 0.0
        %v722 = vmax.f32 %v669, 0.0
        %v723 = vmax.f32 %v688, 0.0
        %v724 = vmax.f32 %v707, 0.0
        %v725 = vld [vmem:[#allocation7] sm:$0xf]
        %v726 = vld [vmem:[#allocation7 + $0x4] sm:$0xf]
        %v727 = vld [vmem:[#allocation7 + $0x8] sm:$0xf]
        %v728 = vld [vmem:[#allocation7 + $0xc] sm:$0xf]
        %v729 = vpack.c.bf16 %v713, %v709
        %v730 = vpack.c.bf16 %v714, %v710
        %v731 = vpack.c.bf16 %v715, %v711
        %v732 = vpack.c.bf16 %v716, %v712
        %v733 = vpack.c.bf16 %v721, %v717
        %v734 = vpack.c.bf16 %v722, %v718
        %v735 = vpack.c.bf16 %v723, %v719
        %v736 = vpack.c.bf16 %v724, %v720
        %v737 = vld [vmem:[%s3] sm:$0xff]
        %v738 = vld [vmem:[%s3 + $0x8] sm:$0xff]
        %v739 = vld [vmem:[%s3 + $0x10] sm:$0xff]
        %v740 = vld [vmem:[%s3 + $0x18] sm:$0xff]
        %742 = vset.pattern.permute.xlu0 0
        %743 = vperm.xlu0 %742, %v737
        %v744 = vpop.permute.xlu0 %743
        %747 = vset.pattern.permute.xlu0 0
        %748 = vperm.xlu0 %747, %v738
        %v749 = vpop.permute.xlu0 %748
        %752 = vset.pattern.permute.xlu0 0
        %753 = vperm.xlu0 %752, %v739
        %v754 = vpop.permute.xlu0 %753
        %757 = vset.pattern.permute.xlu0 0
        %758 = vperm.xlu0 %757, %v740
        %v759 = vpop.permute.xlu0 %758
        %v765 = vunpack.c.l.b16 %v725
        %v766 = vunpack.c.l.b16 %v726
        %v767 = vunpack.c.l.b16 %v727
        %v768 = vunpack.c.l.b16 %v728
        %v769 = vpack.c.b16 %v766, %v765
        %v770 = vpack.c.b16 %v768, %v767
        %vm771 = vcmask 261120
        %v773 = vsel %vm771, %v769, 0
        %v776 = vsel %vm771, %v770, 0
        %778 = vmatpush.bf16.msra.mxu0 0
        %779 = vmatpush.bf16.msra.mxu0 0
        %780 = vmatpush.bf16.msra.mxu0 0
        %781 = vmatpush.bf16.msra.mxu0 0
        %782 = vmatpush.bf16.msra.mxu0 0
        %783 = vmatpush.bf16.msra.mxu0 0
        %784 = vmatpush.bf16.msra.mxu0 %v733
        %785 = vmatpush.bf16.msra.mxu0 %v729
        %786 = vmatmul.bf16.gmra.mxu0 %v773
        %v787 = vpop.f32.mrf.mxu0
        %v788 = vadd.f32 %v744, %v787
        %v789 = vpop.f32.mrf.mxu0
        %v790 = vadd.f32 %v749, %v789
        %791 = vmatmul.bf16.gmra.mxu0 %v776
        %v792 = vpop.f32.mrf.mxu0
        %v793 = vadd.f32 %v754, %v792
        %v794 = vpop.f32.mrf.mxu0
        %v795 = vadd.f32 %v759, %v794
        %796 = vdwg.mxu0
        %797 = vmatpush.bf16.msra.mxu0 0
        %798 = vmatpush.bf16.msra.mxu0 0
        %799 = vmatpush.bf16.msra.mxu0 0
        %800 = vmatpush.bf16.msra.mxu0 0
        %801 = vmatpush.bf16.msra.mxu0 0
        %802 = vmatpush.bf16.msra.mxu0 0
        %803 = vmatpush.bf16.msra.mxu0 %v734
        %804 = vmatpush.bf16.msra.mxu0 %v730
        %805 = vmatmul.bf16.gmra.mxu0 %v773
        %v806 = vpop.f32.mrf.mxu0
        %v807 = vadd.f32 %v744, %v806
        %v808 = vpop.f32.mrf.mxu0
        %v809 = vadd.f32 %v749, %v808
        %810 = vmatmul.bf16.gmra.mxu0 %v776
        %v811 = vpop.f32.mrf.mxu0
        %v812 = vadd.f32 %v754, %v811
        %v813 = vpop.f32.mrf.mxu0
        %v814 = vadd.f32 %v759, %v813
        %815 = vdwg.mxu0
        %816 = vmatpush.bf16.msra.mxu0 0
        %817 = vmatpush.bf16.msra.mxu0 0
        %818 = vmatpush.bf16.msra.mxu0 0
        %819 = vmatpush.bf16.msra.mxu0 0
        %820 = vmatpush.bf16.msra.mxu0 0
        %821 = vmatpush.bf16.msra.mxu0 0
        %822 = vmatpush.bf16.msra.mxu0 %v735
        %823 = vmatpush.bf16.msra.mxu0 %v731
        %824 = vmatmul.bf16.gmra.mxu0 %v773
        %v825 = vpop.f32.mrf.mxu0
        %v826 = vadd.f32 %v744, %v825
        %v827 = vpop.f32.mrf.mxu0
        %v828 = vadd.f32 %v749, %v827
        %829 = vmatmul.bf16.gmra.mxu0 %v776
        %v830 = vpop.f32.mrf.mxu0
        %v831 = vadd.f32 %v754, %v830
        %v832 = vpop.f32.mrf.mxu0
        %v833 = vadd.f32 %v759, %v832
        %834 = vdwg.mxu0
        %835 = vmatpush.bf16.msra.mxu0 0
        %836 = vmatpush.bf16.msra.mxu0 0
        %837 = vmatpush.bf16.msra.mxu0 0
        %838 = vmatpush.bf16.msra.mxu0 0
        %839 = vmatpush.bf16.msra.mxu0 0
        %840 = vmatpush.bf16.msra.mxu0 0
        %841 = vmatpush.bf16.msra.mxu0 %v736
        %842 = vmatpush.bf16.msra.mxu0 %v732
        %843 = vmatmul.bf16.gmra.mxu0 %v773
        %v844 = vpop.f32.mrf.mxu0
        %v845 = vadd.f32 %v744, %v844
        %v846 = vpop.f32.mrf.mxu0
        %v847 = vadd.f32 %v749, %v846
        %848 = vmatmul.bf16.gmra.mxu0 %v776
        %v849 = vpop.f32.mrf.mxu0
        %v850 = vadd.f32 %v754, %v849
        %v851 = vpop.f32.mrf.mxu0
        %v852 = vadd.f32 %v759, %v851
        %853 = vdwg.mxu0
        %v854 = vmax.f32 %v788, 0.0
        %v855 = vmax.f32 %v807, 0.0
        %v856 = vmax.f32 %v826, 0.0
        %v857 = vmax.f32 %v845, 0.0
        %v858 = vmax.f32 %v790, 0.0
        %v859 = vmax.f32 %v809, 0.0
        %v860 = vmax.f32 %v828, 0.0
        %v861 = vmax.f32 %v847, 0.0
        %v862 = vmax.f32 %v793, 0.0
        %v863 = vmax.f32 %v812, 0.0
        %v864 = vmax.f32 %v831, 0.0
        %v865 = vmax.f32 %v850, 0.0
        %v866 = vmax.f32 %v795, 0.0
        %v867 = vmax.f32 %v814, 0.0
        %v868 = vmax.f32 %v833, 0.0
        %v869 = vmax.f32 %v852, 0.0
        %s870 = scalar_lea.vmem [#allocation7], 16
        %v871 = vld [vmem:[%s870] sm:$0xf]
        %v872 = vld [vmem:[%s870 + $0x4] sm:$0xf]
        %v873 = vld [vmem:[%s870 + $0x8] sm:$0xf]
        %v874 = vld [vmem:[%s870 + $0xc] sm:$0xf]
        %v875 = vpack.c.bf16 %v858, %v854
        %v876 = vpack.c.bf16 %v859, %v855
        %v877 = vpack.c.bf16 %v860, %v856
        %v878 = vpack.c.bf16 %v861, %v857
        %v879 = vpack.c.bf16 %v866, %v862
        %v880 = vpack.c.bf16 %v867, %v863
        %v881 = vpack.c.bf16 %v868, %v864
        %v882 = vpack.c.bf16 %v869, %v865
        %s883 = scalar_lea.vmem %s3, 32
        %v884 = vld [vmem:[%s883] sm:$0xff]
        %v885 = vld [vmem:[%s883 + $0x8] sm:$0xff]
        %v886 = vld [vmem:[%s883 + $0x10] sm:$0xff]
        %v887 = vld [vmem:[%s883 + $0x18] sm:$0xff]
        %889 = vset.pattern.permute.xlu0 0
        %890 = vperm.xlu0 %889, %v884
        %v891 = vpop.permute.xlu0 %890
        %894 = vset.pattern.permute.xlu0 0
        %895 = vperm.xlu0 %894, %v885
        %v896 = vpop.permute.xlu0 %895
        %899 = vset.pattern.permute.xlu0 0
        %900 = vperm.xlu0 %899, %v886
        %v901 = vpop.permute.xlu0 %900
        %904 = vset.pattern.permute.xlu0 0
        %905 = vperm.xlu0 %904, %v887
        %v906 = vpop.permute.xlu0 %905
        %v912 = vunpack.c.l.b16 %v871
        %v913 = vunpack.c.l.b16 %v872
        %v914 = vunpack.c.l.b16 %v873
        %v915 = vunpack.c.l.b16 %v874
        %v916 = vpack.c.b16 %v913, %v912
        %v917 = vpack.c.b16 %v915, %v914
        %v919 = vsel %vm771, %v916, 0
        %v922 = vsel %vm771, %v917, 0
        %924 = vmatpush.bf16.msra.mxu0 0
        %925 = vmatpush.bf16.msra.mxu0 0
        %926 = vmatpush.bf16.msra.mxu0 0
        %927 = vmatpush.bf16.msra.mxu0 0
        %928 = vmatpush.bf16.msra.mxu0 0
        %929 = vmatpush.bf16.msra.mxu0 0
        %930 = vmatpush.bf16.msra.mxu0 %v879
        %931 = vmatpush.bf16.msra.mxu0 %v875
        %932 = vmatmul.bf16.gmra.mxu0 %v919
        %v933 = vpop.f32.mrf.mxu0
        %v934 = vadd.f32 %v891, %v933
        %v935 = vpop.f32.mrf.mxu0
        %v936 = vadd.f32 %v896, %v935
        %937 = vmatmul.bf16.gmra.mxu0 %v922
        %v938 = vpop.f32.mrf.mxu0
        %v939 = vadd.f32 %v901, %v938
        %v940 = vpop.f32.mrf.mxu0
        %v941 = vadd.f32 %v906, %v940
        %942 = vdwg.mxu0
        %943 = vmatpush.bf16.msra.mxu0 0
        %944 = vmatpush.bf16.msra.mxu0 0
        %945 = vmatpush.bf16.msra.mxu0 0
        %946 = vmatpush.bf16.msra.mxu0 0
        %947 = vmatpush.bf16.msra.mxu0 0
        %948 = vmatpush.bf16.msra.mxu0 0
        %949 = vmatpush.bf16.msra.mxu0 %v880
        %950 = vmatpush.bf16.msra.mxu0 %v876
        %951 = vmatmul.bf16.gmra.mxu0 %v919
        %v952 = vpop.f32.mrf.mxu0
        %v953 = vadd.f32 %v891, %v952
        %v954 = vpop.f32.mrf.mxu0
        %v955 = vadd.f32 %v896, %v954
        %956 = vmatmul.bf16.gmra.mxu0 %v922
        %v957 = vpop.f32.mrf.mxu0
        %v958 = vadd.f32 %v901, %v957
        %v959 = vpop.f32.mrf.mxu0
        %v960 = vadd.f32 %v906, %v959
        %961 = vdwg.mxu0
        %962 = vmatpush.bf16.msra.mxu0 0
        %963 = vmatpush.bf16.msra.mxu0 0
        %964 = vmatpush.bf16.msra.mxu0 0
        %965 = vmatpush.bf16.msra.mxu0 0
        %966 = vmatpush.bf16.msra.mxu0 0
        %967 = vmatpush.bf16.msra.mxu0 0
        %968 = vmatpush.bf16.msra.mxu0 %v881
        %969 = vmatpush.bf16.msra.mxu0 %v877
        %970 = vmatmul.bf16.gmra.mxu0 %v919
        %v971 = vpop.f32.mrf.mxu0
        %v972 = vadd.f32 %v891, %v971
        %v973 = vpop.f32.mrf.mxu0
        %v974 = vadd.f32 %v896, %v973
        %975 = vmatmul.bf16.gmra.mxu0 %v922
        %v976 = vpop.f32.mrf.mxu0
        %v977 = vadd.f32 %v901, %v976
        %v978 = vpop.f32.mrf.mxu0
        %v979 = vadd.f32 %v906, %v978
        %980 = vdwg.mxu0
        %981 = vmatpush.bf16.msra.mxu0 0
        %982 = vmatpush.bf16.msra.mxu0 0
        %983 = vmatpush.bf16.msra.mxu0 0
        %984 = vmatpush.bf16.msra.mxu0 0
        %985 = vmatpush.bf16.msra.mxu0 0
        %986 = vmatpush.bf16.msra.mxu0 0
        %987 = vmatpush.bf16.msra.mxu0 %v882
        %988 = vmatpush.bf16.msra.mxu0 %v878
        %989 = vmatmul.bf16.gmra.mxu0 %v919
        %v990 = vpop.f32.mrf.mxu0
        %v991 = vadd.f32 %v891, %v990
        %v992 = vpop.f32.mrf.mxu0
        %v993 = vadd.f32 %v896, %v992
        %994 = vmatmul.bf16.gmra.mxu0 %v922
        %v995 = vpop.f32.mrf.mxu0
        %v996 = vadd.f32 %v901, %v995
        %v997 = vpop.f32.mrf.mxu0
        %v998 = vadd.f32 %v906, %v997
        %999 = vdwg.mxu0
        %v1000 = vmax.f32 %v934, 0.0
        %v1001 = vmax.f32 %v953, 0.0
        %v1002 = vmax.f32 %v972, 0.0
        %v1003 = vmax.f32 %v991, 0.0
        %v1004 = vmax.f32 %v936, 0.0
        %v1005 = vmax.f32 %v955, 0.0
        %v1006 = vmax.f32 %v974, 0.0
        %v1007 = vmax.f32 %v993, 0.0
        %v1008 = vmax.f32 %v939, 0.0
        %v1009 = vmax.f32 %v958, 0.0
        %v1010 = vmax.f32 %v977, 0.0
        %v1011 = vmax.f32 %v996, 0.0
        %v1012 = vmax.f32 %v941, 0.0
        %v1013 = vmax.f32 %v960, 0.0
        %v1014 = vmax.f32 %v979, 0.0
        %v1015 = vmax.f32 %v998, 0.0
        %s1016 = scalar_lea.vmem [#allocation7], 32
        %v1017 = vld [vmem:[%s1016] sm:$0xf]
        %v1018 = vld [vmem:[%s1016 + $0x4] sm:$0xf]
        %v1019 = vld [vmem:[%s1016 + $0x8] sm:$0xf]
        %v1020 = vld [vmem:[%s1016 + $0xc] sm:$0xf]
        %v1021 = vpack.c.bf16 %v1004, %v1000
        %v1022 = vpack.c.bf16 %v1005, %v1001
        %v1023 = vpack.c.bf16 %v1006, %v1002
        %v1024 = vpack.c.bf16 %v1007, %v1003
        %v1025 = vpack.c.bf16 %v1012, %v1008
        %v1026 = vpack.c.bf16 %v1013, %v1009
        %v1027 = vpack.c.bf16 %v1014, %v1010
        %v1028 = vpack.c.bf16 %v1015, %v1011
        %s1029 = scalar_lea.vmem %s3, 64
        %v1030 = vld [vmem:[%s1029] sm:$0xff]
        %v1031 = vld [vmem:[%s1029 + $0x8] sm:$0xff]
        %v1032 = vld [vmem:[%s1029 + $0x10] sm:$0xff]
        %v1033 = vld [vmem:[%s1029 + $0x18] sm:$0xff]
        %1035 = vset.pattern.permute.xlu0 0
        %1036 = vperm.xlu0 %1035, %v1030
        %v1037 = vpop.permute.xlu0 %1036
        %1040 = vset.pattern.permute.xlu0 0
        %1041 = vperm.xlu0 %1040, %v1031
        %v1042 = vpop.permute.xlu0 %1041
        %1045 = vset.pattern.permute.xlu0 0
        %1046 = vperm.xlu0 %1045, %v1032
        %v1047 = vpop.permute.xlu0 %1046
        %1050 = vset.pattern.permute.xlu0 0
        %1051 = vperm.xlu0 %1050, %v1033
        %v1052 = vpop.permute.xlu0 %1051
        %v1058 = vunpack.c.l.b16 %v1017
        %v1059 = vunpack.c.l.b16 %v1018
        %v1060 = vunpack.c.l.b16 %v1019
        %v1061 = vunpack.c.l.b16 %v1020
        %v1062 = vpack.c.b16 %v1059, %v1058
        %v1063 = vpack.c.b16 %v1061, %v1060
        %v1065 = vsel %vm771, %v1062, 0
        %v1068 = vsel %vm771, %v1063, 0
        %1070 = vmatpush.bf16.msra.mxu0 0
        %1071 = vmatpush.bf16.msra.mxu0 0
        %1072 = vmatpush.bf16.msra.mxu0 0
        %1073 = vmatpush.bf16.msra.mxu0 0
        %1074 = vmatpush.bf16.msra.mxu0 0
        %1075 = vmatpush.bf16.msra.mxu0 0
        %1076 = vmatpush.bf16.msra.mxu0 %v1025
        %1077 = vmatpush.bf16.msra.mxu0 %v1021
        %1078 = vmatmul.bf16.gmra.mxu0 %v1065
        %v1079 = vpop.f32.mrf.mxu0
        %v1080 = vadd.f32 %v1037, %v1079
        %v1081 = vpop.f32.mrf.mxu0
        %v1082 = vadd.f32 %v1042, %v1081
        %1083 = vmatmul.bf16.gmra.mxu0 %v1068
        %v1084 = vpop.f32.mrf.mxu0
        %v1085 = vadd.f32 %v1047, %v1084
        %v1086 = vpop.f32.mrf.mxu0
        %v1087 = vadd.f32 %v1052, %v1086
        %1088 = vdwg.mxu0
        %1089 = vmatpush.bf16.msra.mxu0 0
        %1090 = vmatpush.bf16.msra.mxu0 0
        %1091 = vmatpush.bf16.msra.mxu0 0
        %1092 = vmatpush.bf16.msra.mxu0 0
        %1093 = vmatpush.bf16.msra.mxu0 0
        %1094 = vmatpush.bf16.msra.mxu0 0
        %1095 = vmatpush.bf16.msra.mxu0 %v1026
        %1096 = vmatpush.bf16.msra.mxu0 %v1022
        %1097 = vmatmul.bf16.gmra.mxu0 %v1065
        %v1098 = vpop.f32.mrf.mxu0
        %v1099 = vadd.f32 %v1037, %v1098
        %v1100 = vpop.f32.mrf.mxu0
        %v1101 = vadd.f32 %v1042, %v1100
        %1102 = vmatmul.bf16.gmra.mxu0 %v1068
        %v1103 = vpop.f32.mrf.mxu0
        %v1104 = vadd.f32 %v1047, %v1103
        %v1105 = vpop.f32.mrf.mxu0
        %v1106 = vadd.f32 %v1052, %v1105
        %1107 = vdwg.mxu0
        %1108 = vmatpush.bf16.msra.mxu0 0
        %1109 = vmatpush.bf16.msra.mxu0 0
        %1110 = vmatpush.bf16.msra.mxu0 0
        %1111 = vmatpush.bf16.msra.mxu0 0
        %1112 = vmatpush.bf16.msra.mxu0 0
        %1113 = vmatpush.bf16.msra.mxu0 0
        %1114 = vmatpush.bf16.msra.mxu0 %v1027
        %1115 = vmatpush.bf16.msra.mxu0 %v1023
        %1116 = vmatmul.bf16.gmra.mxu0 %v1065
        %v1117 = vpop.f32.mrf.mxu0
        %v1118 = vadd.f32 %v1037, %v1117
        %v1119 = vpop.f32.mrf.mxu0
        %v1120 = vadd.f32 %v1042, %v1119
        %1121 = vmatmul.bf16.gmra.mxu0 %v1068
        %v1122 = vpop.f32.mrf.mxu0
        %v1123 = vadd.f32 %v1047, %v1122
        %v1124 = vpop.f32.mrf.mxu0
        %v1125 = vadd.f32 %v1052, %v1124
        %1126 = vdwg.mxu0
        %1127 = vmatpush.bf16.msra.mxu0 0
        %1128 = vmatpush.bf16.msra.mxu0 0
        %1129 = vmatpush.bf16.msra.mxu0 0
        %1130 = vmatpush.bf16.msra.mxu0 0
        %1131 = vmatpush.bf16.msra.mxu0 0
        %1132 = vmatpush.bf16.msra.mxu0 0
        %1133 = vmatpush.bf16.msra.mxu0 %v1028
        %1134 = vmatpush.bf16.msra.mxu0 %v1024
        %1135 = vmatmul.bf16.gmra.mxu0 %v1065
        %v1136 = vpop.f32.mrf.mxu0
        %v1137 = vadd.f32 %v1037, %v1136
        %v1138 = vpop.f32.mrf.mxu0
        %v1139 = vadd.f32 %v1042, %v1138
        %1140 = vmatmul.bf16.gmra.mxu0 %v1068
        %v1141 = vpop.f32.mrf.mxu0
        %v1142 = vadd.f32 %v1047, %v1141
        %v1143 = vpop.f32.mrf.mxu0
        %v1144 = vadd.f32 %v1052, %v1143
        %1145 = vdwg.mxu0
        %v1146 = vmax.f32 %v1080, 0.0
        %v1147 = vmax.f32 %v1099, 0.0
        %v1148 = vmax.f32 %v1118, 0.0
        %v1149 = vmax.f32 %v1137, 0.0
        %v1150 = vmax.f32 %v1082, 0.0
        %v1151 = vmax.f32 %v1101, 0.0
        %v1152 = vmax.f32 %v1120, 0.0
        %v1153 = vmax.f32 %v1139, 0.0
        %v1154 = vmax.f32 %v1085, 0.0
        %v1155 = vmax.f32 %v1104, 0.0
        %v1156 = vmax.f32 %v1123, 0.0
        %v1157 = vmax.f32 %v1142, 0.0
        %v1158 = vmax.f32 %v1087, 0.0
        %v1159 = vmax.f32 %v1106, 0.0
        %v1160 = vmax.f32 %v1125, 0.0
        %v1161 = vmax.f32 %v1144, 0.0
        %1162 = vst [vmem:[#allocation2] sm:$0xff] %v1146
        %1163 = vst [vmem:[#allocation2 + $0x8] sm:$0xff] %v1147
        %1164 = vst [vmem:[#allocation2 + $0x10] sm:$0xff] %v1148
        %1165 = vst [vmem:[#allocation2 + $0x18] sm:$0xff] %v1149
        %1166 = vst [vmem:[#allocation2 + $0x20] sm:$0xff] %v1150
        %1167 = vst [vmem:[#allocation2 + $0x28] sm:$0xff] %v1151
        %1168 = vst [vmem:[#allocation2 + $0x30] sm:$0xff] %v1152
        %1169 = vst [vmem:[#allocation2 + $0x38] sm:$0xff] %v1153
        %1170 = vst [vmem:[#allocation2 + $0x40] sm:$0xff] %v1154
        %1171 = vst [vmem:[#allocation2 + $0x48] sm:$0xff] %v1155
        %1172 = vst [vmem:[#allocation2 + $0x50] sm:$0xff] %v1156
        %1173 = vst [vmem:[#allocation2 + $0x58] sm:$0xff] %v1157
        %1174 = vst [vmem:[#allocation2 + $0x60] sm:$0xff] %v1158
        %1175 = vst [vmem:[#allocation2 + $0x68] sm:$0xff] %v1159
        %1176 = vst [vmem:[#allocation2 + $0x70] sm:$0xff] %v1160
        %1177 = vst [vmem:[#allocation2 + $0x78] sm:$0xff] %v1161
        %1178 = vst [vmem:[#allocation2 + $0x80] sm:$0xff] %v563
        %1179 = vst [vmem:[#allocation2 + $0x88] sm:$0xff] %v564
        %1180 = vst [vmem:[#allocation2 + $0x90] sm:$0xff] %v565
        %1181 = vst [vmem:[#allocation2 + $0x98] sm:$0xff] %v566
        %1182 = vst [vmem:[#allocation2 + $0xa0] sm:$0xf] %v567
        %1183 = vst [vmem:[#allocation2 + $0xa8] sm:$0xf] %v568
        %1184 = vst [vmem:[#allocation2 + $0xb0] sm:$0xf] %v569
        %1185 = vst [vmem:[#allocation2 + $0xb8] sm:$0xf] %v570
        %v1186 = vld [vmem:[%s6] sm:$0xf]
        %v1187 = vld [vmem:[%s6 + $0x4] sm:$0xf]
        %v1188 = vld [vmem:[%s6 + $0x8] sm:$0xf]
        %v1189 = vld [vmem:[%s6 + $0xc] sm:$0xf]
        %v1190 = vld [vmem:[#allocation2] sm:$0xff]
        %v1191 = vld [vmem:[#allocation2 + $0x8] sm:$0xff]
        %v1192 = vld [vmem:[#allocation2 + $0x10] sm:$0xff]
        %v1193 = vld [vmem:[#allocation2 + $0x18] sm:$0xff]
        %v1194 = vld [vmem:[#allocation2 + $0x20] sm:$0xff]
        %v1195 = vld [vmem:[#allocation2 + $0x28] sm:$0xff]
        %v1196 = vld [vmem:[#allocation2 + $0x30] sm:$0xff]
        %v1197 = vld [vmem:[#allocation2 + $0x38] sm:$0xff]
        %v1198 = vld [vmem:[#allocation2 + $0x40] sm:$0xff]
        %v1199 = vld [vmem:[#allocation2 + $0x48] sm:$0xff]
        %v1200 = vld [vmem:[#allocation2 + $0x50] sm:$0xff]
        %v1201 = vld [vmem:[#allocation2 + $0x58] sm:$0xff]
        %v1202 = vld [vmem:[#allocation2 + $0x60] sm:$0xff]
        %v1203 = vld [vmem:[#allocation2 + $0x68] sm:$0xff]
        %v1204 = vld [vmem:[#allocation2 + $0x70] sm:$0xff]
        %v1205 = vld [vmem:[#allocation2 + $0x78] sm:$0xff]
        %v1206 = vld [vmem:[#allocation2 + $0x80] sm:$0xff]
        %v1207 = vld [vmem:[#allocation2 + $0x88] sm:$0xff]
        %v1208 = vld [vmem:[#allocation2 + $0x90] sm:$0xff]
        %v1209 = vld [vmem:[#allocation2 + $0x98] sm:$0xff]
        %v1210 = vld [vmem:[#allocation2 + $0xa0] sm:$0xf]
        %v1211 = vld [vmem:[#allocation2 + $0xa8] sm:$0xf]
        %v1212 = vld [vmem:[#allocation2 + $0xb0] sm:$0xf]
        %v1213 = vld [vmem:[#allocation2 + $0xb8] sm:$0xf]
        %v1214 = vpack.c.bf16 %v1194, %v1190
        %v1215 = vpack.c.bf16 %v1195, %v1191
        %v1216 = vpack.c.bf16 %v1196, %v1192
        %v1217 = vpack.c.bf16 %v1197, %v1193
        %v1218 = vpack.c.bf16 %v1202, %v1198
        %v1219 = vpack.c.bf16 %v1203, %v1199
        %v1220 = vpack.c.bf16 %v1204, %v1200
        %v1221 = vpack.c.bf16 %v1205, %v1201
        %v1222 = vpack.c.bf16 %v1210, %v1206
        %v1223 = vpack.c.bf16 %v1211, %v1207
        %v1224 = vpack.c.bf16 %v1212, %v1208
        %v1225 = vpack.c.bf16 %v1213, %v1209
        %v1226 = vld [vmem:[%s7] sm:$0xff]
        %v1227 = vld [vmem:[%s7 + $0x8] sm:$0xff]
        %v1228 = vld [vmem:[%s7 + $0x10] sm:$0xff]
        %v1229 = vld [vmem:[%s7 + $0x18] sm:$0xff]
        %1231 = vset.pattern.permute.xlu0 0
        %1232 = vperm.xlu0 %1231, %v1226
        %v1233 = vpop.permute.xlu0 %1232
        %1236 = vset.pattern.permute.xlu0 0
        %1237 = vperm.xlu0 %1236, %v1227
        %v1238 = vpop.permute.xlu0 %1237
        %1241 = vset.pattern.permute.xlu0 0
        %1242 = vperm.xlu0 %1241, %v1228
        %v1243 = vpop.permute.xlu0 %1242
        %1246 = vset.pattern.permute.xlu0 0
        %1247 = vperm.xlu0 %1246, %v1229
        %v1248 = vpop.permute.xlu0 %1247
        %v1254 = vunpack.c.l.b16 %v1186
        %v1255 = vunpack.c.l.b16 %v1187
        %v1256 = vunpack.c.l.b16 %v1188
        %v1257 = vunpack.c.l.b16 %v1189
        %v1258 = vpack.c.b16 %v1255, %v1254
        %v1259 = vpack.c.b16 %v1257, %v1256
        %vm1260 = vcmask 359424
        %v1262 = vsel %vm1260, %v1258, 0
        %v1265 = vsel %vm1260, %v1259, 0
        %v1268 = vsel %vm620, %v1222, 0
        %v1271 = vsel %vm620, %v1223, 0
        %v1274 = vsel %vm620, %v1224, 0
        %v1277 = vsel %vm620, %v1225, 0
        %1279 = vmatpush.bf16.msra.mxu0 0
        %1280 = vmatpush.bf16.msra.mxu0 0
        %1281 = vmatpush.bf16.msra.mxu0 0
        %1282 = vmatpush.bf16.msra.mxu0 0
        %1283 = vmatpush.bf16.msra.mxu0 0
        %1284 = vmatpush.bf16.msra.mxu0 %v1268
        %1285 = vmatpush.bf16.msra.mxu0 %v1218
        %1286 = vmatpush.bf16.msra.mxu0 %v1214
        %1287 = vmatmul.bf16.gmra.mxu0 %v1262
        %v1288 = vpop.f32.mrf.mxu0
        %v1289 = vadd.f32 %v1233, %v1288
        %v1290 = vpop.f32.mrf.mxu0
        %v1291 = vadd.f32 %v1238, %v1290
        %1292 = vmatmul.bf16.gmra.mxu0 %v1265
        %v1293 = vpop.f32.mrf.mxu0
        %v1294 = vadd.f32 %v1243, %v1293
        %v1295 = vpop.f32.mrf.mxu0
        %v1296 = vadd.f32 %v1248, %v1295
        %1297 = vdwg.mxu0
        %1298 = vmatpush.bf16.msra.mxu0 0
        %1299 = vmatpush.bf16.msra.mxu0 0
        %1300 = vmatpush.bf16.msra.mxu0 0
        %1301 = vmatpush.bf16.msra.mxu0 0
        %1302 = vmatpush.bf16.msra.mxu0 0
        %1303 = vmatpush.bf16.msra.mxu0 %v1271
        %1304 = vmatpush.bf16.msra.mxu0 %v1219
        %1305 = vmatpush.bf16.msra.mxu0 %v1215
        %1306 = vmatmul.bf16.gmra.mxu0 %v1262
        %v1307 = vpop.f32.mrf.mxu0
        %v1308 = vadd.f32 %v1233, %v1307
        %v1309 = vpop.f32.mrf.mxu0
        %v1310 = vadd.f32 %v1238, %v1309
        %1311 = vmatmul.bf16.gmra.mxu0 %v1265
        %v1312 = vpop.f32.mrf.mxu0
        %v1313 = vadd.f32 %v1243, %v1312
        %v1314 = vpop.f32.mrf.mxu0
        %v1315 = vadd.f32 %v1248, %v1314
        %1316 = vdwg.mxu0
        %1317 = vmatpush.bf16.msra.mxu0 0
        %1318 = vmatpush.bf16.msra.mxu0 0
        %1319 = vmatpush.bf16.msra.mxu0 0
        %1320 = vmatpush.bf16.msra.mxu0 0
        %1321 = vmatpush.bf16.msra.mxu0 0
        %1322 = vmatpush.bf16.msra.mxu0 %v1274
        %1323 = vmatpush.bf16.msra.mxu0 %v1220
        %1324 = vmatpush.bf16.msra.mxu0 %v1216
        %1325 = vmatmul.bf16.gmra.mxu0 %v1262
        %v1326 = vpop.f32.mrf.mxu0
        %v1327 = vadd.f32 %v1233, %v1326
        %v1328 = vpop.f32.mrf.mxu0
        %v1329 = vadd.f32 %v1238, %v1328
        %1330 = vmatmul.bf16.gmra.mxu0 %v1265
        %v1331 = vpop.f32.mrf.mxu0
        %v1332 = vadd.f32 %v1243, %v1331
        %v1333 = vpop.f32.mrf.mxu0
        %v1334 = vadd.f32 %v1248, %v1333
        %1335 = vdwg.mxu0
        %1336 = vmatpush.bf16.msra.mxu0 0
        %1337 = vmatpush.bf16.msra.mxu0 0
        %1338 = vmatpush.bf16.msra.mxu0 0
        %1339 = vmatpush.bf16.msra.mxu0 0
        %1340 = vmatpush.bf16.msra.mxu0 0
        %1341 = vmatpush.bf16.msra.mxu0 %v1277
        %1342 = vmatpush.bf16.msra.mxu0 %v1221
        %1343 = vmatpush.bf16.msra.mxu0 %v1217
        %1344 = vmatmul.bf16.gmra.mxu0 %v1262
        %v1345 = vpop.f32.mrf.mxu0
        %v1346 = vadd.f32 %v1233, %v1345
        %v1347 = vpop.f32.mrf.mxu0
        %v1348 = vadd.f32 %v1238, %v1347
        %1349 = vmatmul.bf16.gmra.mxu0 %v1265
        %v1350 = vpop.f32.mrf.mxu0
        %v1351 = vadd.f32 %v1243, %v1350
        %v1352 = vpop.f32.mrf.mxu0
        %v1353 = vadd.f32 %v1248, %v1352
        %1354 = vdwg.mxu0
        %v1355 = vmax.f32 %v1289, 0.0
        %v1356 = vmax.f32 %v1308, 0.0
        %v1357 = vmax.f32 %v1327, 0.0
        %v1358 = vmax.f32 %v1346, 0.0
        %v1359 = vmax.f32 %v1291, 0.0
        %v1360 = vmax.f32 %v1310, 0.0
        %v1361 = vmax.f32 %v1329, 0.0
        %v1362 = vmax.f32 %v1348, 0.0
        %v1363 = vmax.f32 %v1294, 0.0
        %v1364 = vmax.f32 %v1313, 0.0
        %v1365 = vmax.f32 %v1332, 0.0
        %v1366 = vmax.f32 %v1351, 0.0
        %v1367 = vmax.f32 %v1296, 0.0
        %v1368 = vmax.f32 %v1315, 0.0
        %v1369 = vmax.f32 %v1334, 0.0
        %v1370 = vmax.f32 %v1353, 0.0
        %s1371 = scalar_lea.vmem [#allocation7], 48
        %v1372 = vld [vmem:[%s1371] sm:$0xf]
        %v1373 = vld [vmem:[%s1371 + $0x4] sm:$0xf]
        %v1374 = vld [vmem:[%s1371 + $0x8] sm:$0xf]
        %v1375 = vld [vmem:[%s1371 + $0xc] sm:$0xf]
        %v1376 = vpack.c.bf16 %v1359, %v1355
        %v1377 = vpack.c.bf16 %v1360, %v1356
        %v1378 = vpack.c.bf16 %v1361, %v1357
        %v1379 = vpack.c.bf16 %v1362, %v1358
        %v1380 = vpack.c.bf16 %v1367, %v1363
        %v1381 = vpack.c.bf16 %v1368, %v1364
        %v1382 = vpack.c.bf16 %v1369, %v1365
        %v1383 = vpack.c.bf16 %v1370, %v1366
        %s1384 = scalar_lea.vmem %s3, 96
        %v1385 = vld [vmem:[%s1384] sm:$0xff]
        %v1386 = vld [vmem:[%s1384 + $0x8] sm:$0xff]
        %v1387 = vld [vmem:[%s1384 + $0x10] sm:$0xff]
        %v1388 = vld [vmem:[%s1384 + $0x18] sm:$0xff]
        %1390 = vset.pattern.permute.xlu0 0
        %1391 = vperm.xlu0 %1390, %v1385
        %v1392 = vpop.permute.xlu0 %1391
        %1395 = vset.pattern.permute.xlu0 0
        %1396 = vperm.xlu0 %1395, %v1386
        %v1397 = vpop.permute.xlu0 %1396
        %1400 = vset.pattern.permute.xlu0 0
        %1401 = vperm.xlu0 %1400, %v1387
        %v1402 = vpop.permute.xlu0 %1401
        %1405 = vset.pattern.permute.xlu0 0
        %1406 = vperm.xlu0 %1405, %v1388
        %v1407 = vpop.permute.xlu0 %1406
        %v1413 = vunpack.c.l.b16 %v1372
        %v1414 = vunpack.c.l.b16 %v1373
        %v1415 = vunpack.c.l.b16 %v1374
        %v1416 = vunpack.c.l.b16 %v1375
        %v1417 = vpack.c.b16 %v1414, %v1413
        %v1418 = vpack.c.b16 %v1416, %v1415
        %v1420 = vsel %vm771, %v1417, 0
        %v1423 = vsel %vm771, %v1418, 0
        %1425 = vmatpush.bf16.msra.mxu0 0
        %1426 = vmatpush.bf16.msra.mxu0 0
        %1427 = vmatpush.bf16.msra.mxu0 0
        %1428 = vmatpush.bf16.msra.mxu0 0
        %1429 = vmatpush.bf16.msra.mxu0 0
        %1430 = vmatpush.bf16.msra.mxu0 0
        %1431 = vmatpush.bf16.msra.mxu0 %v1380
        %1432 = vmatpush.bf16.msra.mxu0 %v1376
        %1433 = vmatmul.bf16.gmra.mxu0 %v1420
        %v1434 = vpop.f32.mrf.mxu0
        %v1435 = vadd.f32 %v1392, %v1434
        %v1436 = vpop.f32.mrf.mxu0
        %v1437 = vadd.f32 %v1397, %v1436
        %1438 = vmatmul.bf16.gmra.mxu0 %v1423
        %v1439 = vpop.f32.mrf.mxu0
        %v1440 = vadd.f32 %v1402, %v1439
        %v1441 = vpop.f32.mrf.mxu0
        %v1442 = vadd.f32 %v1407, %v1441
        %1443 = vdwg.mxu0
        %1444 = vmatpush.bf16.msra.mxu0 0
        %1445 = vmatpush.bf16.msra.mxu0 0
        %1446 = vmatpush.bf16.msra.mxu0 0
        %1447 = vmatpush.bf16.msra.mxu0 0
        %1448 = vmatpush.bf16.msra.mxu0 0
        %1449 = vmatpush.bf16.msra.mxu0 0
        %1450 = vmatpush.bf16.msra.mxu0 %v1381
        %1451 = vmatpush.bf16.msra.mxu0 %v1377
        %1452 = vmatmul.bf16.gmra.mxu0 %v1420
        %v1453 = vpop.f32.mrf.mxu0
        %v1454 = vadd.f32 %v1392, %v1453
        %v1455 = vpop.f32.mrf.mxu0
        %v1456 = vadd.f32 %v1397, %v1455
        %1457 = vmatmul.bf16.gmra.mxu0 %v1423
        %v1458 = vpop.f32.mrf.mxu0
        %v1459 = vadd.f32 %v1402, %v1458
        %v1460 = vpop.f32.mrf.mxu0
        %v1461 = vadd.f32 %v1407, %v1460
        %1462 = vdwg.mxu0
        %1463 = vmatpush.bf16.msra.mxu0 0
        %1464 = vmatpush.bf16.msra.mxu0 0
        %1465 = vmatpush.bf16.msra.mxu0 0
        %1466 = vmatpush.bf16.msra.mxu0 0
        %1467 = vmatpush.bf16.msra.mxu0 0
        %1468 = vmatpush.bf16.msra.mxu0 0
        %1469 = vmatpush.bf16.msra.mxu0 %v1382
        %1470 = vmatpush.bf16.msra.mxu0 %v1378
        %1471 = vmatmul.bf16.gmra.mxu0 %v1420
        %v1472 = vpop.f32.mrf.mxu0
        %v1473 = vadd.f32 %v1392, %v1472
        %v1474 = vpop.f32.mrf.mxu0
        %v1475 = vadd.f32 %v1397, %v1474
        %1476 = vmatmul.bf16.gmra.mxu0 %v1423
        %v1477 = vpop.f32.mrf.mxu0
        %v1478 = vadd.f32 %v1402, %v1477
        %v1479 = vpop.f32.mrf.mxu0
        %v1480 = vadd.f32 %v1407, %v1479
        %1481 = vdwg.mxu0
        %1482 = vmatpush.bf16.msra.mxu0 0
        %1483 = vmatpush.bf16.msra.mxu0 0
        %1484 = vmatpush.bf16.msra.mxu0 0
        %1485 = vmatpush.bf16.msra.mxu0 0
        %1486 = vmatpush.bf16.msra.mxu0 0
        %1487 = vmatpush.bf16.msra.mxu0 0
        %1488 = vmatpush.bf16.msra.mxu0 %v1383
        %1489 = vmatpush.bf16.msra.mxu0 %v1379
        %1490 = vmatmul.bf16.gmra.mxu0 %v1420
        %v1491 = vpop.f32.mrf.mxu0
        %v1492 = vadd.f32 %v1392, %v1491
        %v1493 = vpop.f32.mrf.mxu0
        %v1494 = vadd.f32 %v1397, %v1493
        %1495 = vmatmul.bf16.gmra.mxu0 %v1423
        %v1496 = vpop.f32.mrf.mxu0
        %v1497 = vadd.f32 %v1402, %v1496
        %v1498 = vpop.f32.mrf.mxu0
        %v1499 = vadd.f32 %v1407, %v1498
        %1500 = vdwg.mxu0
        %v1501 = vmax.f32 %v1435, 0.0
        %v1502 = vmax.f32 %v1454, 0.0
        %v1503 = vmax.f32 %v1473, 0.0
        %v1504 = vmax.f32 %v1492, 0.0
        %v1505 = vmax.f32 %v1437, 0.0
        %v1506 = vmax.f32 %v1456, 0.0
        %v1507 = vmax.f32 %v1475, 0.0
        %v1508 = vmax.f32 %v1494, 0.0
        %v1509 = vmax.f32 %v1440, 0.0
        %v1510 = vmax.f32 %v1459, 0.0
        %v1511 = vmax.f32 %v1478, 0.0
        %v1512 = vmax.f32 %v1497, 0.0
        %v1513 = vmax.f32 %v1442, 0.0
        %v1514 = vmax.f32 %v1461, 0.0
        %v1515 = vmax.f32 %v1480, 0.0
        %v1516 = vmax.f32 %v1499, 0.0
        %s1517 = scalar_lea.vmem [#allocation7], 64
        %v1518 = vld [vmem:[%s1517] sm:$0xf]
        %v1519 = vld [vmem:[%s1517 + $0x4] sm:$0xf]
        %v1520 = vld [vmem:[%s1517 + $0x8] sm:$0xf]
        %v1521 = vld [vmem:[%s1517 + $0xc] sm:$0xf]
        %v1522 = vpack.c.bf16 %v1505, %v1501
        %v1523 = vpack.c.bf16 %v1506, %v1502
        %v1524 = vpack.c.bf16 %v1507, %v1503
        %v1525 = vpack.c.bf16 %v1508, %v1504
        %v1526 = vpack.c.bf16 %v1513, %v1509
        %v1527 = vpack.c.bf16 %v1514, %v1510
        %v1528 = vpack.c.bf16 %v1515, %v1511
        %v1529 = vpack.c.bf16 %v1516, %v1512
        %s1530 = scalar_lea.vmem %s3, 128
        %v1531 = vld [vmem:[%s1530] sm:$0xff]
        %v1532 = vld [vmem:[%s1530 + $0x8] sm:$0xff]
        %v1533 = vld [vmem:[%s1530 + $0x10] sm:$0xff]
        %v1534 = vld [vmem:[%s1530 + $0x18] sm:$0xff]
        %1536 = vset.pattern.permute.xlu0 0
        %1537 = vperm.xlu0 %1536, %v1531
        %v1538 = vpop.permute.xlu0 %1537
        %1541 = vset.pattern.permute.xlu0 0
        %1542 = vperm.xlu0 %1541, %v1532
        %v1543 = vpop.permute.xlu0 %1542
        %1546 = vset.pattern.permute.xlu0 0
        %1547 = vperm.xlu0 %1546, %v1533
        %v1548 = vpop.permute.xlu0 %1547
        %1551 = vset.pattern.permute.xlu0 0
        %1552 = vperm.xlu0 %1551, %v1534
        %v1553 = vpop.permute.xlu0 %1552
        %v1559 = vunpack.c.l.b16 %v1518
        %v1560 = vunpack.c.l.b16 %v1519
        %v1561 = vunpack.c.l.b16 %v1520
        %v1562 = vunpack.c.l.b16 %v1521
        %v1563 = vpack.c.b16 %v1560, %v1559
        %v1564 = vpack.c.b16 %v1562, %v1561
        %v1566 = vsel %vm771, %v1563, 0
        %v1569 = vsel %vm771, %v1564, 0
        %1571 = vmatpush.bf16.msra.mxu0 0
        %1572 = vmatpush.bf16.msra.mxu0 0
        %1573 = vmatpush.bf16.msra.mxu0 0
        %1574 = vmatpush.bf16.msra.mxu0 0
        %1575 = vmatpush.bf16.msra.mxu0 0
        %1576 = vmatpush.bf16.msra.mxu0 0
        %1577 = vmatpush.bf16.msra.mxu0 %v1526
        %1578 = vmatpush.bf16.msra.mxu0 %v1522
        %1579 = vmatmul.bf16.gmra.mxu0 %v1566
        %v1580 = vpop.f32.mrf.mxu0
        %v1581 = vadd.f32 %v1538, %v1580
        %v1582 = vpop.f32.mrf.mxu0
        %v1583 = vadd.f32 %v1543, %v1582
        %1584 = vmatmul.bf16.gmra.mxu0 %v1569
        %v1585 = vpop.f32.mrf.mxu0
        %v1586 = vadd.f32 %v1548, %v1585
        %v1587 = vpop.f32.mrf.mxu0
        %v1588 = vadd.f32 %v1553, %v1587
        %1589 = vdwg.mxu0
        %1590 = vmatpush.bf16.msra.mxu0 0
        %1591 = vmatpush.bf16.msra.mxu0 0
        %1592 = vmatpush.bf16.msra.mxu0 0
        %1593 = vmatpush.bf16.msra.mxu0 0
        %1594 = vmatpush.bf16.msra.mxu0 0
        %1595 = vmatpush.bf16.msra.mxu0 0
        %1596 = vmatpush.bf16.msra.mxu0 %v1527
        %1597 = vmatpush.bf16.msra.mxu0 %v1523
        %1598 = vmatmul.bf16.gmra.mxu0 %v1566
        %v1599 = vpop.f32.mrf.mxu0
        %v1600 = vadd.f32 %v1538, %v1599
        %v1601 = vpop.f32.mrf.mxu0
        %v1602 = vadd.f32 %v1543, %v1601
        %1603 = vmatmul.bf16.gmra.mxu0 %v1569
        %v1604 = vpop.f32.mrf.mxu0
        %v1605 = vadd.f32 %v1548, %v1604
        %v1606 = vpop.f32.mrf.mxu0
        %v1607 = vadd.f32 %v1553, %v1606
        %1608 = vdwg.mxu0
        %1609 = vmatpush.bf16.msra.mxu0 0
        %1610 = vmatpush.bf16.msra.mxu0 0
        %1611 = vmatpush.bf16.msra.mxu0 0
        %1612 = vmatpush.bf16.msra.mxu0 0
        %1613 = vmatpush.bf16.msra.mxu0 0
        %1614 = vmatpush.bf16.msra.mxu0 0
        %1615 = vmatpush.bf16.msra.mxu0 %v1528
        %1616 = vmatpush.bf16.msra.mxu0 %v1524
        %1617 = vmatmul.bf16.gmra.mxu0 %v1566
        %v1618 = vpop.f32.mrf.mxu0
        %v1619 = vadd.f32 %v1538, %v1618
        %v1620 = vpop.f32.mrf.mxu0
        %v1621 = vadd.f32 %v1543, %v1620
        %1622 = vmatmul.bf16.gmra.mxu0 %v1569
        %v1623 = vpop.f32.mrf.mxu0
        %v1624 = vadd.f32 %v1548, %v1623
        %v1625 = vpop.f32.mrf.mxu0
        %v1626 = vadd.f32 %v1553, %v1625
        %1627 = vdwg.mxu0
        %1628 = vmatpush.bf16.msra.mxu0 0
        %1629 = vmatpush.bf16.msra.mxu0 0
        %1630 = vmatpush.bf16.msra.mxu0 0
        %1631 = vmatpush.bf16.msra.mxu0 0
        %1632 = vmatpush.bf16.msra.mxu0 0
        %1633 = vmatpush.bf16.msra.mxu0 0
        %1634 = vmatpush.bf16.msra.mxu0 %v1529
        %1635 = vmatpush.bf16.msra.mxu0 %v1525
        %1636 = vmatmul.bf16.gmra.mxu0 %v1566
        %v1637 = vpop.f32.mrf.mxu0
        %v1638 = vadd.f32 %v1538, %v1637
        %v1639 = vpop.f32.mrf.mxu0
        %v1640 = vadd.f32 %v1543, %v1639
        %1641 = vmatmul.bf16.gmra.mxu0 %v1569
        %v1642 = vpop.f32.mrf.mxu0
        %v1643 = vadd.f32 %v1548, %v1642
        %v1644 = vpop.f32.mrf.mxu0
        %v1645 = vadd.f32 %v1553, %v1644
        %1646 = vdwg.mxu0
        %v1647 = vmax.f32 %v1581, 0.0
        %v1648 = vmax.f32 %v1600, 0.0
        %v1649 = vmax.f32 %v1619, 0.0
        %v1650 = vmax.f32 %v1638, 0.0
        %v1651 = vmax.f32 %v1583, 0.0
        %v1652 = vmax.f32 %v1602, 0.0
        %v1653 = vmax.f32 %v1621, 0.0
        %v1654 = vmax.f32 %v1640, 0.0
        %v1655 = vmax.f32 %v1586, 0.0
        %v1656 = vmax.f32 %v1605, 0.0
        %v1657 = vmax.f32 %v1624, 0.0
        %v1658 = vmax.f32 %v1643, 0.0
        %v1659 = vmax.f32 %v1588, 0.0
        %v1660 = vmax.f32 %v1607, 0.0
        %v1661 = vmax.f32 %v1626, 0.0
        %v1662 = vmax.f32 %v1645, 0.0
        %s1663 = scalar_lea.vmem [#allocation7], 80
        %v1664 = vld [vmem:[%s1663] sm:$0xf]
        %v1665 = vld [vmem:[%s1663 + $0x4] sm:$0xf]
        %v1666 = vld [vmem:[%s1663 + $0x8] sm:$0xf]
        %v1667 = vld [vmem:[%s1663 + $0xc] sm:$0xf]
        %v1668 = vpack.c.bf16 %v1651, %v1647
        %v1669 = vpack.c.bf16 %v1652, %v1648
        %v1670 = vpack.c.bf16 %v1653, %v1649
        %v1671 = vpack.c.bf16 %v1654, %v1650
        %v1672 = vpack.c.bf16 %v1659, %v1655
        %v1673 = vpack.c.bf16 %v1660, %v1656
        %v1674 = vpack.c.bf16 %v1661, %v1657
        %v1675 = vpack.c.bf16 %v1662, %v1658
        %s1676 = scalar_lea.vmem %s3, 160
        %v1677 = vld [vmem:[%s1676] sm:$0xff]
        %v1678 = vld [vmem:[%s1676 + $0x8] sm:$0xff]
        %v1679 = vld [vmem:[%s1676 + $0x10] sm:$0xff]
        %v1680 = vld [vmem:[%s1676 + $0x18] sm:$0xff]
        %1682 = vset.pattern.permute.xlu0 0
        %1683 = vperm.xlu0 %1682, %v1677
        %v1684 = vpop.permute.xlu0 %1683
        %1687 = vset.pattern.permute.xlu0 0
        %1688 = vperm.xlu0 %1687, %v1678
        %v1689 = vpop.permute.xlu0 %1688
        %1692 = vset.pattern.permute.xlu0 0
        %1693 = vperm.xlu0 %1692, %v1679
        %v1694 = vpop.permute.xlu0 %1693
        %1697 = vset.pattern.permute.xlu0 0
        %1698 = vperm.xlu0 %1697, %v1680
        %v1699 = vpop.permute.xlu0 %1698
        %v1705 = vunpack.c.l.b16 %v1664
        %v1706 = vunpack.c.l.b16 %v1665
        %v1707 = vunpack.c.l.b16 %v1666
        %v1708 = vunpack.c.l.b16 %v1667
        %v1709 = vpack.c.b16 %v1706, %v1705
        %v1710 = vpack.c.b16 %v1708, %v1707
        %v1712 = vsel %vm771, %v1709, 0
        %v1715 = vsel %vm771, %v1710, 0
        %1717 = vmatpush.bf16.msra.mxu0 0
        %1718 = vmatpush.bf16.msra.mxu0 0
        %1719 = vmatpush.bf16.msra.mxu0 0
        %1720 = vmatpush.bf16.msra.mxu0 0
        %1721 = vmatpush.bf16.msra.mxu0 0
        %1722 = vmatpush.bf16.msra.mxu0 0
        %1723 = vmatpush.bf16.msra.mxu0 %v1672
        %1724 = vmatpush.bf16.msra.mxu0 %v1668
        %1725 = vmatmul.bf16.gmra.mxu0 %v1712
        %v1726 = vpop.f32.mrf.mxu0
        %v1727 = vadd.f32 %v1684, %v1726
        %v1728 = vpop.f32.mrf.mxu0
        %v1729 = vadd.f32 %v1689, %v1728
        %1730 = vmatmul.bf16.gmra.mxu0 %v1715
        %v1731 = vpop.f32.mrf.mxu0
        %v1732 = vadd.f32 %v1694, %v1731
        %v1733 = vpop.f32.mrf.mxu0
        %v1734 = vadd.f32 %v1699, %v1733
        %1735 = vdwg.mxu0
        %1736 = vmatpush.bf16.msra.mxu0 0
        %1737 = vmatpush.bf16.msra.mxu0 0
        %1738 = vmatpush.bf16.msra.mxu0 0
        %1739 = vmatpush.bf16.msra.mxu0 0
        %1740 = vmatpush.bf16.msra.mxu0 0
        %1741 = vmatpush.bf16.msra.mxu0 0
        %1742 = vmatpush.bf16.msra.mxu0 %v1673
        %1743 = vmatpush.bf16.msra.mxu0 %v1669
        %1744 = vmatmul.bf16.gmra.mxu0 %v1712
        %v1745 = vpop.f32.mrf.mxu0
        %v1746 = vadd.f32 %v1684, %v1745
        %v1747 = vpop.f32.mrf.mxu0
        %v1748 = vadd.f32 %v1689, %v1747
        %1749 = vmatmul.bf16.gmra.mxu0 %v1715
        %v1750 = vpop.f32.mrf.mxu0
        %v1751 = vadd.f32 %v1694, %v1750
        %v1752 = vpop.f32.mrf.mxu0
        %v1753 = vadd.f32 %v1699, %v1752
        %1754 = vdwg.mxu0
        %1755 = vmatpush.bf16.msra.mxu0 0
        %1756 = vmatpush.bf16.msra.mxu0 0
        %1757 = vmatpush.bf16.msra.mxu0 0
        %1758 = vmatpush.bf16.msra.mxu0 0
        %1759 = vmatpush.bf16.msra.mxu0 0
        %1760 = vmatpush.bf16.msra.mxu0 0
        %1761 = vmatpush.bf16.msra.mxu0 %v1674
        %1762 = vmatpush.bf16.msra.mxu0 %v1670
        %1763 = vmatmul.bf16.gmra.mxu0 %v1712
        %v1764 = vpop.f32.mrf.mxu0
        %v1765 = vadd.f32 %v1684, %v1764
        %v1766 = vpop.f32.mrf.mxu0
        %v1767 = vadd.f32 %v1689, %v1766
        %1768 = vmatmul.bf16.gmra.mxu0 %v1715
        %v1769 = vpop.f32.mrf.mxu0
        %v1770 = vadd.f32 %v1694, %v1769
        %v1771 = vpop.f32.mrf.mxu0
        %v1772 = vadd.f32 %v1699, %v1771
        %1773 = vdwg.mxu0
        %1774 = vmatpush.bf16.msra.mxu0 0
        %1775 = vmatpush.bf16.msra.mxu0 0
        %1776 = vmatpush.bf16.msra.mxu0 0
        %1777 = vmatpush.bf16.msra.mxu0 0
        %1778 = vmatpush.bf16.msra.mxu0 0
        %1779 = vmatpush.bf16.msra.mxu0 0
        %1780 = vmatpush.bf16.msra.mxu0 %v1675
        %1781 = vmatpush.bf16.msra.mxu0 %v1671
        %1782 = vmatmul.bf16.gmra.mxu0 %v1712
        %v1783 = vpop.f32.mrf.mxu0
        %v1784 = vadd.f32 %v1684, %v1783
        %v1785 = vpop.f32.mrf.mxu0
        %v1786 = vadd.f32 %v1689, %v1785
        %1787 = vmatmul.bf16.gmra.mxu0 %v1715
        %v1788 = vpop.f32.mrf.mxu0
        %v1789 = vadd.f32 %v1694, %v1788
        %v1790 = vpop.f32.mrf.mxu0
        %v1791 = vadd.f32 %v1699, %v1790
        %1792 = vdwg.mxu0
        %v1793 = vmax.f32 %v1727, 0.0
        %v1794 = vmax.f32 %v1746, 0.0
        %v1795 = vmax.f32 %v1765, 0.0
        %v1796 = vmax.f32 %v1784, 0.0
        %v1797 = vmax.f32 %v1729, 0.0
        %v1798 = vmax.f32 %v1748, 0.0
        %v1799 = vmax.f32 %v1767, 0.0
        %v1800 = vmax.f32 %v1786, 0.0
        %v1801 = vmax.f32 %v1732, 0.0
        %v1802 = vmax.f32 %v1751, 0.0
        %v1803 = vmax.f32 %v1770, 0.0
        %v1804 = vmax.f32 %v1789, 0.0
        %v1805 = vmax.f32 %v1734, 0.0
        %v1806 = vmax.f32 %v1753, 0.0
        %v1807 = vmax.f32 %v1772, 0.0
        %v1808 = vmax.f32 %v1791, 0.0
        %v1809 = vld [vmem:[%s8] sm:$0xf]
        %v1810 = vld [vmem:[%s8 + $0x4] sm:$0xf]
        %v1811 = vld [vmem:[%s8 + $0x8] sm:$0xf]
        %v1812 = vld [vmem:[%s8 + $0xc] sm:$0x1]
        %v1813 = vpack.c.bf16 %v1797, %v1793
        %v1814 = vpack.c.bf16 %v1798, %v1794
        %v1815 = vpack.c.bf16 %v1799, %v1795
        %v1816 = vpack.c.bf16 %v1800, %v1796
        %v1817 = vpack.c.bf16 %v1805, %v1801
        %v1818 = vpack.c.bf16 %v1806, %v1802
        %v1819 = vpack.c.bf16 %v1807, %v1803
        %v1820 = vpack.c.bf16 %v1808, %v1804
        %v1821 = vld [vmem:[%s9] sm:$0xff]
        %v1822 = vld [vmem:[%s9 + $0x8] sm:$0xff]
        %v1823 = vld [vmem:[%s9 + $0x10] sm:$0xff]
        %v1824 = vld [vmem:[%s9 + $0x18] sm:$0x1]
        %1826 = vset.pattern.permute.xlu0 0
        %1827 = vperm.xlu0 %1826, %v1821
        %v1828 = vpop.permute.xlu0 %1827
        %1831 = vset.pattern.permute.xlu0 0
        %1832 = vperm.xlu0 %1831, %v1822
        %v1833 = vpop.permute.xlu0 %1832
        %1836 = vset.pattern.permute.xlu0 0
        %1837 = vperm.xlu0 %1836, %v1823
        %v1838 = vpop.permute.xlu0 %1837
        %1841 = vset.pattern.permute.xlu0 0
        %1842 = vperm.xlu0 %1841, %v1824
        %v1843 = vpop.permute.xlu0 %1842
        %v1849 = vunpack.c.l.b16 %v1809
        %v1850 = vunpack.c.l.b16 %v1810
        %v1851 = vunpack.c.l.b16 %v1811
        %v1852 = vunpack.c.l.b16 %v1812
        %v1853 = vpack.c.b16 %v1850, %v1849
        %v1854 = vpack.c.b16 %v1852, %v1851
        %v1856 = vsel %vm771, %v1853, 0
        %v1859 = vsel %vm771, %v1854, 0
        %1861 = vmatpush.bf16.msra.mxu0 0
        %1862 = vmatpush.bf16.msra.mxu0 0
        %1863 = vmatpush.bf16.msra.mxu0 0
        %1864 = vmatpush.bf16.msra.mxu0 0
        %1865 = vmatpush.bf16.msra.mxu0 0
        %1866 = vmatpush.bf16.msra.mxu0 0
        %1867 = vmatpush.bf16.msra.mxu0 %v1817
        %1868 = vmatpush.bf16.msra.mxu0 %v1813
        %1869 = vmatmul.bf16.gmra.mxu0 %v1856
        %v1870 = vpop.f32.mrf.mxu0
        %v1871 = vadd.f32 %v1828, %v1870
        %v1872 = vpop.f32.mrf.mxu0
        %v1873 = vadd.f32 %v1833, %v1872
        %1874 = vmatmul.bf16.gmra.mxu0 %v1859
        %v1875 = vpop.f32.mrf.mxu0
        %v1876 = vadd.f32 %v1838, %v1875
        %v1877 = vpop.f32.mrf.mxu0
        %v1878 = vadd.f32 %v1843, %v1877
        %1879 = vdwg.mxu0
        %1880 = vmatpush.bf16.msra.mxu0 0
        %1881 = vmatpush.bf16.msra.mxu0 0
        %1882 = vmatpush.bf16.msra.mxu0 0
        %1883 = vmatpush.bf16.msra.mxu0 0
        %1884 = vmatpush.bf16.msra.mxu0 0
        %1885 = vmatpush.bf16.msra.mxu0 0
        %1886 = vmatpush.bf16.msra.mxu0 %v1818
        %1887 = vmatpush.bf16.msra.mxu0 %v1814
        %1888 = vmatmul.bf16.gmra.mxu0 %v1856
        %v1889 = vpop.f32.mrf.mxu0
        %v1890 = vadd.f32 %v1828, %v1889
        %v1891 = vpop.f32.mrf.mxu0
        %v1892 = vadd.f32 %v1833, %v1891
        %1893 = vmatmul.bf16.gmra.mxu0 %v1859
        %v1894 = vpop.f32.mrf.mxu0
        %v1895 = vadd.f32 %v1838, %v1894
        %v1896 = vpop.f32.mrf.mxu0
        %v1897 = vadd.f32 %v1843, %v1896
        %1898 = vdwg.mxu0
        %1899 = vmatpush.bf16.msra.mxu0 0
        %1900 = vmatpush.bf16.msra.mxu0 0
        %1901 = vmatpush.bf16.msra.mxu0 0
        %1902 = vmatpush.bf16.msra.mxu0 0
        %1903 = vmatpush.bf16.msra.mxu0 0
        %1904 = vmatpush.bf16.msra.mxu0 0
        %1905 = vmatpush.bf16.msra.mxu0 %v1819
        %1906 = vmatpush.bf16.msra.mxu0 %v1815
        %1907 = vmatmul.bf16.gmra.mxu0 %v1856
        %v1908 = vpop.f32.mrf.mxu0
        %v1909 = vadd.f32 %v1828, %v1908
        %v1910 = vpop.f32.mrf.mxu0
        %v1911 = vadd.f32 %v1833, %v1910
        %1912 = vmatmul.bf16.gmra.mxu0 %v1859
        %v1913 = vpop.f32.mrf.mxu0
        %v1914 = vadd.f32 %v1838, %v1913
        %v1915 = vpop.f32.mrf.mxu0
        %v1916 = vadd.f32 %v1843, %v1915
        %1917 = vdwg.mxu0
        %1918 = vmatpush.bf16.msra.mxu0 0
        %1919 = vmatpush.bf16.msra.mxu0 0
        %1920 = vmatpush.bf16.msra.mxu0 0
        %1921 = vmatpush.bf16.msra.mxu0 0
        %1922 = vmatpush.bf16.msra.mxu0 0
        %1923 = vmatpush.bf16.msra.mxu0 0
        %1924 = vmatpush.bf16.msra.mxu0 %v1820
        %1925 = vmatpush.bf16.msra.mxu0 %v1816
        %1926 = vmatmul.bf16.gmra.mxu0 %v1856
        %v1927 = vpop.f32.mrf.mxu0
        %v1928 = vadd.f32 %v1828, %v1927
        %v1929 = vpop.f32.mrf.mxu0
        %v1930 = vadd.f32 %v1833, %v1929
        %1931 = vmatmul.bf16.gmra.mxu0 %v1859
        %v1932 = vpop.f32.mrf.mxu0
        %v1933 = vadd.f32 %v1838, %v1932
        %v1934 = vpop.f32.mrf.mxu0
        %v1935 = vadd.f32 %v1843, %v1934
        %1936 = vdwg.mxu0
        %v1937 = vld [vmem:[%s10] sm:$0xf]
        %v1938 = vld [vmem:[%s10 + $0x4] sm:$0xf]
        %v1939 = vld [vmem:[%s10 + $0x8] sm:$0xf]
        %v1940 = vld [vmem:[%s10 + $0xc] sm:$0xf]
        %v1941 = vld [vmem:[%s504] sm:$0xff]
        %v1942 = vld [vmem:[%s504 + $0x8] sm:$0xff]
        %v1943 = vld [vmem:[%s504 + $0x10] sm:$0xff]
        %v1944 = vld [vmem:[%s504 + $0x18] sm:$0xff]
        %v1945 = vld [vmem:[%s504 + $0x20] sm:$0xf]
        %v1946 = vld [vmem:[%s504 + $0x28] sm:$0xf]
        %v1947 = vld [vmem:[%s504 + $0x30] sm:$0xf]
        %v1948 = vld [vmem:[%s504 + $0x38] sm:$0xf]
        %v1949 = vpack.c.bf16 %v1945, %v1941
        %v1950 = vpack.c.bf16 %v1946, %v1942
        %v1951 = vpack.c.bf16 %v1947, %v1943
        %v1952 = vpack.c.bf16 %v1948, %v1944
        %v1953 = vld [vmem:[%s11] sm:$0xff]
        %v1954 = vld [vmem:[%s11 + $0x8] sm:$0xff]
        %v1955 = vld [vmem:[%s11 + $0x10] sm:$0xff]
        %v1956 = vld [vmem:[%s11 + $0x18] sm:$0xff]
        %1958 = vset.pattern.permute.xlu0 0
        %1959 = vperm.xlu0 %1958, %v1953
        %v1960 = vpop.permute.xlu0 %1959
        %1963 = vset.pattern.permute.xlu0 0
        %1964 = vperm.xlu0 %1963, %v1954
        %v1965 = vpop.permute.xlu0 %1964
        %1968 = vset.pattern.permute.xlu0 0
        %1969 = vperm.xlu0 %1968, %v1955
        %v1970 = vpop.permute.xlu0 %1969
        %1973 = vset.pattern.permute.xlu0 0
        %1974 = vperm.xlu0 %1973, %v1956
        %v1975 = vpop.permute.xlu0 %1974
        %v1981 = vunpack.c.l.b16 %v1937
        %v1982 = vunpack.c.l.b16 %v1938
        %v1983 = vunpack.c.l.b16 %v1939
        %v1984 = vunpack.c.l.b16 %v1940
        %v1985 = vpack.c.b16 %v1982, %v1981
        %v1986 = vpack.c.b16 %v1984, %v1983
        %v1988 = vsel %vm613, %v1985, 0
        %v1991 = vsel %vm613, %v1986, 0
        %v1994 = vsel %vm620, %v1949, 0
        %v1997 = vsel %vm620, %v1950, 0
        %v2000 = vsel %vm620, %v1951, 0
        %v2003 = vsel %vm620, %v1952, 0
        %2005 = vmatpush.bf16.msra.mxu0 0
        %2006 = vmatpush.bf16.msra.mxu0 0
        %2007 = vmatpush.bf16.msra.mxu0 0
        %2008 = vmatpush.bf16.msra.mxu0 0
        %2009 = vmatpush.bf16.msra.mxu0 0
        %2010 = vmatpush.bf16.msra.mxu0 0
        %2011 = vmatpush.bf16.msra.mxu0 0
        %2012 = vmatpush.bf16.msra.mxu0 %v1994
        %2013 = vmatmul.bf16.gmra.mxu0 %v1988
        %v2014 = vpop.f32.mrf.mxu0
        %v2015 = vadd.f32 %v1960, %v2014
        %v2016 = vpop.f32.mrf.mxu0
        %v2017 = vadd.f32 %v1965, %v2016
        %2018 = vmatmul.bf16.gmra.mxu0 %v1991
        %v2019 = vpop.f32.mrf.mxu0
        %v2020 = vadd.f32 %v1970, %v2019
        %v2021 = vpop.f32.mrf.mxu0
        %v2022 = vadd.f32 %v1975, %v2021
        %2023 = vdwg.mxu0
        %2024 = vmatpush.bf16.msra.mxu0 0
        %2025 = vmatpush.bf16.msra.mxu0 0
        %2026 = vmatpush.bf16.msra.mxu0 0
        %2027 = vmatpush.bf16.msra.mxu0 0
        %2028 = vmatpush.bf16.msra.mxu0 0
        %2029 = vmatpush.bf16.msra.mxu0 0
        %2030 = vmatpush.bf16.msra.mxu0 0
        %2031 = vmatpush.bf16.msra.mxu0 %v1997
        %2032 = vmatmul.bf16.gmra.mxu0 %v1988
        %v2033 = vpop.f32.mrf.mxu0
        %v2034 = vadd.f32 %v1960, %v2033
        %v2035 = vpop.f32.mrf.mxu0
        %v2036 = vadd.f32 %v1965, %v2035
        %2037 = vmatmul.bf16.gmra.mxu0 %v1991
        %v2038 = vpop.f32.mrf.mxu0
        %v2039 = vadd.f32 %v1970, %v2038
        %v2040 = vpop.f32.mrf.mxu0
        %v2041 = vadd.f32 %v1975, %v2040
        %2042 = vdwg.mxu0
        %2043 = vmatpush.bf16.msra.mxu0 0
        %2044 = vmatpush.bf16.msra.mxu0 0
        %2045 = vmatpush.bf16.msra.mxu0 0
        %2046 = vmatpush.bf16.msra.mxu0 0
        %2047 = vmatpush.bf16.msra.mxu0 0
        %2048 = vmatpush.bf16.msra.mxu0 0
        %2049 = vmatpush.bf16.msra.mxu0 0
        %2050 = vmatpush.bf16.msra.mxu0 %v2000
        %2051 = vmatmul.bf16.gmra.mxu0 %v1988
        %v2052 = vpop.f32.mrf.mxu0
        %v2053 = vadd.f32 %v1960, %v2052
        %v2054 = vpop.f32.mrf.mxu0
        %v2055 = vadd.f32 %v1965, %v2054
        %2056 = vmatmul.bf16.gmra.mxu0 %v1991
        %v2057 = vpop.f32.mrf.mxu0
        %v2058 = vadd.f32 %v1970, %v2057
        %v2059 = vpop.f32.mrf.mxu0
        %v2060 = vadd.f32 %v1975, %v2059
        %2061 = vdwg.mxu0
        %2062 = vmatpush.bf16.msra.mxu0 0
        %2063 = vmatpush.bf16.msra.mxu0 0
        %2064 = vmatpush.bf16.msra.mxu0 0
        %2065 = vmatpush.bf16.msra.mxu0 0
        %2066 = vmatpush.bf16.msra.mxu0 0
        %2067 = vmatpush.bf16.msra.mxu0 0
        %2068 = vmatpush.bf16.msra.mxu0 0
        %2069 = vmatpush.bf16.msra.mxu0 %v2003
        %2070 = vmatmul.bf16.gmra.mxu0 %v1988
        %v2071 = vpop.f32.mrf.mxu0
        %v2072 = vadd.f32 %v1960, %v2071
        %v2073 = vpop.f32.mrf.mxu0
        %v2074 = vadd.f32 %v1965, %v2073
        %2075 = vmatmul.bf16.gmra.mxu0 %v1991
        %v2076 = vpop.f32.mrf.mxu0
        %v2077 = vadd.f32 %v1970, %v2076
        %v2078 = vpop.f32.mrf.mxu0
        %v2079 = vadd.f32 %v1975, %v2078
        %2080 = vdwg.mxu0
        %v2081 = vmax.f32 %v2015, 0.0
        %v2082 = vmax.f32 %v2034, 0.0
        %v2083 = vmax.f32 %v2053, 0.0
        %v2084 = vmax.f32 %v2072, 0.0
        %v2085 = vmax.f32 %v2017, 0.0
        %v2086 = vmax.f32 %v2036, 0.0
        %v2087 = vmax.f32 %v2055, 0.0
        %v2088 = vmax.f32 %v2074, 0.0
        %v2089 = vmax.f32 %v2020, 0.0
        %v2090 = vmax.f32 %v2039, 0.0
        %v2091 = vmax.f32 %v2058, 0.0
        %v2092 = vmax.f32 %v2077, 0.0
        %v2093 = vmax.f32 %v2022, 0.0
        %v2094 = vmax.f32 %v2041, 0.0
        %v2095 = vmax.f32 %v2060, 0.0
        %v2096 = vmax.f32 %v2079, 0.0
        %s2097 = scalar_lea.vmem [#allocation7], 96
        %v2098 = vld [vmem:[%s2097] sm:$0xf]
        %v2099 = vld [vmem:[%s2097 + $0x4] sm:$0xf]
        %v2100 = vld [vmem:[%s2097 + $0x8] sm:$0xf]
        %v2101 = vld [vmem:[%s2097 + $0xc] sm:$0xf]
        %v2102 = vpack.c.bf16 %v2085, %v2081
        %v2103 = vpack.c.bf16 %v2086, %v2082
        %v2104 = vpack.c.bf16 %v2087, %v2083
        %v2105 = vpack.c.bf16 %v2088, %v2084
        %v2106 = vpack.c.bf16 %v2093, %v2089
        %v2107 = vpack.c.bf16 %v2094, %v2090
        %v2108 = vpack.c.bf16 %v2095, %v2091
        %v2109 = vpack.c.bf16 %v2096, %v2092
        %s2110 = scalar_lea.vmem %s3, 192
        %v2111 = vld [vmem:[%s2110] sm:$0xff]
        %v2112 = vld [vmem:[%s2110 + $0x8] sm:$0xff]
        %v2113 = vld [vmem:[%s2110 + $0x10] sm:$0xff]
        %v2114 = vld [vmem:[%s2110 + $0x18] sm:$0xff]
        %2116 = vset.pattern.permute.xlu0 0
        %2117 = vperm.xlu0 %2116, %v2111
        %v2118 = vpop.permute.xlu0 %2117
        %2121 = vset.pattern.permute.xlu0 0
        %2122 = vperm.xlu0 %2121, %v2112
        %v2123 = vpop.permute.xlu0 %2122
        %2126 = vset.pattern.permute.xlu0 0
        %2127 = vperm.xlu0 %2126, %v2113
        %v2128 = vpop.permute.xlu0 %2127
        %2131 = vset.pattern.permute.xlu0 0
        %2132 = vperm.xlu0 %2131, %v2114
        %v2133 = vpop.permute.xlu0 %2132
        %v2139 = vunpack.c.l.b16 %v2098
        %v2140 = vunpack.c.l.b16 %v2099
        %v2141 = vunpack.c.l.b16 %v2100
        %v2142 = vunpack.c.l.b16 %v2101
        %v2143 = vpack.c.b16 %v2140, %v2139
        %v2144 = vpack.c.b16 %v2142, %v2141
        %v2146 = vsel %vm771, %v2143, 0
        %v2149 = vsel %vm771, %v2144, 0
        %2151 = vmatpush.bf16.msra.mxu0 0
        %2152 = vmatpush.bf16.msra.mxu0 0
        %2153 = vmatpush.bf16.msra.mxu0 0
        %2154 = vmatpush.bf16.msra.mxu0 0
        %2155 = vmatpush.bf16.msra.mxu0 0
        %2156 = vmatpush.bf16.msra.mxu0 0
        %2157 = vmatpush.bf16.msra.mxu0 %v2106
        %2158 = vmatpush.bf16.msra.mxu0 %v2102
        %2159 = vmatmul.bf16.gmra.mxu0 %v2146
        %v2160 = vpop.f32.mrf.mxu0
        %v2161 = vadd.f32 %v2118, %v2160
        %v2162 = vpop.f32.mrf.mxu0
        %v2163 = vadd.f32 %v2123, %v2162
        %2164 = vmatmul.bf16.gmra.mxu0 %v2149
        %v2165 = vpop.f32.mrf.mxu0
        %v2166 = vadd.f32 %v2128, %v2165
        %v2167 = vpop.f32.mrf.mxu0
        %v2168 = vadd.f32 %v2133, %v2167
        %2169 = vdwg.mxu0
        %2170 = vmatpush.bf16.msra.mxu0 0
        %2171 = vmatpush.bf16.msra.mxu0 0
        %2172 = vmatpush.bf16.msra.mxu0 0
        %2173 = vmatpush.bf16.msra.mxu0 0
        %2174 = vmatpush.bf16.msra.mxu0 0
        %2175 = vmatpush.bf16.msra.mxu0 0
        %2176 = vmatpush.bf16.msra.mxu0 %v2107
        %2177 = vmatpush.bf16.msra.mxu0 %v2103
        %2178 = vmatmul.bf16.gmra.mxu0 %v2146
        %v2179 = vpop.f32.mrf.mxu0
        %v2180 = vadd.f32 %v2118, %v2179
        %v2181 = vpop.f32.mrf.mxu0
        %v2182 = vadd.f32 %v2123, %v2181
        %2183 = vmatmul.bf16.gmra.mxu0 %v2149
        %v2184 = vpop.f32.mrf.mxu0
        %v2185 = vadd.f32 %v2128, %v2184
        %v2186 = vpop.f32.mrf.mxu0
        %v2187 = vadd.f32 %v2133, %v2186
        %2188 = vdwg.mxu0
        %2189 = vmatpush.bf16.msra.mxu0 0
        %2190 = vmatpush.bf16.msra.mxu0 0
        %2191 = vmatpush.bf16.msra.mxu0 0
        %2192 = vmatpush.bf16.msra.mxu0 0
        %2193 = vmatpush.bf16.msra.mxu0 0
        %2194 = vmatpush.bf16.msra.mxu0 0
        %2195 = vmatpush.bf16.msra.mxu0 %v2108
        %2196 = vmatpush.bf16.msra.mxu0 %v2104
        %2197 = vmatmul.bf16.gmra.mxu0 %v2146
        %v2198 = vpop.f32.mrf.mxu0
        %v2199 = vadd.f32 %v2118, %v2198
        %v2200 = vpop.f32.mrf.mxu0
        %v2201 = vadd.f32 %v2123, %v2200
        %2202 = vmatmul.bf16.gmra.mxu0 %v2149
        %v2203 = vpop.f32.mrf.mxu0
        %v2204 = vadd.f32 %v2128, %v2203
        %v2205 = vpop.f32.mrf.mxu0
        %v2206 = vadd.f32 %v2133, %v2205
        %2207 = vdwg.mxu0
        %2208 = vmatpush.bf16.msra.mxu0 0
        %2209 = vmatpush.bf16.msra.mxu0 0
        %2210 = vmatpush.bf16.msra.mxu0 0
        %2211 = vmatpush.bf16.msra.mxu0 0
        %2212 = vmatpush.bf16.msra.mxu0 0
        %2213 = vmatpush.bf16.msra.mxu0 0
        %2214 = vmatpush.bf16.msra.mxu0 %v2109
        %2215 = vmatpush.bf16.msra.mxu0 %v2105
        %2216 = vmatmul.bf16.gmra.mxu0 %v2146
        %v2217 = vpop.f32.mrf.mxu0
        %v2218 = vadd.f32 %v2118, %v2217
        %v2219 = vpop.f32.mrf.mxu0
        %v2220 = vadd.f32 %v2123, %v2219
        %2221 = vmatmul.bf16.gmra.mxu0 %v2149
        %v2222 = vpop.f32.mrf.mxu0
        %v2223 = vadd.f32 %v2128, %v2222
        %v2224 = vpop.f32.mrf.mxu0
        %v2225 = vadd.f32 %v2133, %v2224
        %2226 = vdwg.mxu0
        %v2227 = vmax.f32 %v2161, 0.0
        %v2228 = vmax.f32 %v2180, 0.0
        %v2229 = vmax.f32 %v2199, 0.0
        %v2230 = vmax.f32 %v2218, 0.0
        %v2231 = vmax.f32 %v2163, 0.0
        %v2232 = vmax.f32 %v2182, 0.0
        %v2233 = vmax.f32 %v2201, 0.0
        %v2234 = vmax.f32 %v2220, 0.0
        %v2235 = vmax.f32 %v2166, 0.0
        %v2236 = vmax.f32 %v2185, 0.0
        %v2237 = vmax.f32 %v2204, 0.0
        %v2238 = vmax.f32 %v2223, 0.0
        %v2239 = vmax.f32 %v2168, 0.0
        %v2240 = vmax.f32 %v2187, 0.0
        %v2241 = vmax.f32 %v2206, 0.0
        %v2242 = vmax.f32 %v2225, 0.0
        %s2243 = scalar_lea.vmem [#allocation7], 112
        %v2244 = vld [vmem:[%s2243] sm:$0xf]
        %v2245 = vld [vmem:[%s2243 + $0x4] sm:$0xf]
        %v2246 = vld [vmem:[%s2243 + $0x8] sm:$0xf]
        %v2247 = vld [vmem:[%s2243 + $0xc] sm:$0xf]
        %v2248 = vpack.c.bf16 %v2231, %v2227
        %v2249 = vpack.c.bf16 %v2232, %v2228
        %v2250 = vpack.c.bf16 %v2233, %v2229
        %v2251 = vpack.c.bf16 %v2234, %v2230
        %v2252 = vpack.c.bf16 %v2239, %v2235
        %v2253 = vpack.c.bf16 %v2240, %v2236
        %v2254 = vpack.c.bf16 %v2241, %v2237
        %v2255 = vpack.c.bf16 %v2242, %v2238
        %s2256 = scalar_lea.vmem %s3, 224
        %v2257 = vld [vmem:[%s2256] sm:$0xff]
        %v2258 = vld [vmem:[%s2256 + $0x8] sm:$0xff]
        %v2259 = vld [vmem:[%s2256 + $0x10] sm:$0xff]
        %v2260 = vld [vmem:[%s2256 + $0x18] sm:$0xff]
        %2262 = vset.pattern.permute.xlu0 0
        %2263 = vperm.xlu0 %2262, %v2257
        %v2264 = vpop.permute.xlu0 %2263
        %2267 = vset.pattern.permute.xlu0 0
        %2268 = vperm.xlu0 %2267, %v2258
        %v2269 = vpop.permute.xlu0 %2268
        %2272 = vset.pattern.permute.xlu0 0
        %2273 = vperm.xlu0 %2272, %v2259
        %v2274 = vpop.permute.xlu0 %2273
        %2277 = vset.pattern.permute.xlu0 0
        %2278 = vperm.xlu0 %2277, %v2260
        %v2279 = vpop.permute.xlu0 %2278
        %v2285 = vunpack.c.l.b16 %v2244
        %v2286 = vunpack.c.l.b16 %v2245
        %v2287 = vunpack.c.l.b16 %v2246
        %v2288 = vunpack.c.l.b16 %v2247
        %v2289 = vpack.c.b16 %v2286, %v2285
        %v2290 = vpack.c.b16 %v2288, %v2287
        %v2292 = vsel %vm771, %v2289, 0
        %v2295 = vsel %vm771, %v2290, 0
        %2297 = vmatpush.bf16.msra.mxu0 0
        %2298 = vmatpush.bf16.msra.mxu0 0
        %2299 = vmatpush.bf16.msra.mxu0 0
        %2300 = vmatpush.bf16.msra.mxu0 0
        %2301 = vmatpush.bf16.msra.mxu0 0
        %2302 = vmatpush.bf16.msra.mxu0 0
        %2303 = vmatpush.bf16.msra.mxu0 %v2252
        %2304 = vmatpush.bf16.msra.mxu0 %v2248
        %2305 = vmatmul.bf16.gmra.mxu0 %v2292
        %v2306 = vpop.f32.mrf.mxu0
        %v2307 = vadd.f32 %v2264, %v2306
        %v2308 = vpop.f32.mrf.mxu0
        %v2309 = vadd.f32 %v2269, %v2308
        %2310 = vmatmul.bf16.gmra.mxu0 %v2295
        %v2311 = vpop.f32.mrf.mxu0
        %v2312 = vadd.f32 %v2274, %v2311
        %v2313 = vpop.f32.mrf.mxu0
        %v2314 = vadd.f32 %v2279, %v2313
        %2315 = vdwg.mxu0
        %2316 = vmatpush.bf16.msra.mxu0 0
        %2317 = vmatpush.bf16.msra.mxu0 0
        %2318 = vmatpush.bf16.msra.mxu0 0
        %2319 = vmatpush.bf16.msra.mxu0 0
        %2320 = vmatpush.bf16.msra.mxu0 0
        %2321 = vmatpush.bf16.msra.mxu0 0
        %2322 = vmatpush.bf16.msra.mxu0 %v2253
        %2323 = vmatpush.bf16.msra.mxu0 %v2249
        %2324 = vmatmul.bf16.gmra.mxu0 %v2292
        %v2325 = vpop.f32.mrf.mxu0
        %v2326 = vadd.f32 %v2264, %v2325
        %v2327 = vpop.f32.mrf.mxu0
        %v2328 = vadd.f32 %v2269, %v2327
        %2329 = vmatmul.bf16.gmra.mxu0 %v2295
        %v2330 = vpop.f32.mrf.mxu0
        %v2331 = vadd.f32 %v2274, %v2330
        %v2332 = vpop.f32.mrf.mxu0
        %v2333 = vadd.f32 %v2279, %v2332
        %2334 = vdwg.mxu0
        %2335 = vmatpush.bf16.msra.mxu0 0
        %2336 = vmatpush.bf16.msra.mxu0 0
        %2337 = vmatpush.bf16.msra.mxu0 0
        %2338 = vmatpush.bf16.msra.mxu0 0
        %2339 = vmatpush.bf16.msra.mxu0 0
        %2340 = vmatpush.bf16.msra.mxu0 0
        %2341 = vmatpush.bf16.msra.mxu0 %v2254
        %2342 = vmatpush.bf16.msra.mxu0 %v2250
        %2343 = vmatmul.bf16.gmra.mxu0 %v2292
        %v2344 = vpop.f32.mrf.mxu0
        %v2345 = vadd.f32 %v2264, %v2344
        %v2346 = vpop.f32.mrf.mxu0
        %v2347 = vadd.f32 %v2269, %v2346
        %2348 = vmatmul.bf16.gmra.mxu0 %v2295
        %v2349 = vpop.f32.mrf.mxu0
        %v2350 = vadd.f32 %v2274, %v2349
        %v2351 = vpop.f32.mrf.mxu0
        %v2352 = vadd.f32 %v2279, %v2351
        %2353 = vdwg.mxu0
        %2354 = vmatpush.bf16.msra.mxu0 0
        %2355 = vmatpush.bf16.msra.mxu0 0
        %2356 = vmatpush.bf16.msra.mxu0 0
        %2357 = vmatpush.bf16.msra.mxu0 0
        %2358 = vmatpush.bf16.msra.mxu0 0
        %2359 = vmatpush.bf16.msra.mxu0 0
        %2360 = vmatpush.bf16.msra.mxu0 %v2255
        %2361 = vmatpush.bf16.msra.mxu0 %v2251
        %2362 = vmatmul.bf16.gmra.mxu0 %v2292
        %v2363 = vpop.f32.mrf.mxu0
        %v2364 = vadd.f32 %v2264, %v2363
        %v2365 = vpop.f32.mrf.mxu0
        %v2366 = vadd.f32 %v2269, %v2365
        %2367 = vmatmul.bf16.gmra.mxu0 %v2295
        %v2368 = vpop.f32.mrf.mxu0
        %v2369 = vadd.f32 %v2274, %v2368
        %v2370 = vpop.f32.mrf.mxu0
        %v2371 = vadd.f32 %v2279, %v2370
        %2372 = vdwg.mxu0
        %v2373 = vmax.f32 %v2307, 0.0
        %v2374 = vmax.f32 %v2326, 0.0
        %v2375 = vmax.f32 %v2345, 0.0
        %v2376 = vmax.f32 %v2364, 0.0
        %v2377 = vmax.f32 %v2309, 0.0
        %v2378 = vmax.f32 %v2328, 0.0
        %v2379 = vmax.f32 %v2347, 0.0
        %v2380 = vmax.f32 %v2366, 0.0
        %v2381 = vmax.f32 %v2312, 0.0
        %v2382 = vmax.f32 %v2331, 0.0
        %v2383 = vmax.f32 %v2350, 0.0
        %v2384 = vmax.f32 %v2369, 0.0
        %v2385 = vmax.f32 %v2314, 0.0
        %v2386 = vmax.f32 %v2333, 0.0
        %v2387 = vmax.f32 %v2352, 0.0
        %v2388 = vmax.f32 %v2371, 0.0
        %v2389 = vld [vmem:[%s12] sm:$0xf]
        %v2390 = vpack.c.bf16 %v2377, %v2373
        %v2391 = vpack.c.bf16 %v2378, %v2374
        %v2392 = vpack.c.bf16 %v2379, %v2375
        %v2393 = vpack.c.bf16 %v2380, %v2376
        %v2394 = vpack.c.bf16 %v2385, %v2381
        %v2395 = vpack.c.bf16 %v2386, %v2382
        %v2396 = vpack.c.bf16 %v2387, %v2383
        %v2397 = vpack.c.bf16 %v2388, %v2384
        %v2398 = vld [vmem:[%s13] sm:$0xff]
        %2400 = vset.pattern.permute.xlu0 0
        %2401 = vperm.xlu0 %2400, %v2398
        %v2402 = vpop.permute.xlu0 %2401
        %v2405 = vsel %vm771, %v2389, 0
        %2407 = vmatpush.bf16.msra.mxu0 0
        %2408 = vmatpush.bf16.msra.mxu0 0
        %2409 = vmatpush.bf16.msra.mxu0 0
        %2410 = vmatpush.bf16.msra.mxu0 0
        %2411 = vmatpush.bf16.msra.mxu0 0
        %2412 = vmatpush.bf16.msra.mxu0 0
        %2413 = vmatpush.bf16.msra.mxu0 %v2394
        %2414 = vmatpush.bf16.msra.mxu0 %v2390
        %2415 = vmatmul.bf16.gmra.mxu0 %v2405
        %v2416 = vpop.f32.mrf.mxu0
        %v2417 = vadd.f32 %v2402, %v2416
        %v2418 = vpop.f32.mrf.mxu0
        %2419 = vdwg.mxu0
        %2420 = vmatpush.bf16.msra.mxu0 0
        %2421 = vmatpush.bf16.msra.mxu0 0
        %2422 = vmatpush.bf16.msra.mxu0 0
        %2423 = vmatpush.bf16.msra.mxu0 0
        %2424 = vmatpush.bf16.msra.mxu0 0
        %2425 = vmatpush.bf16.msra.mxu0 0
        %2426 = vmatpush.bf16.msra.mxu0 %v2395
        %2427 = vmatpush.bf16.msra.mxu0 %v2391
        %2428 = vmatmul.bf16.gmra.mxu0 %v2405
        %v2429 = vpop.f32.mrf.mxu0
        %v2430 = vadd.f32 %v2402, %v2429
        %v2431 = vpop.f32.mrf.mxu0
        %2432 = vdwg.mxu0
        %2433 = vmatpush.bf16.msra.mxu0 0
        %2434 = vmatpush.bf16.msra.mxu0 0
        %2435 = vmatpush.bf16.msra.mxu0 0
        %2436 = vmatpush.bf16.msra.mxu0 0
        %2437 = vmatpush.bf16.msra.mxu0 0
        %2438 = vmatpush.bf16.msra.mxu0 0
        %2439 = vmatpush.bf16.msra.mxu0 %v2396
        %2440 = vmatpush.bf16.msra.mxu0 %v2392
        %2441 = vmatmul.bf16.gmra.mxu0 %v2405
        %v2442 = vpop.f32.mrf.mxu0
        %v2443 = vadd.f32 %v2402, %v2442
        %v2444 = vpop.f32.mrf.mxu0
        %2445 = vdwg.mxu0
        %2446 = vmatpush.bf16.msra.mxu0 0
        %2447 = vmatpush.bf16.msra.mxu0 0
        %2448 = vmatpush.bf16.msra.mxu0 0
        %2449 = vmatpush.bf16.msra.mxu0 0
        %2450 = vmatpush.bf16.msra.mxu0 0
        %2451 = vmatpush.bf16.msra.mxu0 0
        %2452 = vmatpush.bf16.msra.mxu0 %v2397
        %2453 = vmatpush.bf16.msra.mxu0 %v2393
        %2454 = vmatmul.bf16.gmra.mxu0 %v2405
        %v2455 = vpop.f32.mrf.mxu0
        %v2456 = vadd.f32 %v2402, %v2455
        %v2457 = vpop.f32.mrf.mxu0
        %2458 = vdwg.mxu0
        %v2459 = vmax.f32 %v2417, 0.0
        %v2460 = vmax.f32 %v2430, 0.0
        %v2461 = vmax.f32 %v2443, 0.0
        %v2462 = vmax.f32 %v2456, 0.0
        %v2463 = vmul.f32 %v1871, %v2459
        %v2464 = vmul.f32 %v1890, %v2460
        %v2465 = vmul.f32 %v1909, %v2461
        %v2466 = vmul.f32 %v1928, %v2462
        %v2467 = vrot.slane %v2463, 4
        %v2468 = vadd.f32 %v2463, %v2467
        %v2469 = vrot.slane %v2468, 2
        %v2470 = vadd.f32 %v2468, %v2469
        %v2471 = vrot.slane %v2470, 1
        %v2472 = vadd.f32 %v2470, %v2471
        %v2473 = vrot.slane %v2464, 4
        %v2474 = vadd.f32 %v2464, %v2473
        %v2475 = vrot.slane %v2474, 2
        %v2476 = vadd.f32 %v2474, %v2475
        %v2477 = vrot.slane %v2476, 1
        %v2478 = vadd.f32 %v2476, %v2477
        %v2479 = vrot.slane %v2465, 4
        %v2480 = vadd.f32 %v2465, %v2479
        %v2481 = vrot.slane %v2480, 2
        %v2482 = vadd.f32 %v2480, %v2481
        %v2483 = vrot.slane %v2482, 1
        %v2484 = vadd.f32 %v2482, %v2483
        %v2485 = vrot.slane %v2466, 4
        %v2486 = vadd.f32 %v2466, %v2485
        %v2487 = vrot.slane %v2486, 2
        %v2488 = vadd.f32 %v2486, %v2487
        %v2489 = vrot.slane %v2488, 1
        %v2490 = vadd.f32 %v2488, %v2489
        %v2491 = vxor.u32 %v2472, 2147483648
        %v2492 = vxor.u32 %v2478, 2147483648
        %v2493 = vxor.u32 %v2484, 2147483648
        %v2494 = vxor.u32 %v2490, 2147483648
        %v2495 = vmul.f32 %v2491, 1.442695
        %v2496 = vpow.pop %v2495
        %v2497 = vmul.f32 %v2492, 1.442695
        %v2498 = vpow.pop %v2497
        %v2499 = vmul.f32 %v2493, 1.442695
        %v2500 = vpow.pop %v2499
        %v2501 = vmul.f32 %v2494, 1.442695
        %v2502 = vpow.pop %v2501
        %v2503 = vadd.f32 %v2496, 1.0
        %v2504 = vadd.f32 %v2498, 1.0
        %v2505 = vadd.f32 %v2500, 1.0
        %v2506 = vadd.f32 %v2502, 1.0
        %v2507 = vrcp.pop %v2503
        %v2508 = vmul.f32 %v2503, %v2507
        %v2509 = vsub.f32 1.0, %v2508
        %v2510 = vmul.f32 %v2507, %v2509
        %v2511 = vadd.f32 %v2507, %v2510
        %vm2512 = vweird.f32 %v2503
        %vm2513 = vweird.f32 %v2507
        %vm2514 = vmor %vm2512, %vm2513
        %v2515 = vsel %vm2514, %v2507, %v2511
        %v2516 = vand.u32 2147483647, %v2503
        %vm2517 = vcmp.eq.f32.partialorder %v2516, 8.507059e+37
        %v2518 = vand.u32 %v2503, 2147483648
        %v2519 = vor.u32 1.1754944e-38, %v2518
        %v2520 = vsel %vm2517, %v2519, %v2515
        %v2521 = vmul.f32 1.0, %v2520
        %v2522 = vrcp.pop %v2504
        %v2523 = vmul.f32 %v2504, %v2522
        %v2524 = vsub.f32 1.0, %v2523
        %v2525 = vmul.f32 %v2522, %v2524
        %v2526 = vadd.f32 %v2522, %v2525
        %vm2527 = vweird.f32 %v2504
        %vm2528 = vweird.f32 %v2522
        %vm2529 = vmor %vm2527, %vm2528
        %v2530 = vsel %vm2529, %v2522, %v2526
        %v2531 = vand.u32 2147483647, %v2504
        %vm2532 = vcmp.eq.f32.partialorder %v2531, 8.507059e+37
        %v2533 = vand.u32 %v2504, 2147483648
        %v2534 = vor.u32 1.1754944e-38, %v2533
        %v2535 = vsel %vm2532, %v2534, %v2530
        %v2536 = vmul.f32 1.0, %v2535
        %v2537 = vrcp.pop %v2505
        %v2538 = vmul.f32 %v2505, %v2537
        %v2539 = vsub.f32 1.0, %v2538
        %v2540 = vmul.f32 %v2537, %v2539
        %v2541 = vadd.f32 %v2537, %v2540
        %vm2542 = vweird.f32 %v2505
        %vm2543 = vweird.f32 %v2537
        %vm2544 = vmor %vm2542, %vm2543
        %v2545 = vsel %vm2544, %v2537, %v2541
        %v2546 = vand.u32 2147483647, %v2505
        %vm2547 = vcmp.eq.f32.partialorder %v2546, 8.507059e+37
        %v2548 = vand.u32 %v2505, 2147483648
        %v2549 = vor.u32 1.1754944e-38, %v2548
        %v2550 = vsel %vm2547, %v2549, %v2545
        %v2551 = vmul.f32 1.0, %v2550
        %v2552 = vrcp.pop %v2506
        %v2553 = vmul.f32 %v2506, %v2552
        %v2554 = vsub.f32 1.0, %v2553
        %v2555 = vmul.f32 %v2552, %v2554
        %v2556 = vadd.f32 %v2552, %v2555
        %vm2557 = vweird.f32 %v2506
        %vm2558 = vweird.f32 %v2552
        %vm2559 = vmor %vm2557, %vm2558
        %v2560 = vsel %vm2559, %v2552, %v2556
        %v2561 = vand.u32 2147483647, %v2506
        %vm2562 = vcmp.eq.f32.partialorder %v2561, 8.507059e+37
        %v2563 = vand.u32 %v2506, 2147483648
        %v2564 = vor.u32 1.1754944e-38, %v2563
        %v2565 = vsel %vm2562, %v2564, %v2560
        %v2566 = vmul.f32 1.0, %v2565
        %v2571 = vrot.slane %v2536, 7
        %v2572 = vrot.slane %v2551, 6
        %v2573 = vrot.slane %v2566, 5
        %vm2574 = vcmask 1040384
        %v2575 = vsel %vm2574, %v2521, %v2571
        %vm2576 = vcmask 1042434
        %v2577 = vsel %vm2576, %v2572, %v2573
        %vm2578 = vcmask 1041408
        %v2579 = vsel %vm2578, %v2575, %v2577
        %v2581 = vlaneseq
        %vm2582 = vcmp.ge.s32.totalorder %v2581, 0
        %vm2583 = vcmp.lt.s32.totalorder %v2581, 512
        %vm2584 = vmand %vm2582, %vm2583
        %2585 = vst.msk [vmem:[%s558] ss:$4 sm:$0xf] %vm2584, %v2579
        %v2586 = vmul.f32 %v1873, %v2459
        %v2587 = vmul.f32 %v1892, %v2460
        %v2588 = vmul.f32 %v1911, %v2461
        %v2589 = vmul.f32 %v1930, %v2462
        %v2590 = vrot.slane %v2586, 4
        %v2591 = vadd.f32 %v2586, %v2590
        %v2592 = vrot.slane %v2591, 2
        %v2593 = vadd.f32 %v2591, %v2592
        %v2594 = vrot.slane %v2593, 1
        %v2595 = vadd.f32 %v2593, %v2594
        %v2596 = vrot.slane %v2587, 4
        %v2597 = vadd.f32 %v2587, %v2596
        %v2598 = vrot.slane %v2597, 2
        %v2599 = vadd.f32 %v2597, %v2598
        %v2600 = vrot.slane %v2599, 1
        %v2601 = vadd.f32 %v2599, %v2600
        %v2602 = vrot.slane %v2588, 4
        %v2603 = vadd.f32 %v2588, %v2602
        %v2604 = vrot.slane %v2603, 2
        %v2605 = vadd.f32 %v2603, %v2604
        %v2606 = vrot.slane %v2605, 1
        %v2607 = vadd.f32 %v2605, %v2606
        %v2608 = vrot.slane %v2589, 4
        %v2609 = vadd.f32 %v2589, %v2608
        %v2610 = vrot.slane %v2609, 2
        %v2611 = vadd.f32 %v2609, %v2610
        %v2612 = vrot.slane %v2611, 1
        %v2613 = vadd.f32 %v2611, %v2612
        %v2614 = vxor.u32 %v2595, 2147483648
        %v2615 = vxor.u32 %v2601, 2147483648
        %v2616 = vxor.u32 %v2607, 2147483648
        %v2617 = vxor.u32 %v2613, 2147483648
        %v2618 = vmul.f32 %v2614, 1.442695
        %v2619 = vpow.pop %v2618
        %v2620 = vmul.f32 %v2615, 1.442695
        %v2621 = vpow.pop %v2620
        %v2622 = vmul.f32 %v2616, 1.442695
        %v2623 = vpow.pop %v2622
        %v2624 = vmul.f32 %v2617, 1.442695
        %v2625 = vpow.pop %v2624
        %v2626 = vadd.f32 %v2619, 1.0
        %v2627 = vadd.f32 %v2621, 1.0
        %v2628 = vadd.f32 %v2623, 1.0
        %v2629 = vadd.f32 %v2625, 1.0
        %v2630 = vrcp.pop %v2626
        %v2631 = vmul.f32 %v2626, %v2630
        %v2632 = vsub.f32 1.0, %v2631
        %v2633 = vmul.f32 %v2630, %v2632
        %v2634 = vadd.f32 %v2630, %v2633
        %vm2635 = vweird.f32 %v2626
        %vm2636 = vweird.f32 %v2630
        %vm2637 = vmor %vm2635, %vm2636
        %v2638 = vsel %vm2637, %v2630, %v2634
        %v2639 = vand.u32 2147483647, %v2626
        %vm2640 = vcmp.eq.f32.partialorder %v2639, 8.507059e+37
        %v2641 = vand.u32 %v2626, 2147483648
        %v2642 = vor.u32 1.1754944e-38, %v2641
        %v2643 = vsel %vm2640, %v2642, %v2638
        %v2644 = vmul.f32 1.0, %v2643
        %v2645 = vrcp.pop %v2627
        %v2646 = vmul.f32 %v2627, %v2645
        %v2647 = vsub.f32 1.0, %v2646
        %v2648 = vmul.f32 %v2645, %v2647
        %v2649 = vadd.f32 %v2645, %v2648
        %vm2650 = vweird.f32 %v2627
        %vm2651 = vweird.f32 %v2645
        %vm2652 = vmor %vm2650, %vm2651
        %v2653 = vsel %vm2652, %v2645, %v2649
        %v2654 = vand.u32 2147483647, %v2627
        %vm2655 = vcmp.eq.f32.partialorder %v2654, 8.507059e+37
        %v2656 = vand.u32 %v2627, 2147483648
        %v2657 = vor.u32 1.1754944e-38, %v2656
        %v2658 = vsel %vm2655, %v2657, %v2653
        %v2659 = vmul.f32 1.0, %v2658
        %v2660 = vrcp.pop %v2628
        %v2661 = vmul.f32 %v2628, %v2660
        %v2662 = vsub.f32 1.0, %v2661
        %v2663 = vmul.f32 %v2660, %v2662
        %v2664 = vadd.f32 %v2660, %v2663
        %vm2665 = vweird.f32 %v2628
        %vm2666 = vweird.f32 %v2660
        %vm2667 = vmor %vm2665, %vm2666
        %v2668 = vsel %vm2667, %v2660, %v2664
        %v2669 = vand.u32 2147483647, %v2628
        %vm2670 = vcmp.eq.f32.partialorder %v2669, 8.507059e+37
        %v2671 = vand.u32 %v2628, 2147483648
        %v2672 = vor.u32 1.1754944e-38, %v2671
        %v2673 = vsel %vm2670, %v2672, %v2668
        %v2674 = vmul.f32 1.0, %v2673
        %v2675 = vrcp.pop %v2629
        %v2676 = vmul.f32 %v2629, %v2675
        %v2677 = vsub.f32 1.0, %v2676
        %v2678 = vmul.f32 %v2675, %v2677
        %v2679 = vadd.f32 %v2675, %v2678
        %vm2680 = vweird.f32 %v2629
        %vm2681 = vweird.f32 %v2675
        %vm2682 = vmor %vm2680, %vm2681
        %v2683 = vsel %vm2682, %v2675, %v2679
        %v2684 = vand.u32 2147483647, %v2629
        %vm2685 = vcmp.eq.f32.partialorder %v2684, 8.507059e+37
        %v2686 = vand.u32 %v2629, 2147483648
        %v2687 = vor.u32 1.1754944e-38, %v2686
        %v2688 = vsel %vm2685, %v2687, %v2683
        %v2689 = vmul.f32 1.0, %v2688
        %v2694 = vrot.slane %v2659, 7
        %v2695 = vrot.slane %v2674, 6
        %v2696 = vrot.slane %v2689, 5
        %v2697 = vsel %vm2574, %v2644, %v2694
        %v2698 = vsel %vm2576, %v2695, %v2696
        %v2699 = vsel %vm2578, %v2697, %v2698
        %s2701 = scalar_lea.vmem %s558, 1 [#allocation9]
        %2702 = vst.msk [vmem:[%s2701] ss:$4 sm:$0xf] %vm2584, %v2699
        %v2703 = vmul.f32 %v1876, %v2459
        %v2704 = vmul.f32 %v1895, %v2460
        %v2705 = vmul.f32 %v1914, %v2461
        %v2706 = vmul.f32 %v1933, %v2462
        %v2707 = vrot.slane %v2703, 4
        %v2708 = vadd.f32 %v2703, %v2707
        %v2709 = vrot.slane %v2708, 2
        %v2710 = vadd.f32 %v2708, %v2709
        %v2711 = vrot.slane %v2710, 1
        %v2712 = vadd.f32 %v2710, %v2711
        %v2713 = vrot.slane %v2704, 4
        %v2714 = vadd.f32 %v2704, %v2713
        %v2715 = vrot.slane %v2714, 2
        %v2716 = vadd.f32 %v2714, %v2715
        %v2717 = vrot.slane %v2716, 1
        %v2718 = vadd.f32 %v2716, %v2717
        %v2719 = vrot.slane %v2705, 4
        %v2720 = vadd.f32 %v2705, %v2719
        %v2721 = vrot.slane %v2720, 2
        %v2722 = vadd.f32 %v2720, %v2721
        %v2723 = vrot.slane %v2722, 1
        %v2724 = vadd.f32 %v2722, %v2723
        %v2725 = vrot.slane %v2706, 4
        %v2726 = vadd.f32 %v2706, %v2725
        %v2727 = vrot.slane %v2726, 2
        %v2728 = vadd.f32 %v2726, %v2727
        %v2729 = vrot.slane %v2728, 1
        %v2730 = vadd.f32 %v2728, %v2729
        %v2731 = vxor.u32 %v2712, 2147483648
        %v2732 = vxor.u32 %v2718, 2147483648
        %v2733 = vxor.u32 %v2724, 2147483648
        %v2734 = vxor.u32 %v2730, 2147483648
        %v2735 = vmul.f32 %v2731, 1.442695
        %v2736 = vpow.pop %v2735
        %v2737 = vmul.f32 %v2732, 1.442695
        %v2738 = vpow.pop %v2737
        %v2739 = vmul.f32 %v2733, 1.442695
        %v2740 = vpow.pop %v2739
        %v2741 = vmul.f32 %v2734, 1.442695
        %v2742 = vpow.pop %v2741
        %v2743 = vadd.f32 %v2736, 1.0
        %v2744 = vadd.f32 %v2738, 1.0
        %v2745 = vadd.f32 %v2740, 1.0
        %v2746 = vadd.f32 %v2742, 1.0
        %v2747 = vrcp.pop %v2743
        %v2748 = vmul.f32 %v2743, %v2747
        %v2749 = vsub.f32 1.0, %v2748
        %v2750 = vmul.f32 %v2747, %v2749
        %v2751 = vadd.f32 %v2747, %v2750
        %vm2752 = vweird.f32 %v2743
        %vm2753 = vweird.f32 %v2747
        %vm2754 = vmor %vm2752, %vm2753
        %v2755 = vsel %vm2754, %v2747, %v2751
        %v2756 = vand.u32 2147483647, %v2743
        %vm2757 = vcmp.eq.f32.partialorder %v2756, 8.507059e+37
        %v2758 = vand.u32 %v2743, 2147483648
        %v2759 = vor.u32 1.1754944e-38, %v2758
        %v2760 = vsel %vm2757, %v2759, %v2755
        %v2761 = vmul.f32 1.0, %v2760
        %v2762 = vrcp.pop %v2744
        %v2763 = vmul.f32 %v2744, %v2762
        %v2764 = vsub.f32 1.0, %v2763
        %v2765 = vmul.f32 %v2762, %v2764
        %v2766 = vadd.f32 %v2762, %v2765
        %vm2767 = vweird.f32 %v2744
        %vm2768 = vweird.f32 %v2762
        %vm2769 = vmor %vm2767, %vm2768
        %v2770 = vsel %vm2769, %v2762, %v2766
        %v2771 = vand.u32 2147483647, %v2744
        %vm2772 = vcmp.eq.f32.partialorder %v2771, 8.507059e+37
        %v2773 = vand.u32 %v2744, 2147483648
        %v2774 = vor.u32 1.1754944e-38, %v2773
        %v2775 = vsel %vm2772, %v2774, %v2770
        %v2776 = vmul.f32 1.0, %v2775
        %v2777 = vrcp.pop %v2745
        %v2778 = vmul.f32 %v2745, %v2777
        %v2779 = vsub.f32 1.0, %v2778
        %v2780 = vmul.f32 %v2777, %v2779
        %v2781 = vadd.f32 %v2777, %v2780
        %vm2782 = vweird.f32 %v2745
        %vm2783 = vweird.f32 %v2777
        %vm2784 = vmor %vm2782, %vm2783
        %v2785 = vsel %vm2784, %v2777, %v2781
        %v2786 = vand.u32 2147483647, %v2745
        %vm2787 = vcmp.eq.f32.partialorder %v2786, 8.507059e+37
        %v2788 = vand.u32 %v2745, 2147483648
        %v2789 = vor.u32 1.1754944e-38, %v2788
        %v2790 = vsel %vm2787, %v2789, %v2785
        %v2791 = vmul.f32 1.0, %v2790
        %v2792 = vrcp.pop %v2746
        %v2793 = vmul.f32 %v2746, %v2792
        %v2794 = vsub.f32 1.0, %v2793
        %v2795 = vmul.f32 %v2792, %v2794
        %v2796 = vadd.f32 %v2792, %v2795
        %vm2797 = vweird.f32 %v2746
        %vm2798 = vweird.f32 %v2792
        %vm2799 = vmor %vm2797, %vm2798
        %v2800 = vsel %vm2799, %v2792, %v2796
        %v2801 = vand.u32 2147483647, %v2746
        %vm2802 = vcmp.eq.f32.partialorder %v2801, 8.507059e+37
        %v2803 = vand.u32 %v2746, 2147483648
        %v2804 = vor.u32 1.1754944e-38, %v2803
        %v2805 = vsel %vm2802, %v2804, %v2800
        %v2806 = vmul.f32 1.0, %v2805
        %v2811 = vrot.slane %v2776, 7
        %v2812 = vrot.slane %v2791, 6
        %v2813 = vrot.slane %v2806, 5
        %v2814 = vsel %vm2574, %v2761, %v2811
        %v2815 = vsel %vm2576, %v2812, %v2813
        %v2816 = vsel %vm2578, %v2814, %v2815
        %s2818 = scalar_lea.vmem %s558, 2 [#allocation9]
        %2819 = vst.msk [vmem:[%s2818] ss:$4 sm:$0xf] %vm2584, %v2816
        %v2820 = vmax.f32 %v1878, 0.0
        %v2821 = vmax.f32 %v1897, 0.0
        %v2822 = vmax.f32 %v1916, 0.0
        %v2823 = vmax.f32 %v1935, 0.0
        %v2828 = vrot.slane %v2821, 7
        %v2829 = vrot.slane %v2822, 6
        %v2830 = vrot.slane %v2823, 5
        %v2831 = vsel %vm2574, %v2820, %v2828
        %v2832 = vsel %vm2576, %v2829, %v2830
        %v2833 = vsel %vm2578, %v2831, %v2832
        %s2835 = scalar_lea.vmem %s558, 3 [#allocation9]
        %2836 = vst.msk [vmem:[%s2835] ss:$4 sm:$0xf] %vm2584, %v2833
        %s2837 = sand.u32 %s344, 1
        %s2838 = scalar_lea.sflag [#allocation6], %s2837
        %s2839 = sand.u32 %s344, 1
        %s2840 = smul.addr %s2839, 16
        %s2841 = scalar_lea.vmem [#allocation9], %s2840
        // Predicated region
        $region108: #{tpu_custom_call.1} parent=94 // pred_check
          %p2842 = pneg %p354
        $region109: #{tpu_custom_call.1} parent=94 // pred_check_branch
          %2844 = sbr.rel (%p2842) target = $region111
        $region110: #{tpu_custom_call.1} parent=94 // pred_region
          %s2845 = smul.u32 4, %s32
          %2847 = vsyncadd %s2838, 0
          %s2848 = smul.addr %s2845, 4
          %s2849 = scalar_lea.hbm %s14, %s2848
          %s2851 = sshll.u32 %s2841, 4
          %s2852 = int_to_ptr.vmem [resolvable:$true] %s2851
          %s2853 = sshll.u32 %s2849, 4
          %s2854 = int_to_ptr.hbm [resolvable:$true] %s2853
          %2856 = dma.vmem_to_hbm [thread:$0]  %s2852, 256, %s2854, %s2838
        $region111: #{tpu_custom_call.1} parent=94 // pred_fallthru
          _
      $region95: #{tpu_custom_call.1} parent=5 // pred_fallthru
        _
      %p2857 = scmp.le.s32.totalorder 2, %s27
      // Predicated region
      $region112: #{tpu_custom_call.1} parent=5 // pred_check
        %p2858 = pneg %p2857
      $region113: #{tpu_custom_call.1} parent=5 // pred_check_branch
        %2860 = sbr.rel (%p2858) target = $region115
      $region114: #{tpu_custom_call.1} parent=5 // pred_region
        %s2861 = ssub.s32 %s27, 2
        // Predicated region
        $region116: #{tpu_custom_call.1} parent=114 // pred_check
          %p2862 = pneg %p360
        $region117: #{tpu_custom_call.1} parent=114 // pred_check_branch
          %2864 = sbr.rel (%p2862) target = $region119
        $region118: #{tpu_custom_call.1} parent=114 // pred_region
          %s2865 = sand.u32 %s345, 1
          %s2866 = scalar_lea.sflag [#allocation6], %s2865
          %s2867 = sand.u32 %s345, 1
          %s2868 = smul.addr %s2867, 16
          %s2869 = scalar_lea.vmem [#allocation9], %s2868
          %2871 = dma.done %s2866, 256
        $region119: #{tpu_custom_call.1} parent=114 // pred_fallthru
          _
      $region115: #{tpu_custom_call.1} parent=5 // pred_fallthru
        _
    $region6: #{tpu_custom_call.1} parent=1 // loop_footer
      %s31 = sadd.s32 1, %s27
    $region7: #{tpu_custom_call.1} parent=1 // loop_footer_branch
      %26 = sbr.rel target = $region3
    $region8: #{tpu_custom_call.1} parent=1 // loop_exit
      _
    %2872 = vsyncpa [#allocation5], 1
    %s2873 = scalar_lea.sflag [#allocation5], 1
    %2874 = vsyncpa %s2873, 1
    %2875 = vsyncpa [#allocation8], 1
    %2876 = vsyncpa [#allocation6], 1
    %s2877 = scalar_lea.sflag [#allocation6], 1
    %2878 = vsyncpa %s2877, 1

</llo_original>
